<compile_context>
chip_gen: v7x
topology: tpu7x:2x2x1
jax: 0.10.0
libtpu: 0.0.40
codegen_flags: <defaults>
</compile_context>

<pallas_src>
import functools
import math

import jax
import jax.numpy as jnp
from jax.experimental import pallas as pl
from jax.experimental.pallas import tpu as pltpu


# ----------------------------------------------------------------------------
# Pallas kernels
# ----------------------------------------------------------------------------

def _linear_kernel(x_ref, w_ref, b_ref, o_ref, *, relu):
    # x: (tile_m, K), w: (K, N), b: (1, N)
    y = jnp.dot(x_ref[...], w_ref[...], preferred_element_type=jnp.float32)
    y = y + b_ref[...]
    if relu:
        y = jnp.maximum(y, 0.0)
    o_ref[...] = y.astype(o_ref.dtype)


def linear_pallas(x2d, w, b2d, relu=False):
    """y = x2d @ w + b (optionally ReLU). x2d: (M,K), w: (K,N), b2d: (1,N)."""
    M, K = x2d.shape
    N = w.shape[1]
    tile_m = 256
    if M < tile_m or M % tile_m != 0:
        tile_m = M
    kern = functools.partial(_linear_kernel, relu=relu)
    return pl.pallas_call(
        kern,
        out_shape=jax.ShapeDtypeStruct((M, N), x2d.dtype),
        grid=(M // tile_m,),
        in_specs=[
            pl.BlockSpec((tile_m, K), lambda i: (i, 0)),
            pl.BlockSpec((K, N), lambda i: (0, 0)),
            pl.BlockSpec((1, N), lambda i: (0, 0)),
        ],
        out_specs=pl.BlockSpec((tile_m, N), lambda i: (i, 0)),
        compiler_params=pltpu.CompilerParams(dimension_semantics=("parallel",)),
    )(x2d, w, b2d)


def _fused_mha_ln_kernel(xq_ref, xkv_ref, wq_ref, bq_ref, wkv_ref, bkv_ref,
                         wo_ref, bo_ref, g_ref, beta_ref, *rest,
                         h, dk, scale, eps, has_mask):
    """Per-batch fused: QKV proj -> per-head attention -> out proj -> residual -> LN."""
    if has_mask:
        mask_ref, o_ref = rest
    else:
        (o_ref,) = rest

    xq = xq_ref[0]      # (Sq, D)
    xkv = xkv_ref[0]    # (Sk, D)
    D = h * dk

    q = jnp.dot(xq, wq_ref[...], preferred_element_type=jnp.float32) + bq_ref[...]
    kv = jnp.dot(xkv, wkv_ref[...], preferred_element_type=jnp.float32) + bkv_ref[...]
    k = kv[:, :D]
    v = kv[:, D:]

    add_mask = mask_ref[0] if has_mask else None

    head_outs = []
    for hd in range(h):
        sl = slice(hd * dk, (hd + 1) * dk)
        qh = q[:, sl]                                      # (Sq, dk)
        kh = k[:, sl]                                      # (Sk, dk)
        vh = v[:, sl]                                      # (Sk, dk)
        # contract on last dims: no explicit transpose of k
        s = jax.lax.dot_general(qh, kh, (((1,), (1,)), ((), ())),
                                preferred_element_type=jnp.float32) * scale
        if add_mask is not None:
            s = s + add_mask
        mx = jnp.max(s, axis=-1, keepdims=True)
        p = jnp.exp(s - mx)
        denom = jnp.sum(p, axis=-1, keepdims=True)
        attn = p * pl.reciprocal(denom, approx=True)
        head_outs.append(jnp.dot(attn, vh, preferred_element_type=jnp.float32))
    o = jnp.concatenate(head_outs, axis=-1)                # (Sq, D)

    y = jnp.dot(o, wo_ref[...], preferred_element_type=jnp.float32) + bo_ref[...]

    # fused residual + LayerNorm
    r = xq + y
    mean = jnp.mean(r, axis=-1, keepdims=True)
    var = jnp.mean((r - mean) ** 2, axis=-1, keepdims=True)
    rn = (r - mean) * jax.lax.rsqrt(var + eps)
    o_ref[0] = (rn * g_ref[...] + beta_ref[...]).astype(o_ref.dtype)


def fused_mha_ln(x_q, x_kv, mha_p, ln_p, add_mask, *, h, eps=1e-5):
    """x_q: (B,Sq,D); x_kv: (B,Sk,D); add_mask: None or (B,Sq,Sk) additive mask."""
    B, Sq, D = x_q.shape
    Sk = x_kv.shape[1]
    dk = D // h
    scale = 1.0 / math.sqrt(dk)
    has_mask = add_mask is not None

    kern = functools.partial(_fused_mha_ln_kernel, h=h, dk=dk, scale=scale,
                             eps=eps, has_mask=has_mask)

    in_specs = [
        pl.BlockSpec((1, Sq, D), lambda b: (b, 0, 0)),
        pl.BlockSpec((1, Sk, D), lambda b: (b, 0, 0)),
        pl.BlockSpec((D, D), lambda b: (0, 0)),
        pl.BlockSpec((1, D), lambda b: (0, 0)),
        pl.BlockSpec((D, 2 * D), lambda b: (0, 0)),
        pl.BlockSpec((1, 2 * D), lambda b: (0, 0)),
        pl.BlockSpec((D, D), lambda b: (0, 0)),
        pl.BlockSpec((1, D), lambda b: (0, 0)),
        pl.BlockSpec((1, D), lambda b: (0, 0)),
        pl.BlockSpec((1, D), lambda b: (0, 0)),
    ]
    args = [x_q, x_kv, mha_p["wq"], mha_p["bq"], mha_p["wkv"], mha_p["bkv"],
            mha_p["wo"], mha_p["bo"], ln_p["g"], ln_p["b"]]
    if has_mask:
        in_specs.append(pl.BlockSpec((1, Sq, Sk), lambda b: (b, 0, 0)))
        args.append(add_mask)

    return pl.pallas_call(
        kern,
        out_shape=jax.ShapeDtypeStruct((B, Sq, D), x_q.dtype),
        grid=(B,),
        in_specs=in_specs,
        out_specs=pl.BlockSpec((1, Sq, D), lambda b: (b, 0, 0)),
        compiler_params=pltpu.CompilerParams(dimension_semantics=("parallel",)),
    )(*args)


def _ffn_ln_kernel(x_ref, w1_ref, b1_ref, w2_ref, b2_ref, g_ref, beta_ref, o_ref, *, eps):
    """Fused FFN: relu(x@w1+b1)@w2+b2, residual, LayerNorm. Intermediate stays in VMEM."""
    x = x_ref[...]
    h1 = jnp.dot(x, w1_ref[...], preferred_element_type=jnp.float32) + b1_ref[...]
    h1 = jnp.maximum(h1, 0.0)
    y = jnp.dot(h1, w2_ref[...], preferred_element_type=jnp.float32) + b2_ref[...]
    r = x + y
    mean = jnp.mean(r, axis=-1, keepdims=True)
    var = jnp.mean((r - mean) ** 2, axis=-1, keepdims=True)
    rn = (r - mean) * jax.lax.rsqrt(var + eps)
    o_ref[...] = (rn * g_ref[...] + beta_ref[...]).astype(o_ref.dtype)


def fused_ffn_ln(x, ffn_p, ln_p, eps=1e-5):
    B, S, D = x.shape
    M = B * S
    dff = ffn_p["w1"].shape[1]
    x2 = x.reshape(M, D)
    tile_m = 256
    if M < tile_m or M % tile_m != 0:
        tile_m = M
    kern = functools.partial(_ffn_ln_kernel, eps=eps)
    out = pl.pallas_call(
        kern,
        out_shape=jax.ShapeDtypeStruct((M, D), x.dtype),
        grid=(M // tile_m,),
        in_specs=[
            pl.BlockSpec((tile_m, D), lambda i: (i, 0)),
            pl.BlockSpec((D, dff), lambda i: (0, 0)),
            pl.BlockSpec((1, dff), lambda i: (0, 0)),
            pl.BlockSpec((dff, D), lambda i: (0, 0)),
            pl.BlockSpec((1, D), lambda i: (0, 0)),
            pl.BlockSpec((1, D), lambda i: (0, 0)),
            pl.BlockSpec((1, D), lambda i: (0, 0)),
        ],
        out_specs=pl.BlockSpec((tile_m, D), lambda i: (i, 0)),
        compiler_params=pltpu.CompilerParams(dimension_semantics=("parallel",)),
    )(x2, ffn_p["w1"], ffn_p["b1"], ffn_p["w2"], ffn_p["b2"], ln_p["g"], ln_p["b"])
    return out.reshape(B, S, D)


# ----------------------------------------------------------------------------
# Parameter init (deterministic, synthetic)
# ----------------------------------------------------------------------------

def _init_linear(key, d_in, d_out):
    kw, kb = jax.random.split(key)
    s = 1.0 / math.sqrt(d_in)
    w = jax.random.uniform(kw, (d_in, d_out), jnp.float32, -s, s)
    b = jax.random.uniform(kb, (d_out,), jnp.float32, -s, s)
    return w, b


def _init_ln(d):
    return {"g": jnp.ones((1, d), jnp.float32), "b": jnp.zeros((1, d), jnp.float32)}


def _init_mha(key, d):
    ks = jax.random.split(key, 4)
    wq, bq = _init_linear(ks[0], d, d)
    wk, bk = _init_linear(ks[1], d, d)
    wv, bv = _init_linear(ks[2], d, d)
    wo, bo = _init_linear(ks[3], d, d)
    return {
        "wq": wq, "bq": bq.reshape(1, d),
        # k/v weights concatenated once at init -> single matmul in the kernel
        "wkv": jnp.concatenate([wk, wv], axis=1),
        "bkv": jnp.concatenate([bk, bv]).reshape(1, 2 * d),
        "wo": wo, "bo": bo.reshape(1, d),
    }


def _init_ffn(key, d, dff):
    k1, k2 = jax.random.split(key)
    w1, b1 = _init_linear(k1, d, dff)
    w2, b2 = _init_linear(k2, dff, d)
    return {"w1": w1, "b1": b1.reshape(1, dff), "w2": w2, "b2": b2.reshape(1, d)}


def init_params(key, max_nb_var, d_model, vocab_size, seq_length, N_enc, N_dec):
    dff = 4 * d_model
    keys = jax.random.split(key, 4 + N_enc + N_dec)

    w_in, b_in = _init_linear(keys[0], max_nb_var, d_model)
    params = {
        "in_proj": {"w": w_in, "b": b_in.reshape(1, d_model)},
        "embedding": 0.02 * jax.random.normal(keys[1], (vocab_size, d_model), jnp.float32),
    }

    # final projection: zero-pad vocab dim to a multiple of 128 for lane-dense stores
    vocab_pad = max(128, ((vocab_size + 127) // 128) * 128)
    w_last, b_last = _init_linear(keys[2], d_model, vocab_size)
    w_pad = jnp.zeros((d_model, vocab_pad), jnp.float32).at[:, :vocab_size].set(w_last)
    b_pad = jnp.zeros((vocab_pad,), jnp.float32).at[:vocab_size].set(b_last)
    params["last_layer"] = {"w": w_pad, "b": b_pad.reshape(1, vocab_pad)}

    enc_layers = []
    for li in range(N_enc):
        k1, k2 = jax.random.split(keys[3 + li])
        enc_layers.append({
            "self_attn": _init_mha(k1, d_model),
            "ln1": _init_ln(d_model),
            "ffn": _init_ffn(k2, d_model, dff),
            "ln2": _init_ln(d_model),
        })
    params["enc_layers"] = enc_layers

    dec_layers = []
    for li in range(N_dec):
        k1, k2, k3 = jax.random.split(keys[3 + N_enc + li], 3)
        dec_layers.append({
            "self_attn": _init_mha(k1, d_model),
            "ln1": _init_ln(d_model),
            "cross_attn": _init_mha(k2, d_model),
            "ln2": _init_ln(d_model),
            "ffn": _init_ffn(k3, d_model, dff),
            "ln3": _init_ln(d_model),
        })
    params["dec_layers"] = dec_layers

    # sinusoidal positional encoding for the decoder
    pos = jnp.arange(seq_length)[:, None].astype(jnp.float32)
    i = jnp.arange(d_model)[None, :].astype(jnp.float32)
    angle = pos / jnp.power(10000.0, (2.0 * jnp.floor(i / 2.0)) / d_model)
    params["pe"] = jnp.where((jnp.arange(d_model)[None, :] % 2) == 0,
                             jnp.sin(angle), jnp.cos(angle)).astype(jnp.float32)
    return params


# ----------------------------------------------------------------------------
# Model forward (glue around fused Pallas kernels)
# ----------------------------------------------------------------------------

def transformer_forward(params, input_enc, target_seq, h, vocab_size):
    B, S_enc, F = input_enc.shape
    S_dec = target_seq.shape[1]
    D = params["embedding"].shape[1]

    # ---- decoder mask (matches the PyTorch forward); additive, per-batch, no head bcast ----
    padding_mask = (target_seq == 0)[:, None, :]                          # (B,1,S_dec)
    future_mask = jnp.triu(jnp.ones((S_dec, S_dec), jnp.bool_), k=1)      # (S_dec,S_dec)
    mask_dec = jnp.logical_or(padding_mask, future_mask[None, :, :])      # (B,S_dec,S_dec)
    mask_dec_add = jnp.where(mask_dec, -1e9, 0.0).astype(jnp.float32)
    # TODO(synk): reference forward exposes no encoder / cross-attention padding mask,
    # so those attentions run unmasked (mask input omitted entirely).

    # ---- encoder ----
    x = linear_pallas(input_enc.reshape(B * S_enc, F),
                      params["in_proj"]["w"], params["in_proj"]["b"]).reshape(B, S_enc, D)
    for layer in params["enc_layers"]:
        x = fused_mha_ln(x, x, layer["self_attn"], layer["ln1"], None, h=h)
        x = fused_ffn_ln(x, layer["ffn"], layer["ln2"])
    encoder_output = x

    # ---- decoder ----
    emb = jnp.take(params["embedding"], target_seq, axis=0) * math.sqrt(D)   # (B,S_dec,D)
    y = emb + params["pe"][None, :S_dec, :]
    for layer in params["dec_layers"]:
        y = fused_mha_ln(y, y, layer["self_attn"], layer["ln1"], mask_dec_add, h=h)
        y = fused_mha_ln(y, encoder_output, layer["cross_attn"], layer["ln2"], None, h=h)
        y = fused_ffn_ln(y, layer["ffn"], layer["ln3"])

    # ---- last_layer (lane-dense padded vocab, slice back to true vocab) ----
    logits_pad = linear_pallas(y.reshape(B * S_dec, D),
                               params["last_layer"]["w"], params["last_layer"]["b"])
    return logits_pad.reshape(B, S_dec, -1)[:, :, :vocab_size]


# ----------------------------------------------------------------------------
# Main
# ----------------------------------------------------------------------------

if __name__ == "__main__":
    # Module hyperparameters (small, consistent with the reference __init__)
    enc_type = "mlp"       # not used by the synthetic init
    nb_samples = 8
    max_nb_var = 4
    d_model = 32
    vocab_size = 16
    seq_length = 8
    h = 4
    N_enc = 2
    N_dec = 2
    dropout = 0.0          # inference: dropout is identity

    key = jax.random.PRNGKey(0)
    kp, kx, kt = jax.random.split(key, 3)

    params = init_params(kp, max_nb_var, d_model, vocab_size, seq_length, N_enc, N_dec)

    B = 2
    input_enc = jax.random.normal(kx, (B, nb_samples, max_nb_var), jnp.float32)
    target_seq = jax.random.randint(kt, (B, seq_length), 0, vocab_size).astype(jnp.int32)

    fwd = jax.jit(lambda ie, ts: transformer_forward(params, ie, ts, h, vocab_size))
    out = fwd(input_enc, target_seq)
    out = jax.block_until_ready(out)

    assert out.shape == (B, seq_length, vocab_size), out.shape
    assert bool(jnp.all(jnp.isfinite(out)))
    print("KERNEL_OK")
</pallas_src>

<mosaic_0001>
module attributes {stable_mosaic.version = 11 : i64} {
  func.func @_fused_mha_ln_kernel(%arg0: i32, %arg1: memref<1x8x32xf32, #tpu.memory_space<vmem>>, %arg2: memref<1x8x32xf32, #tpu.memory_space<vmem>>, %arg3: memref<32x32xf32, #tpu.memory_space<vmem>>, %arg4: memref<1x32xf32, #tpu.memory_space<vmem>>, %arg5: memref<32x64xf32, #tpu.memory_space<vmem>>, %arg6: memref<1x64xf32, #tpu.memory_space<vmem>>, %arg7: memref<32x32xf32, #tpu.memory_space<vmem>>, %arg8: memref<1x32xf32, #tpu.memory_space<vmem>>, %arg9: memref<1x32xf32, #tpu.memory_space<vmem>>, %arg10: memref<1x32xf32, #tpu.memory_space<vmem>>, %arg11: memref<1x8x8xf32, #tpu.memory_space<vmem>>, %arg12: memref<1x8x32xf32, #tpu.memory_space<vmem>>) attributes {dimension_semantics = [#tpu.dimension_semantics<parallel>], iteration_bounds = array<i64: 2>, scalar_prefetch = 0 : i64, scratch_operands = 0 : i64, tpu.core_type = #tpu.core_type<tc>, window_params = [{transform_indices = @transform_0, window_bounds = array<i64: 1, 8, 32>}, {transform_indices = @transform_1, window_bounds = array<i64: 1, 8, 32>}, {pipeline_mode = #tpu.pipeline_mode<synchronous>, transform_indices = @transform_2, window_bounds = array<i64: 32, 32>}, {pipeline_mode = #tpu.pipeline_mode<synchronous>, transform_indices = @transform_3, window_bounds = array<i64: 1, 32>}, {pipeline_mode = #tpu.pipeline_mode<synchronous>, transform_indices = @transform_4, window_bounds = array<i64: 32, 64>}, {pipeline_mode = #tpu.pipeline_mode<synchronous>, transform_indices = @transform_5, window_bounds = array<i64: 1, 64>}, {pipeline_mode = #tpu.pipeline_mode<synchronous>, transform_indices = @transform_6, window_bounds = array<i64: 32, 32>}, {pipeline_mode = #tpu.pipeline_mode<synchronous>, transform_indices = @transform_7, window_bounds = array<i64: 1, 32>}, {pipeline_mode = #tpu.pipeline_mode<synchronous>, transform_indices = @transform_8, window_bounds = array<i64: 1, 32>}, {pipeline_mode = #tpu.pipeline_mode<synchronous>, transform_indices = @transform_9, window_bounds = array<i64: 1, 32>}, {transform_indices = @transform_10, window_bounds = array<i64: 1, 8, 8>}, {transform_indices = @transform_11, window_bounds = array<i64: 1, 8, 32>}]} {
    %c0 = arith.constant 0 : index
    %c0_0 = arith.constant 0 : index
    %c0_1 = arith.constant 0 : index
    %0 = vector.load %arg1[%c0, %c0_0, %c0_1] : memref<1x8x32xf32, #tpu.memory_space<vmem>>, vector<1x8x32xf32>
    %1 = vector.shape_cast %0 : vector<1x8x32xf32> to vector<8x32xf32>
    %c0_2 = arith.constant 0 : index
    %c0_3 = arith.constant 0 : index
    %c0_4 = arith.constant 0 : index
    %2 = vector.load %arg2[%c0_2, %c0_3, %c0_4] : memref<1x8x32xf32, #tpu.memory_space<vmem>>, vector<1x8x32xf32>
    %3 = vector.shape_cast %2 : vector<1x8x32xf32> to vector<8x32xf32>
    %c0_5 = arith.constant 0 : index
    %c0_6 = arith.constant 0 : index
    %4 = vector.load %arg3[%c0_5, %c0_6] : memref<32x32xf32, #tpu.memory_space<vmem>>, vector<32x32xf32>
    %cst = arith.constant dense<0.000000e+00> : vector<8x32xf32>
    %5 = tpu.matmul %1, %4, %cst {dimension_numbers = #tpu.dot_dimension_numbers<[1], [0], [0], [1], [0, 0, 1, 1], [], []>} : vector<8x32xf32>, vector<32x32xf32>, vector<8x32xf32> -> vector<8x32xf32>
    %c0_7 = arith.constant 0 : index
    %c0_8 = arith.constant 0 : index
    %6 = vector.load %arg4[%c0_7, %c0_8] : memref<1x32xf32, #tpu.memory_space<vmem>>, vector<1x32xf32>
    %7 = vector.broadcast %6 : vector<1x32xf32> to vector<8x32xf32>
    %8 = arith.addf %5, %7 : vector<8x32xf32>
    %c0_9 = arith.constant 0 : index
    %c0_10 = arith.constant 0 : index
    %9 = vector.load %arg5[%c0_9, %c0_10] : memref<32x64xf32, #tpu.memory_space<vmem>>, vector<32x64xf32>
    %cst_11 = arith.constant dense<0.000000e+00> : vector<8x64xf32>
    %10 = tpu.matmul %3, %9, %cst_11 {dimension_numbers = #tpu.dot_dimension_numbers<[1], [0], [0], [1], [0, 0, 1, 1], [], []>} : vector<8x32xf32>, vector<32x64xf32>, vector<8x64xf32> -> vector<8x64xf32>
    %c0_12 = arith.constant 0 : index
    %c0_13 = arith.constant 0 : index
    %11 = vector.load %arg6[%c0_12, %c0_13] : memref<1x64xf32, #tpu.memory_space<vmem>>, vector<1x64xf32>
    %12 = vector.broadcast %11 : vector<1x64xf32> to vector<8x64xf32>
    %13 = arith.addf %10, %12 : vector<8x64xf32>
    %14 = vector.extract_strided_slice %13 {offsets = [0, 0], sizes = [8, 32], strides = [1, 1]} : vector<8x64xf32> to vector<8x32xf32>
    %15 = vector.extract_strided_slice %13 {offsets = [0, 32], sizes = [8, 32], strides = [1, 1]} : vector<8x64xf32> to vector<8x32xf32>
    %c0_14 = arith.constant 0 : index
    %c0_15 = arith.constant 0 : index
    %c0_16 = arith.constant 0 : index
    %16 = vector.load %arg11[%c0_14, %c0_15, %c0_16] : memref<1x8x8xf32, #tpu.memory_space<vmem>>, vector<1x8x8xf32>
    %17 = vector.shape_cast %16 : vector<1x8x8xf32> to vector<8x8xf32>
    %18 = vector.extract_strided_slice %8 {offsets = [0, 0], sizes = [8, 8], strides = [1, 1]} : vector<8x32xf32> to vector<8x8xf32>
    %19 = vector.extract_strided_slice %14 {offsets = [0, 0], sizes = [8, 8], strides = [1, 1]} : vector<8x32xf32> to vector<8x8xf32>
    %20 = vector.extract_strided_slice %15 {offsets = [0, 0], sizes = [8, 8], strides = [1, 1]} : vector<8x32xf32> to vector<8x8xf32>
    %cst_17 = arith.constant dense<0.000000e+00> : vector<8x8xf32>
    %21 = tpu.matmul %18, %19, %cst_17 {dimension_numbers = #tpu.dot_dimension_numbers<[1], [1], [0], [0], [0, 0, 1, 0], [], []>} : vector<8x8xf32>, vector<8x8xf32>, vector<8x8xf32> -> vector<8x8xf32>
    %cst_18 = arith.constant 0.353553385 : f32
    %22 = vector.broadcast %cst_18 : f32 to vector<8x8xf32>
    %23 = arith.mulf %21, %22 : vector<8x8xf32>
    %24 = arith.addf %23, %17 : vector<8x8xf32>
    %cst_19 = arith.constant dense<0xFF800000> : vector<8xf32>
    %25 = vector.multi_reduction <maximumf>, %24, %cst_19 [1] : vector<8x8xf32> to vector<8xf32>
    %26 = vector.shape_cast %25 : vector<8xf32> to vector<8x1xf32>
    %27 = vector.broadcast %26 : vector<8x1xf32> to vector<8x8xf32>
    %28 = arith.subf %24, %27 : vector<8x8xf32>
    %29 = math.exp %28 : vector<8x8xf32>
    %cst_20 = arith.constant dense<0.000000e+00> : vector<8xf32>
    %30 = vector.multi_reduction <add>, %29, %cst_20 [1] : vector<8x8xf32> to vector<8xf32>
    %31 = vector.shape_cast %30 : vector<8xf32> to vector<8x1xf32>
    %32 = tpu.reciprocal %31 {approx = true} : vector<8x1xf32> -> vector<8x1xf32>
    %33 = vector.broadcast %32 : vector<8x1xf32> to vector<8x8xf32>
    %34 = arith.mulf %29, %33 : vector<8x8xf32>
    %cst_21 = arith.constant dense<0.000000e+00> : vector<8x8xf32>
    %35 = tpu.matmul %34, %20, %cst_21 {dimension_numbers = #tpu.dot_dimension_numbers<[1], [0], [0], [1], [0, 0, 1, 1], [], []>} : vector<8x8xf32>, vector<8x8xf32>, vector<8x8xf32> -> vector<8x8xf32>
    %36 = vector.extract_strided_slice %8 {offsets = [0, 8], sizes = [8, 8], strides = [1, 1]} : vector<8x32xf32> to vector<8x8xf32>
    %37 = vector.extract_strided_slice %14 {offsets = [0, 8], sizes = [8, 8], strides = [1, 1]} : vector<8x32xf32> to vector<8x8xf32>
    %38 = vector.extract_strided_slice %15 {offsets = [0, 8], sizes = [8, 8], strides = [1, 1]} : vector<8x32xf32> to vector<8x8xf32>
    %cst_22 = arith.constant dense<0.000000e+00> : vector<8x8xf32>
    %39 = tpu.matmul %36, %37, %cst_22 {dimension_numbers = #tpu.dot_dimension_numbers<[1], [1], [0], [0], [0, 0, 1, 0], [], []>} : vector<8x8xf32>, vector<8x8xf32>, vector<8x8xf32> -> vector<8x8xf32>
    %cst_23 = arith.constant 0.353553385 : f32
    %40 = vector.broadcast %cst_23 : f32 to vector<8x8xf32>
    %41 = arith.mulf %39, %40 : vector<8x8xf32>
    %42 = arith.addf %41, %17 : vector<8x8xf32>
    %cst_24 = arith.constant dense<0xFF800000> : vector<8xf32>
    %43 = vector.multi_reduction <maximumf>, %42, %cst_24 [1] : vector<8x8xf32> to vector<8xf32>
    %44 = vector.shape_cast %43 : vector<8xf32> to vector<8x1xf32>
    %45 = vector.broadcast %44 : vector<8x1xf32> to vector<8x8xf32>
    %46 = arith.subf %42, %45 : vector<8x8xf32>
    %47 = math.exp %46 : vector<8x8xf32>
    %cst_25 = arith.constant dense<0.000000e+00> : vector<8xf32>
    %48 = vector.multi_reduction <add>, %47, %cst_25 [1] : vector<8x8xf32> to vector<8xf32>
    %49 = vector.shape_cast %48 : vector<8xf32> to vector<8x1xf32>
    %50 = tpu.reciprocal %49 {approx = true} : vector<8x1xf32> -> vector<8x1xf32>
    %51 = vector.broadcast %50 : vector<8x1xf32> to vector<8x8xf32>
    %52 = arith.mulf %47, %51 : vector<8x8xf32>
    %cst_26 = arith.constant dense<0.000000e+00> : vector<8x8xf32>
    %53 = tpu.matmul %52, %38, %cst_26 {dimension_numbers = #tpu.dot_dimension_numbers<[1], [0], [0], [1], [0, 0, 1, 1], [], []>} : vector<8x8xf32>, vector<8x8xf32>, vector<8x8xf32> -> vector<8x8xf32>
    %54 = vector.extract_strided_slice %8 {offsets = [0, 16], sizes = [8, 8], strides = [1, 1]} : vector<8x32xf32> to vector<8x8xf32>
    %55 = vector.extract_strided_slice %14 {offsets = [0, 16], sizes = [8, 8], strides = [1, 1]} : vector<8x32xf32> to vector<8x8xf32>
    %56 = vector.extract_strided_slice %15 {offsets = [0, 16], sizes = [8, 8], strides = [1, 1]} : vector<8x32xf32> to vector<8x8xf32>
    %cst_27 = arith.constant dense<0.000000e+00> : vector<8x8xf32>
    %57 = tpu.matmul %54, %55, %cst_27 {dimension_numbers = #tpu.dot_dimension_numbers<[1], [1], [0], [0], [0, 0, 1, 0], [], []>} : vector<8x8xf32>, vector<8x8xf32>, vector<8x8xf32> -> vector<8x8xf32>
    %cst_28 = arith.constant 0.353553385 : f32
    %58 = vector.broadcast %cst_28 : f32 to vector<8x8xf32>
    %59 = arith.mulf %57, %58 : vector<8x8xf32>
    %60 = arith.addf %59, %17 : vector<8x8xf32>
    %cst_29 = arith.constant dense<0xFF800000> : vector<8xf32>
    %61 = vector.multi_reduction <maximumf>, %60, %cst_29 [1] : vector<8x8xf32> to vector<8xf32>
    %62 = vector.shape_cast %61 : vector<8xf32> to vector<8x1xf32>
    %63 = vector.broadcast %62 : vector<8x1xf32> to vector<8x8xf32>
    %64 = arith.subf %60, %63 : vector<8x8xf32>
    %65 = math.exp %64 : vector<8x8xf32>
    %cst_30 = arith.constant dense<0.000000e+00> : vector<8xf32>
    %66 = vector.multi_reduction <add>, %65, %cst_30 [1] : vector<8x8xf32> to vector<8xf32>
    %67 = vector.shape_cast %66 : vector<8xf32> to vector<8x1xf32>
    %68 = tpu.reciprocal %67 {approx = true} : vector<8x1xf32> -> vector<8x1xf32>
    %69 = vector.broadcast %68 : vector<8x1xf32> to vector<8x8xf32>
    %70 = arith.mulf %65, %69 : vector<8x8xf32>
    %cst_31 = arith.constant dense<0.000000e+00> : vector<8x8xf32>
    %71 = tpu.matmul %70, %56, %cst_31 {dimension_numbers = #tpu.dot_dimension_numbers<[1], [0], [0], [1], [0, 0, 1, 1], [], []>} : vector<8x8xf32>, vector<8x8xf32>, vector<8x8xf32> -> vector<8x8xf32>
    %72 = vector.extract_strided_slice %8 {offsets = [0, 24], sizes = [8, 8], strides = [1, 1]} : vector<8x32xf32> to vector<8x8xf32>
    %73 = vector.extract_strided_slice %14 {offsets = [0, 24], sizes = [8, 8], strides = [1, 1]} : vector<8x32xf32> to vector<8x8xf32>
    %74 = vector.extract_strided_slice %15 {offsets = [0, 24], sizes = [8, 8], strides = [1, 1]} : vector<8x32xf32> to vector<8x8xf32>
    %cst_32 = arith.constant dense<0.000000e+00> : vector<8x8xf32>
    %75 = tpu.matmul %72, %73, %cst_32 {dimension_numbers = #tpu.dot_dimension_numbers<[1], [1], [0], [0], [0, 0, 1, 0], [], []>} : vector<8x8xf32>, vector<8x8xf32>, vector<8x8xf32> -> vector<8x8xf32>
    %cst_33 = arith.constant 0.353553385 : f32
    %76 = vector.broadcast %cst_33 : f32 to vector<8x8xf32>
    %77 = arith.mulf %75, %76 : vector<8x8xf32>
    %78 = arith.addf %77, %17 : vector<8x8xf32>
    %cst_34 = arith.constant dense<0xFF800000> : vector<8xf32>
    %79 = vector.multi_reduction <maximumf>, %78, %cst_34 [1] : vector<8x8xf32> to vector<8xf32>
    %80 = vector.shape_cast %79 : vector<8xf32> to vector<8x1xf32>
    %81 = vector.broadcast %80 : vector<8x1xf32> to vector<8x8xf32>
    %82 = arith.subf %78, %81 : vector<8x8xf32>
    %83 = math.exp %82 : vector<8x8xf32>
    %cst_35 = arith.constant dense<0.000000e+00> : vector<8xf32>
    %84 = vector.multi_reduction <add>, %83, %cst_35 [1] : vector<8x8xf32> to vector<8xf32>
    %85 = vector.shape_cast %84 : vector<8xf32> to vector<8x1xf32>
    %86 = tpu.reciprocal %85 {approx = true} : vector<8x1xf32> -> vector<8x1xf32>
    %87 = vector.broadcast %86 : vector<8x1xf32> to vector<8x8xf32>
    %88 = arith.mulf %83, %87 : vector<8x8xf32>
    %cst_36 = arith.constant dense<0.000000e+00> : vector<8x8xf32>
    %89 = tpu.matmul %88, %74, %cst_36 {dimension_numbers = #tpu.dot_dimension_numbers<[1], [0], [0], [1], [0, 0, 1, 1], [], []>} : vector<8x8xf32>, vector<8x8xf32>, vector<8x8xf32> -> vector<8x8xf32>
    %90 = tpu.concatenate %35, %53, %71, %89 in 1 : vector<8x8xf32>, vector<8x8xf32>, vector<8x8xf32>, vector<8x8xf32> -> vector<8x32xf32>
    %c0_37 = arith.constant 0 : index
    %c0_38 = arith.constant 0 : index
    %91 = vector.load %arg7[%c0_37, %c0_38] : memref<32x32xf32, #tpu.memory_space<vmem>>, vector<32x32xf32>
    %cst_39 = arith.constant dense<0.000000e+00> : vector<8x32xf32>
    %92 = tpu.matmul %90, %91, %cst_39 {dimension_numbers = #tpu.dot_dimension_numbers<[1], [0], [0], [1], [0, 0, 1, 1], [], []>} : vector<8x32xf32>, vector<32x32xf32>, vector<8x32xf32> -> vector<8x32xf32>
    %c0_40 = arith.constant 0 : index
    %c0_41 = arith.constant 0 : index
    %93 = vector.load %arg8[%c0_40, %c0_41] : memref<1x32xf32, #tpu.memory_space<vmem>>, vector<1x32xf32>
    %94 = vector.broadcast %93 : vector<1x32xf32> to vector<8x32xf32>
    %95 = arith.addf %92, %94 : vector<8x32xf32>
    %96 = arith.addf %1, %95 : vector<8x32xf32>
    %cst_42 = arith.constant dense<0.000000e+00> : vector<8xf32>
    %97 = vector.multi_reduction <add>, %96, %cst_42 [1] : vector<8x32xf32> to vector<8xf32>
    %98 = vector.shape_cast %97 : vector<8xf32> to vector<8x1xf32>
    %cst_43 = arith.constant 3.200000e+01 : f32
    %99 = vector.broadcast %cst_43 : f32 to vector<8x1xf32>
    %100 = arith.divf %98, %99 : vector<8x1xf32>
    %101 = vector.broadcast %100 : vector<8x1xf32> to vector<8x32xf32>
    %102 = arith.subf %96, %101 : vector<8x32xf32>
    %103 = arith.mulf %102, %102 : vector<8x32xf32>
    %cst_44 = arith.constant dense<0.000000e+00> : vector<8xf32>
    %104 = vector.multi_reduction <add>, %103, %cst_44 [1] : vector<8x32xf32> to vector<8xf32>
    %105 = vector.shape_cast %104 : vector<8xf32> to vector<8x1xf32>
    %cst_45 = arith.constant 3.200000e+01 : f32
    %106 = vector.broadcast %cst_45 : f32 to vector<8x1xf32>
    %107 = arith.divf %105, %106 : vector<8x1xf32>
    %108 = vector.broadcast %100 : vector<8x1xf32> to vector<8x32xf32>
    %109 = arith.subf %96, %108 : vector<8x32xf32>
    %cst_46 = arith.constant 9.99999974E-6 : f32
    %110 = vector.broadcast %cst_46 : f32 to vector<8x1xf32>
    %111 = arith.addf %107, %110 : vector<8x1xf32>
    %112 = math.rsqrt %111 : vector<8x1xf32>
    %113 = vector.broadcast %112 : vector<8x1xf32> to vector<8x32xf32>
    %114 = arith.mulf %109, %113 : vector<8x32xf32>
    %c0_47 = arith.constant 0 : index
    %c0_48 = arith.constant 0 : index
    %115 = vector.load %arg9[%c0_47, %c0_48] : memref<1x32xf32, #tpu.memory_space<vmem>>, vector<1x32xf32>
    %116 = vector.broadcast %115 : vector<1x32xf32> to vector<8x32xf32>
    %117 = arith.mulf %114, %116 : vector<8x32xf32>
    %c0_49 = arith.constant 0 : index
    %c0_50 = arith.constant 0 : index
    %118 = vector.load %arg10[%c0_49, %c0_50] : memref<1x32xf32, #tpu.memory_space<vmem>>, vector<1x32xf32>
    %119 = vector.broadcast %118 : vector<1x32xf32> to vector<8x32xf32>
    %120 = arith.addf %117, %119 : vector<8x32xf32>
    %c0_51 = arith.constant 0 : index
    %c0_52 = arith.constant 0 : index
    %c0_53 = arith.constant 0 : index
    %121 = vector.load %arg12[%c0_51, %c0_52, %c0_53] : memref<1x8x32xf32, #tpu.memory_space<vmem>>, vector<1x8x32xf32>
    %122 = vector.shape_cast %121 : vector<1x8x32xf32> to vector<8x32xf32>
    %123 = vector.shape_cast %120 : vector<8x32xf32> to vector<1x8x32xf32>
    tpu.vector_store %arg12[%c0_51, %c0_52, %c0_53], %123 {strides = array<i32>} : memref<1x8x32xf32, #tpu.memory_space<vmem>>, vector<1x8x32xf32>,
    return
  }
  func.func @transform_0(%arg0: i32) -> (i32, i32, i32) {
    %c0_i32 = arith.constant 0 : i32
    %c0_i32_0 = arith.constant 0 : i32
    %c0_i32_1 = arith.constant 0 : i32
    return %arg0, %c0_i32, %c0_i32_0 : i32, i32, i32
  }
  func.func @transform_1(%arg0: i32) -> (i32, i32, i32) {
    %c0_i32 = arith.constant 0 : i32
    %c0_i32_0 = arith.constant 0 : i32
    %c0_i32_1 = arith.constant 0 : i32
    return %arg0, %c0_i32, %c0_i32_0 : i32, i32, i32
  }
  func.func @transform_2(%arg0: i32) -> (i32, i32) {
    %c0_i32 = arith.constant 0 : i32
    %c0_i32_0 = arith.constant 0 : i32
    %c0_i32_1 = arith.constant 0 : i32
    return %c0_i32, %c0_i32_0 : i32, i32
  }
  func.func @transform_3(%arg0: i32) -> (i32, i32) {
    %c0_i32 = arith.constant 0 : i32
    %c0_i32_0 = arith.constant 0 : i32
    %c0_i32_1 = arith.constant 0 : i32
    return %c0_i32, %c0_i32_0 : i32, i32
  }
  func.func @transform_4(%arg0: i32) -> (i32, i32) {
    %c0_i32 = arith.constant 0 : i32
    %c0_i32_0 = arith.constant 0 : i32
    %c0_i32_1 = arith.constant 0 : i32
    return %c0_i32, %c0_i32_0 : i32, i32
  }
  func.func @transform_5(%arg0: i32) -> (i32, i32) {
    %c0_i32 = arith.constant 0 : i32
    %c0_i32_0 = arith.constant 0 : i32
    %c0_i32_1 = arith.constant 0 : i32
    return %c0_i32, %c0_i32_0 : i32, i32
  }
  func.func @transform_6(%arg0: i32) -> (i32, i32) {
    %c0_i32 = arith.constant 0 : i32
    %c0_i32_0 = arith.constant 0 : i32
    %c0_i32_1 = arith.constant 0 : i32
    return %c0_i32, %c0_i32_0 : i32, i32
  }
  func.func @transform_7(%arg0: i32) -> (i32, i32) {
    %c0_i32 = arith.constant 0 : i32
    %c0_i32_0 = arith.constant 0 : i32
    %c0_i32_1 = arith.constant 0 : i32
    return %c0_i32, %c0_i32_0 : i32, i32
  }
  func.func @transform_8(%arg0: i32) -> (i32, i32) {
    %c0_i32 = arith.constant 0 : i32
    %c0_i32_0 = arith.constant 0 : i32
    %c0_i32_1 = arith.constant 0 : i32
    return %c0_i32, %c0_i32_0 : i32, i32
  }
  func.func @transform_9(%arg0: i32) -> (i32, i32) {
    %c0_i32 = arith.constant 0 : i32
    %c0_i32_0 = arith.constant 0 : i32
    %c0_i32_1 = arith.constant 0 : i32
    return %c0_i32, %c0_i32_0 : i32, i32
  }
  func.func @transform_10(%arg0: i32) -> (i32, i32, i32) {
    %c0_i32 = arith.constant 0 : i32
    %c0_i32_0 = arith.constant 0 : i32
    %c0_i32_1 = arith.constant 0 : i32
    return %arg0, %c0_i32, %c0_i32_0 : i32, i32, i32
  }
  func.func @transform_11(%arg0: i32) -> (i32, i32, i32) {
    %c0_i32 = arith.constant 0 : i32
    %c0_i32_0 = arith.constant 0 : i32
    %c0_i32_1 = arith.constant 0 : i32
    return %arg0, %c0_i32, %c0_i32_0 : i32, i32, i32
  }
}

module attributes {stable_mosaic.version = 11 : i64} {
  func.func @_fused_mha_ln_kernel(%arg0: i32, %arg1: memref<1x8x32xf32, #tpu.memory_space<vmem>>, %arg2: memref<1x8x32xf32, #tpu.memory_space<vmem>>, %arg3: memref<32x32xf32, #tpu.memory_space<vmem>>, %arg4: memref<1x32xf32, #tpu.memory_space<vmem>>, %arg5: memref<32x64xf32, #tpu.memory_space<vmem>>, %arg6: memref<1x64xf32, #tpu.memory_space<vmem>>, %arg7: memref<32x32xf32, #tpu.memory_space<vmem>>, %arg8: memref<1x32xf32, #tpu.memory_space<vmem>>, %arg9: memref<1x32xf32, #tpu.memory_space<vmem>>, %arg10: memref<1x32xf32, #tpu.memory_space<vmem>>, %arg11: memref<1x8x32xf32, #tpu.memory_space<vmem>>) attributes {dimension_semantics = [#tpu.dimension_semantics<parallel>], iteration_bounds = array<i64: 2>, scalar_prefetch = 0 : i64, scratch_operands = 0 : i64, tpu.core_type = #tpu.core_type<tc>, window_params = [{transform_indices = @transform_0, window_bounds = array<i64: 1, 8, 32>}, {transform_indices = @transform_1, window_bounds = array<i64: 1, 8, 32>}, {pipeline_mode = #tpu.pipeline_mode<synchronous>, transform_indices = @transform_2, window_bounds = array<i64: 32, 32>}, {pipeline_mode = #tpu.pipeline_mode<synchronous>, transform_indices = @transform_3, window_bounds = array<i64: 1, 32>}, {pipeline_mode = #tpu.pipeline_mode<synchronous>, transform_indices = @transform_4, window_bounds = array<i64: 32, 64>}, {pipeline_mode = #tpu.pipeline_mode<synchronous>, transform_indices = @transform_5, window_bounds = array<i64: 1, 64>}, {pipeline_mode = #tpu.pipeline_mode<synchronous>, transform_indices = @transform_6, window_bounds = array<i64: 32, 32>}, {pipeline_mode = #tpu.pipeline_mode<synchronous>, transform_indices = @transform_7, window_bounds = array<i64: 1, 32>}, {pipeline_mode = #tpu.pipeline_mode<synchronous>, transform_indices = @transform_8, window_bounds = array<i64: 1, 32>}, {pipeline_mode = #tpu.pipeline_mode<synchronous>, transform_indices = @transform_9, window_bounds = array<i64: 1, 32>}, {transform_indices = @transform_10, window_bounds = array<i64: 1, 8, 32>}]} {
    %c0 = arith.constant 0 : index
    %c0_0 = arith.constant 0 : index
    %c0_1 = arith.constant 0 : index
    %0 = vector.load %arg1[%c0, %c0_0, %c0_1] : memref<1x8x32xf32, #tpu.memory_space<vmem>>, vector<1x8x32xf32>
    %1 = vector.shape_cast %0 : vector<1x8x32xf32> to vector<8x32xf32>
    %c0_2 = arith.constant 0 : index
    %c0_3 = arith.constant 0 : index
    %c0_4 = arith.constant 0 : index
    %2 = vector.load %arg2[%c0_2, %c0_3, %c0_4] : memref<1x8x32xf32, #tpu.memory_space<vmem>>, vector<1x8x32xf32>
    %3 = vector.shape_cast %2 : vector<1x8x32xf32> to vector<8x32xf32>
    %c0_5 = arith.constant 0 : index
    %c0_6 = arith.constant 0 : index
    %4 = vector.load %arg3[%c0_5, %c0_6] : memref<32x32xf32, #tpu.memory_space<vmem>>, vector<32x32xf32>
    %cst = arith.constant dense<0.000000e+00> : vector<8x32xf32>
    %5 = tpu.matmul %1, %4, %cst {dimension_numbers = #tpu.dot_dimension_numbers<[1], [0], [0], [1], [0, 0, 1, 1], [], []>} : vector<8x32xf32>, vector<32x32xf32>, vector<8x32xf32> -> vector<8x32xf32>
    %c0_7 = arith.constant 0 : index
    %c0_8 = arith.constant 0 : index
    %6 = vector.load %arg4[%c0_7, %c0_8] : memref<1x32xf32, #tpu.memory_space<vmem>>, vector<1x32xf32>
    %7 = vector.broadcast %6 : vector<1x32xf32> to vector<8x32xf32>
    %8 = arith.addf %5, %7 : vector<8x32xf32>
    %c0_9 = arith.constant 0 : index
    %c0_10 = arith.constant 0 : index
    %9 = vector.load %arg5[%c0_9, %c0_10] : memref<32x64xf32, #tpu.memory_space<vmem>>, vector<32x64xf32>
    %cst_11 = arith.constant dense<0.000000e+00> : vector<8x64xf32>
    %10 = tpu.matmul %3, %9, %cst_11 {dimension_numbers = #tpu.dot_dimension_numbers<[1], [0], [0], [1], [0, 0, 1, 1], [], []>} : vector<8x32xf32>, vector<32x64xf32>, vector<8x64xf32> -> vector<8x64xf32>
    %c0_12 = arith.constant 0 : index
    %c0_13 = arith.constant 0 : index
    %11 = vector.load %arg6[%c0_12, %c0_13] : memref<1x64xf32, #tpu.memory_space<vmem>>, vector<1x64xf32>
    %12 = vector.broadcast %11 : vector<1x64xf32> to vector<8x64xf32>
    %13 = arith.addf %10, %12 : vector<8x64xf32>
    %14 = vector.extract_strided_slice %13 {offsets = [0, 0], sizes = [8, 32], strides = [1, 1]} : vector<8x64xf32> to vector<8x32xf32>
    %15 = vector.extract_strided_slice %13 {offsets = [0, 32], sizes = [8, 32], strides = [1, 1]} : vector<8x64xf32> to vector<8x32xf32>
    %16 = vector.extract_strided_slice %8 {offsets = [0, 0], sizes = [8, 8], strides = [1, 1]} : vector<8x32xf32> to vector<8x8xf32>
    %17 = vector.extract_strided_slice %14 {offsets = [0, 0], sizes = [8, 8], strides = [1, 1]} : vector<8x32xf32> to vector<8x8xf32>
    %18 = vector.extract_strided_slice %15 {offsets = [0, 0], sizes = [8, 8], strides = [1, 1]} : vector<8x32xf32> to vector<8x8xf32>
    %cst_14 = arith.constant dense<0.000000e+00> : vector<8x8xf32>
    %19 = tpu.matmul %16, %17, %cst_14 {dimension_numbers = #tpu.dot_dimension_numbers<[1], [1], [0], [0], [0, 0, 1, 0], [], []>} : vector<8x8xf32>, vector<8x8xf32>, vector<8x8xf32> -> vector<8x8xf32>
    %cst_15 = arith.constant 0.353553385 : f32
    %20 = vector.broadcast %cst_15 : f32 to vector<8x8xf32>
    %21 = arith.mulf %19, %20 : vector<8x8xf32>
    %cst_16 = arith.constant dense<0xFF800000> : vector<8xf32>
    %22 = vector.multi_reduction <maximumf>, %21, %cst_16 [1] : vector<8x8xf32> to vector<8xf32>
    %23 = vector.shape_cast %22 : vector<8xf32> to vector<8x1xf32>
    %24 = vector.broadcast %23 : vector<8x1xf32> to vector<8x8xf32>
    %25 = arith.subf %21, %24 : vector<8x8xf32>
    %26 = math.exp %25 : vector<8x8xf32>
    %cst_17 = arith.constant dense<0.000000e+00> : vector<8xf32>
    %27 = vector.multi_reduction <add>, %26, %cst_17 [1] : vector<8x8xf32> to vector<8xf32>
    %28 = vector.shape_cast %27 : vector<8xf32> to vector<8x1xf32>
    %29 = tpu.reciprocal %28 {approx = true} : vector<8x1xf32> -> vector<8x1xf32>
    %30 = vector.broadcast %29 : vector<8x1xf32> to vector<8x8xf32>
    %31 = arith.mulf %26, %30 : vector<8x8xf32>
    %cst_18 = arith.constant dense<0.000000e+00> : vector<8x8xf32>
    %32 = tpu.matmul %31, %18, %cst_18 {dimension_numbers = #tpu.dot_dimension_numbers<[1], [0], [0], [1], [0, 0, 1, 1], [], []>} : vector<8x8xf32>, vector<8x8xf32>, vector<8x8xf32> -> vector<8x8xf32>
    %33 = vector.extract_strided_slice %8 {offsets = [0, 8], sizes = [8, 8], strides = [1, 1]} : vector<8x32xf32> to vector<8x8xf32>
    %34 = vector.extract_strided_slice %14 {offsets = [0, 8], sizes = [8, 8], strides = [1, 1]} : vector<8x32xf32> to vector<8x8xf32>
    %35 = vector.extract_strided_slice %15 {offsets = [0, 8], sizes = [8, 8], strides = [1, 1]} : vector<8x32xf32> to vector<8x8xf32>
    %cst_19 = arith.constant dense<0.000000e+00> : vector<8x8xf32>
    %36 = tpu.matmul %33, %34, %cst_19 {dimension_numbers = #tpu.dot_dimension_numbers<[1], [1], [0], [0], [0, 0, 1, 0], [], []>} : vector<8x8xf32>, vector<8x8xf32>, vector<8x8xf32> -> vector<8x8xf32>
    %cst_20 = arith.constant 0.353553385 : f32
    %37 = vector.broadcast %cst_20 : f32 to vector<8x8xf32>
    %38 = arith.mulf %36, %37 : vector<8x8xf32>
    %cst_21 = arith.constant dense<0xFF800000> : vector<8xf32>
    %39 = vector.multi_reduction <maximumf>, %38, %cst_21 [1] : vector<8x8xf32> to vector<8xf32>
    %40 = vector.shape_cast %39 : vector<8xf32> to vector<8x1xf32>
    %41 = vector.broadcast %40 : vector<8x1xf32> to vector<8x8xf32>
    %42 = arith.subf %38, %41 : vector<8x8xf32>
    %43 = math.exp %42 : vector<8x8xf32>
    %cst_22 = arith.constant dense<0.000000e+00> : vector<8xf32>
    %44 = vector.multi_reduction <add>, %43, %cst_22 [1] : vector<8x8xf32> to vector<8xf32>
    %45 = vector.shape_cast %44 : vector<8xf32> to vector<8x1xf32>
    %46 = tpu.reciprocal %45 {approx = true} : vector<8x1xf32> -> vector<8x1xf32>
    %47 = vector.broadcast %46 : vector<8x1xf32> to vector<8x8xf32>
    %48 = arith.mulf %43, %47 : vector<8x8xf32>
    %cst_23 = arith.constant dense<0.000000e+00> : vector<8x8xf32>
    %49 = tpu.matmul %48, %35, %cst_23 {dimension_numbers = #tpu.dot_dimension_numbers<[1], [0], [0], [1], [0, 0, 1, 1], [], []>} : vector<8x8xf32>, vector<8x8xf32>, vector<8x8xf32> -> vector<8x8xf32>
    %50 = vector.extract_strided_slice %8 {offsets = [0, 16], sizes = [8, 8], strides = [1, 1]} : vector<8x32xf32> to vector<8x8xf32>
    %51 = vector.extract_strided_slice %14 {offsets = [0, 16], sizes = [8, 8], strides = [1, 1]} : vector<8x32xf32> to vector<8x8xf32>
    %52 = vector.extract_strided_slice %15 {offsets = [0, 16], sizes = [8, 8], strides = [1, 1]} : vector<8x32xf32> to vector<8x8xf32>
    %cst_24 = arith.constant dense<0.000000e+00> : vector<8x8xf32>
    %53 = tpu.matmul %50, %51, %cst_24 {dimension_numbers = #tpu.dot_dimension_numbers<[1], [1], [0], [0], [0, 0, 1, 0], [], []>} : vector<8x8xf32>, vector<8x8xf32>, vector<8x8xf32> -> vector<8x8xf32>
    %cst_25 = arith.constant 0.353553385 : f32
    %54 = vector.broadcast %cst_25 : f32 to vector<8x8xf32>
    %55 = arith.mulf %53, %54 : vector<8x8xf32>
    %cst_26 = arith.constant dense<0xFF800000> : vector<8xf32>
    %56 = vector.multi_reduction <maximumf>, %55, %cst_26 [1] : vector<8x8xf32> to vector<8xf32>
    %57 = vector.shape_cast %56 : vector<8xf32> to vector<8x1xf32>
    %58 = vector.broadcast %57 : vector<8x1xf32> to vector<8x8xf32>
    %59 = arith.subf %55, %58 : vector<8x8xf32>
    %60 = math.exp %59 : vector<8x8xf32>
    %cst_27 = arith.constant dense<0.000000e+00> : vector<8xf32>
    %61 = vector.multi_reduction <add>, %60, %cst_27 [1] : vector<8x8xf32> to vector<8xf32>
    %62 = vector.shape_cast %61 : vector<8xf32> to vector<8x1xf32>
    %63 = tpu.reciprocal %62 {approx = true} : vector<8x1xf32> -> vector<8x1xf32>
    %64 = vector.broadcast %63 : vector<8x1xf32> to vector<8x8xf32>
    %65 = arith.mulf %60, %64 : vector<8x8xf32>
    %cst_28 = arith.constant dense<0.000000e+00> : vector<8x8xf32>
    %66 = tpu.matmul %65, %52, %cst_28 {dimension_numbers = #tpu.dot_dimension_numbers<[1], [0], [0], [1], [0, 0, 1, 1], [], []>} : vector<8x8xf32>, vector<8x8xf32>, vector<8x8xf32> -> vector<8x8xf32>
    %67 = vector.extract_strided_slice %8 {offsets = [0, 24], sizes = [8, 8], strides = [1, 1]} : vector<8x32xf32> to vector<8x8xf32>
    %68 = vector.extract_strided_slice %14 {offsets = [0, 24], sizes = [8, 8], strides = [1, 1]} : vector<8x32xf32> to vector<8x8xf32>
    %69 = vector.extract_strided_slice %15 {offsets = [0, 24], sizes = [8, 8], strides = [1, 1]} : vector<8x32xf32> to vector<8x8xf32>
    %cst_29 = arith.constant dense<0.000000e+00> : vector<8x8xf32>
    %70 = tpu.matmul %67, %68, %cst_29 {dimension_numbers = #tpu.dot_dimension_numbers<[1], [1], [0], [0], [0, 0, 1, 0], [], []>} : vector<8x8xf32>, vector<8x8xf32>, vector<8x8xf32> -> vector<8x8xf32>
    %cst_30 = arith.constant 0.353553385 : f32
    %71 = vector.broadcast %cst_30 : f32 to vector<8x8xf32>
    %72 = arith.mulf %70, %71 : vector<8x8xf32>
    %cst_31 = arith.constant dense<0xFF800000> : vector<8xf32>
    %73 = vector.multi_reduction <maximumf>, %72, %cst_31 [1] : vector<8x8xf32> to vector<8xf32>
    %74 = vector.shape_cast %73 : vector<8xf32> to vector<8x1xf32>
    %75 = vector.broadcast %74 : vector<8x1xf32> to vector<8x8xf32>
    %76 = arith.subf %72, %75 : vector<8x8xf32>
    %77 = math.exp %76 : vector<8x8xf32>
    %cst_32 = arith.constant dense<0.000000e+00> : vector<8xf32>
    %78 = vector.multi_reduction <add>, %77, %cst_32 [1] : vector<8x8xf32> to vector<8xf32>
    %79 = vector.shape_cast %78 : vector<8xf32> to vector<8x1xf32>
    %80 = tpu.reciprocal %79 {approx = true} : vector<8x1xf32> -> vector<8x1xf32>
    %81 = vector.broadcast %80 : vector<8x1xf32> to vector<8x8xf32>
    %82 = arith.mulf %77, %81 : vector<8x8xf32>
    %cst_33 = arith.constant dense<0.000000e+00> : vector<8x8xf32>
    %83 = tpu.matmul %82, %69, %cst_33 {dimension_numbers = #tpu.dot_dimension_numbers<[1], [0], [0], [1], [0, 0, 1, 1], [], []>} : vector<8x8xf32>, vector<8x8xf32>, vector<8x8xf32> -> vector<8x8xf32>
    %84 = tpu.concatenate %32, %49, %66, %83 in 1 : vector<8x8xf32>, vector<8x8xf32>, vector<8x8xf32>, vector<8x8xf32> -> vector<8x32xf32>
    %c0_34 = arith.constant 0 : index
    %c0_35 = arith.constant 0 : index
    %85 = vector.load %arg7[%c0_34, %c0_35] : memref<32x32xf32, #tpu.memory_space<vmem>>, vector<32x32xf32>
    %cst_36 = arith.constant dense<0.000000e+00> : vector<8x32xf32>
    %86 = tpu.matmul %84, %85, %cst_36 {dimension_numbers = #tpu.dot_dimension_numbers<[1], [0], [0], [1], [0, 0, 1, 1], [], []>} : vector<8x32xf32>, vector<32x32xf32>, vector<8x32xf32> -> vector<8x32xf32>
    %c0_37 = arith.constant 0 : index
    %c0_38 = arith.constant 0 : index
    %87 = vector.load %arg8[%c0_37, %c0_38] : memref<1x32xf32, #tpu.memory_space<vmem>>, vector<1x32xf32>
    %88 = vector.broadcast %87 : vector<1x32xf32> to vector<8x32xf32>
    %89 = arith.addf %86, %88 : vector<8x32xf32>
    %90 = arith.addf %1, %89 : vector<8x32xf32>
    %cst_39 = arith.constant dense<0.000000e+00> : vector<8xf32>
    %91 = vector.multi_reduction <add>, %90, %cst_39 [1] : vector<8x32xf32> to vector<8xf32>
    %92 = vector.shape_cast %91 : vector<8xf32> to vector<8x1xf32>
    %cst_40 = arith.constant 3.200000e+01 : f32
    %93 = vector.broadcast %cst_40 : f32 to vector<8x1xf32>
    %94 = arith.divf %92, %93 : vector<8x1xf32>
    %95 = vector.broadcast %94 : vector<8x1xf32> to vector<8x32xf32>
    %96 = arith.subf %90, %95 : vector<8x32xf32>
    %97 = arith.mulf %96, %96 : vector<8x32xf32>
    %cst_41 = arith.constant dense<0.000000e+00> : vector<8xf32>
    %98 = vector.multi_reduction <add>, %97, %cst_41 [1] : vector<8x32xf32> to vector<8xf32>
    %99 = vector.shape_cast %98 : vector<8xf32> to vector<8x1xf32>
    %cst_42 = arith.constant 3.200000e+01 : f32
    %100 = vector.broadcast %cst_42 : f32 to vector<8x1xf32>
    %101 = arith.divf %99, %100 : vector<8x1xf32>
    %102 = vector.broadcast %94 : vector<8x1xf32> to vector<8x32xf32>
    %103 = arith.subf %90, %102 : vector<8x32xf32>
    %cst_43 = arith.constant 9.99999974E-6 : f32
    %104 = vector.broadcast %cst_43 : f32 to vector<8x1xf32>
    %105 = arith.addf %101, %104 : vector<8x1xf32>
    %106 = math.rsqrt %105 : vector<8x1xf32>
    %107 = vector.broadcast %106 : vector<8x1xf32> to vector<8x32xf32>
    %108 = arith.mulf %103, %107 : vector<8x32xf32>
    %c0_44 = arith.constant 0 : index
    %c0_45 = arith.constant 0 : index
    %109 = vector.load %arg9[%c0_44, %c0_45] : memref<1x32xf32, #tpu.memory_space<vmem>>, vector<1x32xf32>
    %110 = vector.broadcast %109 : vector<1x32xf32> to vector<8x32xf32>
    %111 = arith.mulf %108, %110 : vector<8x32xf32>
    %c0_46 = arith.constant 0 : index
    %c0_47 = arith.constant 0 : index
    %112 = vector.load %arg10[%c0_46, %c0_47] : memref<1x32xf32, #tpu.memory_space<vmem>>, vector<1x32xf32>
    %113 = vector.broadcast %112 : vector<1x32xf32> to vector<8x32xf32>
    %114 = arith.addf %111, %113 : vector<8x32xf32>
    %c0_48 = arith.constant 0 : index
    %c0_49 = arith.constant 0 : index
    %c0_50 = arith.constant 0 : index
    %115 = vector.load %arg11[%c0_48, %c0_49, %c0_50] : memref<1x8x32xf32, #tpu.memory_space<vmem>>, vector<1x8x32xf32>
    %116 = vector.shape_cast %115 : vector<1x8x32xf32> to vector<8x32xf32>
    %117 = vector.shape_cast %114 : vector<8x32xf32> to vector<1x8x32xf32>
    tpu.vector_store %arg11[%c0_48, %c0_49, %c0_50], %117 {strides = array<i32>} : memref<1x8x32xf32, #tpu.memory_space<vmem>>, vector<1x8x32xf32>,
    return
  }
  func.func @transform_0(%arg0: i32) -> (i32, i32, i32) {
    %c0_i32 = arith.constant 0 : i32
    %c0_i32_0 = arith.constant 0 : i32
    %c0_i32_1 = arith.constant 0 : i32
    return %arg0, %c0_i32, %c0_i32_0 : i32, i32, i32
  }
  func.func @transform_1(%arg0: i32) -> (i32, i32, i32) {
    %c0_i32 = arith.constant 0 : i32
    %c0_i32_0 = arith.constant 0 : i32
    %c0_i32_1 = arith.constant 0 : i32
    return %arg0, %c0_i32, %c0_i32_0 : i32, i32, i32
  }
  func.func @transform_2(%arg0: i32) -> (i32, i32) {
    %c0_i32 = arith.constant 0 : i32
    %c0_i32_0 = arith.constant 0 : i32
    %c0_i32_1 = arith.constant 0 : i32
    return %c0_i32, %c0_i32_0 : i32, i32
  }
  func.func @transform_3(%arg0: i32) -> (i32, i32) {
    %c0_i32 = arith.constant 0 : i32
    %c0_i32_0 = arith.constant 0 : i32
    %c0_i32_1 = arith.constant 0 : i32
    return %c0_i32, %c0_i32_0 : i32, i32
  }
  func.func @transform_4(%arg0: i32) -> (i32, i32) {
    %c0_i32 = arith.constant 0 : i32
    %c0_i32_0 = arith.constant 0 : i32
    %c0_i32_1 = arith.constant 0 : i32
    return %c0_i32, %c0_i32_0 : i32, i32
  }
  func.func @transform_5(%arg0: i32) -> (i32, i32) {
    %c0_i32 = arith.constant 0 : i32
    %c0_i32_0 = arith.constant 0 : i32
    %c0_i32_1 = arith.constant 0 : i32
    return %c0_i32, %c0_i32_0 : i32, i32
  }
  func.func @transform_6(%arg0: i32) -> (i32, i32) {
    %c0_i32 = arith.constant 0 : i32
    %c0_i32_0 = arith.constant 0 : i32
    %c0_i32_1 = arith.constant 0 : i32
    return %c0_i32, %c0_i32_0 : i32, i32
  }
  func.func @transform_7(%arg0: i32) -> (i32, i32) {
    %c0_i32 = arith.constant 0 : i32
    %c0_i32_0 = arith.constant 0 : i32
    %c0_i32_1 = arith.constant 0 : i32
    return %c0_i32, %c0_i32_0 : i32, i32
  }
  func.func @transform_8(%arg0: i32) -> (i32, i32) {
    %c0_i32 = arith.constant 0 : i32
    %c0_i32_0 = arith.constant 0 : i32
    %c0_i32_1 = arith.constant 0 : i32
    return %c0_i32, %c0_i32_0 : i32, i32
  }
  func.func @transform_9(%arg0: i32) -> (i32, i32) {
    %c0_i32 = arith.constant 0 : i32
    %c0_i32_0 = arith.constant 0 : i32
    %c0_i32_1 = arith.constant 0 : i32
    return %c0_i32, %c0_i32_0 : i32, i32
  }
  func.func @transform_10(%arg0: i32) -> (i32, i32, i32) {
    %c0_i32 = arith.constant 0 : i32
    %c0_i32_0 = arith.constant 0 : i32
    %c0_i32_1 = arith.constant 0 : i32
    return %arg0, %c0_i32, %c0_i32_0 : i32, i32, i32
  }
}

module attributes {stable_mosaic.version = 11 : i64} {
  func.func @_linear_kernel(%arg0: i32, %arg1: memref<16x4xf32, #tpu.memory_space<vmem>>, %arg2: memref<4x32xf32, #tpu.memory_space<vmem>>, %arg3: memref<1x32xf32, #tpu.memory_space<vmem>>, %arg4: memref<16x32xf32, #tpu.memory_space<vmem>>) attributes {dimension_semantics = [#tpu.dimension_semantics<parallel>], iteration_bounds = array<i64: 1>, scalar_prefetch = 0 : i64, scratch_operands = 0 : i64, tpu.core_type = #tpu.core_type<tc>, window_params = [{transform_indices = @transform_0, window_bounds = array<i64: 16, 4>}, {pipeline_mode = #tpu.pipeline_mode<synchronous>, transform_indices = @transform_1, window_bounds = array<i64: 4, 32>}, {pipeline_mode = #tpu.pipeline_mode<synchronous>, transform_indices = @transform_2, window_bounds = array<i64: 1, 32>}, {transform_indices = @transform_3, window_bounds = array<i64: 16, 32>}]} {
    %c0 = arith.constant 0 : index
    %c0_0 = arith.constant 0 : index
    %0 = vector.load %arg1[%c0, %c0_0] : memref<16x4xf32, #tpu.memory_space<vmem>>, vector<16x4xf32>
    %c0_1 = arith.constant 0 : index
    %c0_2 = arith.constant 0 : index
    %1 = vector.load %arg2[%c0_1, %c0_2] : memref<4x32xf32, #tpu.memory_space<vmem>>, vector<4x32xf32>
    %cst = arith.constant dense<0.000000e+00> : vector<16x32xf32>
    %2 = tpu.matmul %0, %1, %cst {dimension_numbers = #tpu.dot_dimension_numbers<[1], [0], [0], [1], [0, 0, 1, 1], [], []>} : vector<16x4xf32>, vector<4x32xf32>, vector<16x32xf32> -> vector<16x32xf32>
    %c0_3 = arith.constant 0 : index
    %c0_4 = arith.constant 0 : index
    %3 = vector.load %arg3[%c0_3, %c0_4] : memref<1x32xf32, #tpu.memory_space<vmem>>, vector<1x32xf32>
    %4 = vector.broadcast %3 : vector<1x32xf32> to vector<16x32xf32>
    %5 = arith.addf %2, %4 : vector<16x32xf32>
    %c0_5 = arith.constant 0 : index
    %c0_6 = arith.constant 0 : index
    %6 = vector.load %arg4[%c0_5, %c0_6] : memref<16x32xf32, #tpu.memory_space<vmem>>, vector<16x32xf32>
    tpu.vector_store %arg4[%c0_5, %c0_6], %5 {strides = array<i32>} : memref<16x32xf32, #tpu.memory_space<vmem>>, vector<16x32xf32>,
    return
  }
  func.func @transform_0(%arg0: i32) -> (i32, i32) {
    %c0_i32 = arith.constant 0 : i32
    %c0_i32_0 = arith.constant 0 : i32
    return %arg0, %c0_i32 : i32, i32
  }
  func.func @transform_1(%arg0: i32) -> (i32, i32) {
    %c0_i32 = arith.constant 0 : i32
    %c0_i32_0 = arith.constant 0 : i32
    %c0_i32_1 = arith.constant 0 : i32
    return %c0_i32, %c0_i32_0 : i32, i32
  }
  func.func @transform_2(%arg0: i32) -> (i32, i32) {
    %c0_i32 = arith.constant 0 : i32
    %c0_i32_0 = arith.constant 0 : i32
    %c0_i32_1 = arith.constant 0 : i32
    return %c0_i32, %c0_i32_0 : i32, i32
  }
  func.func @transform_3(%arg0: i32) -> (i32, i32) {
    %c0_i32 = arith.constant 0 : i32
    %c0_i32_0 = arith.constant 0 : i32
    return %arg0, %c0_i32 : i32, i32
  }
}

module attributes {stable_mosaic.version = 11 : i64} {
  func.func @_ffn_ln_kernel(%arg0: i32, %arg1: memref<16x32xf32, #tpu.memory_space<vmem>>, %arg2: memref<32x128xf32, #tpu.memory_space<vmem>>, %arg3: memref<1x128xf32, #tpu.memory_space<vmem>>, %arg4: memref<128x32xf32, #tpu.memory_space<vmem>>, %arg5: memref<1x32xf32, #tpu.memory_space<vmem>>, %arg6: memref<1x32xf32, #tpu.memory_space<vmem>>, %arg7: memref<1x32xf32, #tpu.memory_space<vmem>>, %arg8: memref<16x32xf32, #tpu.memory_space<vmem>>) attributes {dimension_semantics = [#tpu.dimension_semantics<parallel>], iteration_bounds = array<i64: 1>, scalar_prefetch = 0 : i64, scratch_operands = 0 : i64, tpu.core_type = #tpu.core_type<tc>, window_params = [{transform_indices = @transform_0, window_bounds = array<i64: 16, 32>}, {pipeline_mode = #tpu.pipeline_mode<synchronous>, transform_indices = @transform_1, window_bounds = array<i64: 32, 128>}, {pipeline_mode = #tpu.pipeline_mode<synchronous>, transform_indices = @transform_2, window_bounds = array<i64: 1, 128>}, {pipeline_mode = #tpu.pipeline_mode<synchronous>, transform_indices = @transform_3, window_bounds = array<i64: 128, 32>}, {pipeline_mode = #tpu.pipeline_mode<synchronous>, transform_indices = @transform_4, window_bounds = array<i64: 1, 32>}, {pipeline_mode = #tpu.pipeline_mode<synchronous>, transform_indices = @transform_5, window_bounds = array<i64: 1, 32>}, {pipeline_mode = #tpu.pipeline_mode<synchronous>, transform_indices = @transform_6, window_bounds = array<i64: 1, 32>}, {transform_indices = @transform_7, window_bounds = array<i64: 16, 32>}]} {
    %c0 = arith.constant 0 : index
    %c0_0 = arith.constant 0 : index
    %0 = vector.load %arg1[%c0, %c0_0] : memref<16x32xf32, #tpu.memory_space<vmem>>, vector<16x32xf32>
    %c0_1 = arith.constant 0 : index
    %c0_2 = arith.constant 0 : index
    %1 = vector.load %arg2[%c0_1, %c0_2] : memref<32x128xf32, #tpu.memory_space<vmem>>, vector<32x128xf32>
    %cst = arith.constant dense<0.000000e+00> : vector<16x128xf32>
    %2 = tpu.matmul %0, %1, %cst {dimension_numbers = #tpu.dot_dimension_numbers<[1], [0], [0], [1], [0, 0, 1, 1], [], []>} : vector<16x32xf32>, vector<32x128xf32>, vector<16x128xf32> -> vector<16x128xf32>
    %c0_3 = arith.constant 0 : index
    %c0_4 = arith.constant 0 : index
    %3 = vector.load %arg3[%c0_3, %c0_4] : memref<1x128xf32, #tpu.memory_space<vmem>>, vector<1x128xf32>
    %4 = vector.broadcast %3 : vector<1x128xf32> to vector<16x128xf32>
    %5 = arith.addf %2, %4 : vector<16x128xf32>
    %cst_5 = arith.constant 0.000000e+00 : f32
    %6 = vector.broadcast %cst_5 : f32 to vector<16x128xf32>
    %7 = arith.maximumf %5, %6 : vector<16x128xf32>
    %c0_6 = arith.constant 0 : index
    %c0_7 = arith.constant 0 : index
    %8 = vector.load %arg4[%c0_6, %c0_7] : memref<128x32xf32, #tpu.memory_space<vmem>>, vector<128x32xf32>
    %cst_8 = arith.constant dense<0.000000e+00> : vector<16x32xf32>
    %9 = tpu.matmul %7, %8, %cst_8 {dimension_numbers = #tpu.dot_dimension_numbers<[1], [0], [0], [1], [0, 0, 1, 1], [], []>} : vector<16x128xf32>, vector<128x32xf32>, vector<16x32xf32> -> vector<16x32xf32>
    %c0_9 = arith.constant 0 : index
    %c0_10 = arith.constant 0 : index
    %10 = vector.load %arg5[%c0_9, %c0_10] : memref<1x32xf32, #tpu.memory_space<vmem>>, vector<1x32xf32>
    %11 = vector.broadcast %10 : vector<1x32xf32> to vector<16x32xf32>
    %12 = arith.addf %9, %11 : vector<16x32xf32>
    %13 = arith.addf %0, %12 : vector<16x32xf32>
    %cst_11 = arith.constant dense<0.000000e+00> : vector<16xf32>
    %14 = vector.multi_reduction <add>, %13, %cst_11 [1] : vector<16x32xf32> to vector<16xf32>
    %15 = vector.shape_cast %14 : vector<16xf32> to vector<16x1xf32>
    %cst_12 = arith.constant 3.200000e+01 : f32
    %16 = vector.broadcast %cst_12 : f32 to vector<16x1xf32>
    %17 = arith.divf %15, %16 : vector<16x1xf32>
    %18 = vector.broadcast %17 : vector<16x1xf32> to vector<16x32xf32>
    %19 = arith.subf %13, %18 : vector<16x32xf32>
    %20 = arith.mulf %19, %19 : vector<16x32xf32>
    %cst_13 = arith.constant dense<0.000000e+00> : vector<16xf32>
    %21 = vector.multi_reduction <add>, %20, %cst_13 [1] : vector<16x32xf32> to vector<16xf32>
    %22 = vector.shape_cast %21 : vector<16xf32> to vector<16x1xf32>
    %cst_14 = arith.constant 3.200000e+01 : f32
    %23 = vector.broadcast %cst_14 : f32 to vector<16x1xf32>
    %24 = arith.divf %22, %23 : vector<16x1xf32>
    %25 = vector.broadcast %17 : vector<16x1xf32> to vector<16x32xf32>
    %26 = arith.subf %13, %25 : vector<16x32xf32>
    %cst_15 = arith.constant 9.99999974E-6 : f32
    %27 = vector.broadcast %cst_15 : f32 to vector<16x1xf32>
    %28 = arith.addf %24, %27 : vector<16x1xf32>
    %29 = math.rsqrt %28 : vector<16x1xf32>
    %30 = vector.broadcast %29 : vector<16x1xf32> to vector<16x32xf32>
    %31 = arith.mulf %26, %30 : vector<16x32xf32>
    %c0_16 = arith.constant 0 : index
    %c0_17 = arith.constant 0 : index
    %32 = vector.load %arg6[%c0_16, %c0_17] : memref<1x32xf32, #tpu.memory_space<vmem>>, vector<1x32xf32>
    %33 = vector.broadcast %32 : vector<1x32xf32> to vector<16x32xf32>
    %34 = arith.mulf %31, %33 : vector<16x32xf32>
    %c0_18 = arith.constant 0 : index
    %c0_19 = arith.constant 0 : index
    %35 = vector.load %arg7[%c0_18, %c0_19] : memref<1x32xf32, #tpu.memory_space<vmem>>, vector<1x32xf32>
    %36 = vector.broadcast %35 : vector<1x32xf32> to vector<16x32xf32>
    %37 = arith.addf %34, %36 : vector<16x32xf32>
    %c0_20 = arith.constant 0 : index
    %c0_21 = arith.constant 0 : index
    %38 = vector.load %arg8[%c0_20, %c0_21] : memref<16x32xf32, #tpu.memory_space<vmem>>, vector<16x32xf32>
    tpu.vector_store %arg8[%c0_20, %c0_21], %37 {strides = array<i32>} : memref<16x32xf32, #tpu.memory_space<vmem>>, vector<16x32xf32>,
    return
  }
  func.func @transform_0(%arg0: i32) -> (i32, i32) {
    %c0_i32 = arith.constant 0 : i32
    %c0_i32_0 = arith.constant 0 : i32
    return %arg0, %c0_i32 : i32, i32
  }
  func.func @transform_1(%arg0: i32) -> (i32, i32) {
    %c0_i32 = arith.constant 0 : i32
    %c0_i32_0 = arith.constant 0 : i32
    %c0_i32_1 = arith.constant 0 : i32
    return %c0_i32, %c0_i32_0 : i32, i32
  }
  func.func @transform_2(%arg0: i32) -> (i32, i32) {
    %c0_i32 = arith.constant 0 : i32
    %c0_i32_0 = arith.constant 0 : i32
    %c0_i32_1 = arith.constant 0 : i32
    return %c0_i32, %c0_i32_0 : i32, i32
  }
  func.func @transform_3(%arg0: i32) -> (i32, i32) {
    %c0_i32 = arith.constant 0 : i32
    %c0_i32_0 = arith.constant 0 : i32
    %c0_i32_1 = arith.constant 0 : i32
    return %c0_i32, %c0_i32_0 : i32, i32
  }
  func.func @transform_4(%arg0: i32) -> (i32, i32) {
    %c0_i32 = arith.constant 0 : i32
    %c0_i32_0 = arith.constant 0 : i32
    %c0_i32_1 = arith.constant 0 : i32
    return %c0_i32, %c0_i32_0 : i32, i32
  }
  func.func @transform_5(%arg0: i32) -> (i32, i32) {
    %c0_i32 = arith.constant 0 : i32
    %c0_i32_0 = arith.constant 0 : i32
    %c0_i32_1 = arith.constant 0 : i32
    return %c0_i32, %c0_i32_0 : i32, i32
  }
  func.func @transform_6(%arg0: i32) -> (i32, i32) {
    %c0_i32 = arith.constant 0 : i32
    %c0_i32_0 = arith.constant 0 : i32
    %c0_i32_1 = arith.constant 0 : i32
    return %c0_i32, %c0_i32_0 : i32, i32
  }
  func.func @transform_7(%arg0: i32) -> (i32, i32) {
    %c0_i32 = arith.constant 0 : i32
    %c0_i32_0 = arith.constant 0 : i32
    return %arg0, %c0_i32 : i32, i32
  }
}

module attributes {stable_mosaic.version = 11 : i64} {
  func.func @_linear_kernel(%arg0: i32, %arg1: memref<16x32xf32, #tpu.memory_space<vmem>>, %arg2: memref<32x128xf32, #tpu.memory_space<vmem>>, %arg3: memref<1x128xf32, #tpu.memory_space<vmem>>, %arg4: memref<16x128xf32, #tpu.memory_space<vmem>>) attributes {dimension_semantics = [#tpu.dimension_semantics<parallel>], iteration_bounds = array<i64: 1>, scalar_prefetch = 0 : i64, scratch_operands = 0 : i64, tpu.core_type = #tpu.core_type<tc>, window_params = [{transform_indices = @transform_0, window_bounds = array<i64: 16, 32>}, {pipeline_mode = #tpu.pipeline_mode<synchronous>, transform_indices = @transform_1, window_bounds = array<i64: 32, 128>}, {pipeline_mode = #tpu.pipeline_mode<synchronous>, transform_indices = @transform_2, window_bounds = array<i64: 1, 128>}, {transform_indices = @transform_3, window_bounds = array<i64: 16, 128>}]} {
    %c0 = arith.constant 0 : index
    %c0_0 = arith.constant 0 : index
    %0 = vector.load %arg1[%c0, %c0_0] : memref<16x32xf32, #tpu.memory_space<vmem>>, vector<16x32xf32>
    %c0_1 = arith.constant 0 : index
    %c0_2 = arith.constant 0 : index
    %1 = vector.load %arg2[%c0_1, %c0_2] : memref<32x128xf32, #tpu.memory_space<vmem>>, vector<32x128xf32>
    %cst = arith.constant dense<0.000000e+00> : vector<16x128xf32>
    %2 = tpu.matmul %0, %1, %cst {dimension_numbers = #tpu.dot_dimension_numbers<[1], [0], [0], [1], [0, 0, 1, 1], [], []>} : vector<16x32xf32>, vector<32x128xf32>, vector<16x128xf32> -> vector<16x128xf32>
    %c0_3 = arith.constant 0 : index
    %c0_4 = arith.constant 0 : index
    %3 = vector.load %arg3[%c0_3, %c0_4] : memref<1x128xf32, #tpu.memory_space<vmem>>, vector<1x128xf32>
    %4 = vector.broadcast %3 : vector<1x128xf32> to vector<16x128xf32>
    %5 = arith.addf %2, %4 : vector<16x128xf32>
    %c0_5 = arith.constant 0 : index
    %c0_6 = arith.constant 0 : index
    %6 = vector.load %arg4[%c0_5, %c0_6] : memref<16x128xf32, #tpu.memory_space<vmem>>, vector<16x128xf32>
    tpu.vector_store %arg4[%c0_5, %c0_6], %5 {strides = array<i32>} : memref<16x128xf32, #tpu.memory_space<vmem>>, vector<16x128xf32>,
    return
  }
  func.func @transform_0(%arg0: i32) -> (i32, i32) {
    %c0_i32 = arith.constant 0 : i32
    %c0_i32_0 = arith.constant 0 : i32
    return %arg0, %c0_i32 : i32, i32
  }
  func.func @transform_1(%arg0: i32) -> (i32, i32) {
    %c0_i32 = arith.constant 0 : i32
    %c0_i32_0 = arith.constant 0 : i32
    %c0_i32_1 = arith.constant 0 : i32
    return %c0_i32, %c0_i32_0 : i32, i32
  }
  func.func @transform_2(%arg0: i32) -> (i32, i32) {
    %c0_i32 = arith.constant 0 : i32
    %c0_i32_0 = arith.constant 0 : i32
    %c0_i32_1 = arith.constant 0 : i32
    return %c0_i32, %c0_i32_0 : i32, i32
  }
  func.func @transform_3(%arg0: i32) -> (i32, i32) {
    %c0_i32 = arith.constant 0 : i32
    %c0_i32_0 = arith.constant 0 : i32
    return %arg0, %c0_i32 : i32, i32
  }
}

</mosaic_0001>

<llo_original>
// kernel: _lambda_.12
$region0: #{_lambda_.12}
  #allocation0 [shape = 'u32[]', space=smem, size = 0x4, offset = 0x4, fixed_abs, tag = 'smem constant byte address 0x4 - core index']
  #allocation1 [shape = 'u32[144,128]{1,0:T(1,128)}', space=vmem, size = 0x12000, scoped, tag = 'internal scratch']
  %s0 = inlined_call_operand.vmem [shape: f32[16,4], index: 0, kind: input, shape index: {}]
  %s1 = inlined_call_operand.vmem [shape: f32[4,32], index: 1, kind: input, shape index: {}]
  %s2 = inlined_call_operand.vmem [shape: f32[1,32], index: 2, kind: input, shape index: {}]
  %s3 = inlined_call_operand.vmem [shape: f32[16,32], index: 3, kind: output, shape index: {}]
  %s4 = sld [smem:[#allocation0]]
  $region22: #{_lambda_.12} parent=0
    _
  %s6 = ssub.s32 1, %s4
  %s7 = scalar_select 0, %s6, %s4
  // Predicated region
  $region2: #{_lambda_.12} parent=0 // pred_check
    _
  $region3: #{_lambda_.12} parent=0 // pred_check_branch
    %9 = sbr.rel (0) target = $region5
  $region4: #{_lambda_.12} parent=0 // pred_region
    _
  $region5: #{_lambda_.12} parent=0 // pred_fallthru
    _
  // Predicated region
  $region6: #{_lambda_.12} parent=0 // pred_check
    _
  $region7: #{_lambda_.12} parent=0 // pred_check_branch
    %11 = sbr.rel (0) target = $region9
  $region8: #{_lambda_.12} parent=0 // pred_region
    _
  $region9: #{_lambda_.12} parent=0 // pred_fallthru
    _
  // Predicated region
  $region10: #{_lambda_.12} parent=0 // pred_check
    _
  $region11: #{_lambda_.12} parent=0 // pred_check_branch
    %13 = sbr.rel (0) target = $region13
  $region12: #{_lambda_.12} parent=0 // pred_region
    _
  $region13: #{_lambda_.12} parent=0 // pred_fallthru
    _
  %v14 = vld [vmem:[%s0] sm:$0xff]
  %v15 = vld [vmem:[%s0 + $0x8] sm:$0xff]
  %v16 = vld [vmem:[%s1] sm:$0xf]
  %v17 = vld [vmem:[%s2] sm:$0x1]
  %v19 = vlaneseq
  %v20 = vshrl.u32 %v19, 7
  %v21 = vsub.s32 0, %v20
  %v22 = vrot.slane %v17, %v21
  %vm24 = vcmask 31744
  %v26 = vsel %vm24, %v14, 0
  %v29 = vsel %vm24, %v15, 0
  %vm31 = vcmask 1043456
  %v33 = vsel %vm31, %v16, 0
  %35 = vmatprep.subr.mxu0 0.0
  %36 = vmatpush1.msra.mxu0 %v33
  %37 = vmatprep.subr.mxu0 0.0
  %38 = vmatpush1.msra.mxu0 0.0
  %39 = vmatprep.subr.mxu0 0.0
  %40 = vmatpush1.msra.mxu0 0.0
  %41 = vmatprep.subr.mxu0 0.0
  %42 = vmatpush1.msra.mxu0 0.0
  %43 = vmatprep.subr.mxu0 0.0
  %44 = vmatpush1.msra.mxu0 0.0
  %45 = vmatprep.subr.mxu0 0.0
  %46 = vmatpush1.msra.mxu0 0.0
  %47 = vmatprep.subr.mxu0 0.0
  %48 = vmatpush1.msra.mxu0 0.0
  %49 = vmatprep.subr.mxu0 0.0
  %50 = vmatpush1.msra.mxu0 0.0
  %51 = vmatprep.subr.mxu0 0.0
  %52 = vmatpush1.msra.mxu0 0.0
  %53 = vmatprep.subr.mxu0 0.0
  %54 = vmatpush1.msra.mxu0 0.0
  %55 = vmatprep.subr.mxu0 0.0
  %56 = vmatpush1.msra.mxu0 0.0
  %57 = vmatprep.subr.mxu0 0.0
  %58 = vmatpush1.msra.mxu0 0.0
  %59 = vmatprep.subr.mxu0 0.0
  %60 = vmatpush1.msra.mxu0 0.0
  %61 = vmatprep.subr.mxu0 0.0
  %62 = vmatpush1.msra.mxu0 0.0
  %63 = vmatprep.subr.mxu0 0.0
  %64 = vmatpush1.msra.mxu0 0.0
  %65 = vmatprep.subr.mxu0 0.0
  %66 = vmatpush1.msra.mxu0 0.0
  %67 = vmatprep.subr.mxu0 0.0
  %68 = vmatpush1.msra.mxu0 0.0
  %69 = vmatprep.subr.mxu0 0.0
  %70 = vmatpush1.msra.mxu0 0.0
  %71 = vmatprep.subr.mxu0 0.0
  %72 = vmatpush1.msra.mxu0 0.0
  %73 = vmatprep.subr.mxu0 0.0
  %74 = vmatpush1.msra.mxu0 0.0
  %75 = vmatprep.subr.mxu0 0.0
  %76 = vmatpush1.msra.mxu0 0.0
  %77 = vmatprep.subr.mxu0 0.0
  %78 = vmatpush1.msra.mxu0 0.0
  %79 = vmatprep.subr.mxu0 0.0
  %80 = vmatpush1.msra.mxu0 0.0
  %81 = vmatprep.subr.mxu0 0.0
  %82 = vmatpush1.msra.mxu0 0.0
  %83 = vmatprep.subr.mxu0 0.0
  %84 = vmatpush1.msra.mxu0 0.0
  %85 = vmatprep.subr.mxu0 0.0
  %86 = vmatpush1.msra.mxu0 0.0
  %87 = vmatprep.subr.mxu0 0.0
  %88 = vmatpush1.msra.mxu0 0.0
  %89 = vmatprep.subr.mxu0 0.0
  %90 = vmatpush1.msra.mxu0 0.0
  %91 = vmatprep.subr.mxu0 0.0
  %92 = vmatpush1.msra.mxu0 0.0
  %93 = vmatprep.subr.mxu0 0.0
  %94 = vmatpush1.msra.mxu0 0.0
  %95 = vmatprep.subr.mxu0 0.0
  %96 = vmatpush1.msra.mxu0 0.0
  %97 = vmatprep.subr.mxu0 0.0
  %98 = vmatpush1.msra.mxu0 0.0
  %99 = vmatprep.mubr.f32.mxu0 0.0
  %100 = vmatmul.mubr.f32.gmra.mrb[0].mxu0 %v26
  %v101 = vpop.f32.mrb[0].mxu0
  %v102 = vadd.f32 %v22, %v101
  %v103 = vpop.f32.mrb[0].mxu0
  %104 = vmatprep.mubr.f32.mxu0 0.0
  %105 = vmatmul.mubr.f32.gmra.mrb[0].mxu0 %v29
  %v106 = vpop.f32.mrb[0].mxu0
  %v107 = vadd.f32 %v22, %v106
  %v108 = vpop.f32.mrb[0].mxu0
  %109 = vdwg.mxu0
  %vm110 = vcmask 261120
  %111 = vst.msk [vmem:[%s3] sm:$0xff] %vm110, %v102
  %112 = vst.msk [vmem:[%s3 + $0x8] sm:$0xff] %vm110, %v107
  // Predicated region
  $region14: #{_lambda_.12} parent=0 // pred_check
    _
  $region15: #{_lambda_.12} parent=0 // pred_check_branch
    %114 = sbr.rel (0) target = $region17
  $region16: #{_lambda_.12} parent=0 // pred_region
    _
  $region17: #{_lambda_.12} parent=0 // pred_fallthru
    _
  // Predicated region
  $region18: #{_lambda_.12} parent=0 // pred_check
    _
  $region19: #{_lambda_.12} parent=0 // pred_check_branch
    %116 = sbr.rel (0) target = $region21
  $region20: #{_lambda_.12} parent=0 // pred_region
    _
  $region21: #{_lambda_.12} parent=0 // pred_fallthru
    _

// kernel: _lambda_.17
$region0: #{_lambda_.17}
  #allocation0 [shape = 'u32[]', space=smem, size = 0x4, offset = 0x4, fixed_abs, tag = 'smem constant byte address 0x4 - core index']
  #allocation1 [shape = 'u32[144,128]{1,0:T(1,128)}', space=vmem, size = 0x12000, scoped, tag = 'internal scratch']
  %s0 = inlined_call_operand.vmem [shape: f32[2,8,32], index: 0, kind: input, shape index: {}, may-alias: {0,1}]
  %s1 = inlined_call_operand.vmem [shape: f32[2,8,32], index: 1, kind: input, shape index: {}, may-alias: {0,1}]
  %s2 = inlined_call_operand.vmem [shape: f32[32,32], index: 2, kind: input, shape index: {}]
  %s3 = inlined_call_operand.vmem [shape: f32[1,32], index: 3, kind: input, shape index: {}]
  %s4 = inlined_call_operand.vmem [shape: f32[32,64], index: 4, kind: input, shape index: {}]
  %s5 = inlined_call_operand.vmem [shape: f32[1,64], index: 5, kind: input, shape index: {}]
  %s6 = inlined_call_operand.vmem [shape: f32[32,32], index: 6, kind: input, shape index: {}]
  %s7 = inlined_call_operand.vmem [shape: f32[1,32], index: 7, kind: input, shape index: {}]
  %s8 = inlined_call_operand.vmem [shape: f32[1,32], index: 8, kind: input, shape index: {}]
  %s9 = inlined_call_operand.vmem [shape: f32[1,32], index: 9, kind: input, shape index: {}]
  %s10 = inlined_call_operand.vmem [shape: f32[2,8,8], index: 10, kind: input, shape index: {}]
  %s11 = inlined_call_operand.vmem [shape: f32[2,8,32], index: 11, kind: output, shape index: {}]
  %s12 = sld [smem:[#allocation0]]
  $region77: #{_lambda_.17} parent=0
    _
  %s14 = ssub.s32 1, %s12
  %s15 = scalar_select 0, %s14, %s12
  loop: start=0, step=1, limit=4
  $region2: #{_lambda_.17} parent=0 // loop_pre_header
    _
  $region3: #{_lambda_.17} parent=0 // loop_header
    %s17 = sphi 0, %s21
    %p18 = scmp.ge.s32.totalorder %s17, 4
    %s27 = sphi 0, %s29
    %s30 = sphi 0, %s27
    %s31 = sphi 0, %s30
    %s47 = sphi 0, %s31
    %s53 = sphi 0, %s55
    %s56 = sphi 0, %s53
    %s57 = sphi 0, %s56
    %s73 = sphi 0, %s57
    %s77 = sphi 0, %s77
    %s79 = sphi 0, %s77
    %s80 = sphi 0, %s79
    %s94 = sphi 0, %s80
    %s98 = sphi 0, %s98
    %s100 = sphi 0, %s98
    %s101 = sphi 0, %s100
    %s115 = sphi 0, %s101
    %s119 = sphi 0, %s119
    %s121 = sphi 0, %s119
    %s122 = sphi 0, %s121
    %s136 = sphi 0, %s122
    %s140 = sphi 0, %s140
    %s142 = sphi 0, %s140
    %s143 = sphi 0, %s142
    %s157 = sphi 0, %s143
    %s161 = sphi 0, %s161
    %s163 = sphi 0, %s161
    %s164 = sphi 0, %s163
    %s178 = sphi 0, %s164
    %s182 = sphi 0, %s182
    %s184 = sphi 0, %s182
    %s185 = sphi 0, %s184
    %s199 = sphi 0, %s185
    %s203 = sphi 0, %s203
    %s205 = sphi 0, %s203
    %s206 = sphi 0, %s205
    %s220 = sphi 0, %s206
    %s224 = sphi 0, %s224
    %s226 = sphi 0, %s224
    %s227 = sphi 0, %s226
    %s241 = sphi 0, %s227
    %s247 = sphi 0, %s249
    %s250 = sphi 0, %s247
    %s251 = sphi 0, %s250
    %s267 = sphi 0, %s251
    %s273 = sphi 0, %s275
    %s276 = sphi 0, %s273
    %s277 = sphi 0, %s276
    %s293 = sphi 0, %s277
  $region4: #{_lambda_.17} parent=0 // loop_header_branch
    %20 = sbr.rel (%p18) target = $region8
  $region5: #{_lambda_.17} parent=0 // loop_body
    %s22 = ssub.s32 %s17, 1
    %s23 = ssub.s32 %s17, 2
    %s24 = sadd.s32 %s17, 1
    %s25 = ssub.s32 %s17, %s24
    %p26 = scmp.eq.s32.totalorder %s25, 0
    %s28 = sadd.s32 %s27, 1
    %s29 = scalar_select %p26, %s27, %s28
    %p32 = pneg %p26
    %p33 = scmp.eq.s32.totalorder %s17, 1
    %p34 = por %p32, %p33
    %p35 = scmp.ne.s32.totalorder %s27, %s30
    %p36 = scmp.eq.s32.totalorder %s17, 0
    %p37 = por %p35, %p36
    %p38 = scmp.ne.s32.totalorder %s27, %s30
    %p39 = scmp.eq.s32.totalorder %s22, 1
    %p40 = por %p38, %p39
    %p41 = scmp.ne.s32.totalorder %s30, %s31
    %p42 = scmp.eq.s32.totalorder %s22, 0
    %p43 = por %p41, %p42
    %p44 = scmp.ne.s32.totalorder %s30, %s31
    %p45 = scmp.eq.s32.totalorder %s23, 1
    %p46 = por %p44, %p45
    %p48 = scmp.ne.s32.totalorder %s31, %s47
    %p49 = scmp.eq.s32.totalorder %s23, 0
    %p50 = por %p48, %p49
    %s51 = ssub.s32 %s17, %s24
    %p52 = scmp.eq.s32.totalorder %s51, 0
    %s54 = sadd.s32 %s53, 1
    %s55 = scalar_select %p52, %s53, %s54
    %p58 = pneg %p52
    %p59 = scmp.eq.s32.totalorder %s17, 1
    %p60 = por %p58, %p59
    %p61 = scmp.ne.s32.totalorder %s53, %s56
    %p62 = scmp.eq.s32.totalorder %s17, 0
    %p63 = por %p61, %p62
    %p64 = scmp.ne.s32.totalorder %s53, %s56
    %p65 = scmp.eq.s32.totalorder %s22, 1
    %p66 = por %p64, %p65
    %p67 = scmp.ne.s32.totalorder %s56, %s57
    %p68 = scmp.eq.s32.totalorder %s22, 0
    %p69 = por %p67, %p68
    %p70 = scmp.ne.s32.totalorder %s56, %s57
    %p71 = scmp.eq.s32.totalorder %s23, 1
    %p72 = por %p70, %p71
    %p74 = scmp.ne.s32.totalorder %s57, %s73
    %p75 = scmp.eq.s32.totalorder %s23, 0
    %p76 = por %p74, %p75
    %s78 = sadd.s32 %s77, 1
    %p81 = scmp.eq.s32.totalorder %s17, 1
    %p82 = scmp.ne.s32.totalorder %s77, %s79
    %p83 = scmp.eq.s32.totalorder %s17, 0
    %p84 = por %p82, %p83
    %p85 = scmp.ne.s32.totalorder %s77, %s79
    %p86 = scmp.eq.s32.totalorder %s22, 1
    %p87 = por %p85, %p86
    %p88 = scmp.ne.s32.totalorder %s79, %s80
    %p89 = scmp.eq.s32.totalorder %s22, 0
    %p90 = por %p88, %p89
    %p91 = scmp.ne.s32.totalorder %s79, %s80
    %p92 = scmp.eq.s32.totalorder %s23, 1
    %p93 = por %p91, %p92
    %p95 = scmp.ne.s32.totalorder %s80, %s94
    %p96 = scmp.eq.s32.totalorder %s23, 0
    %p97 = por %p95, %p96
    %s99 = sadd.s32 %s98, 1
    %p102 = scmp.eq.s32.totalorder %s17, 1
    %p103 = scmp.ne.s32.totalorder %s98, %s100
    %p104 = scmp.eq.s32.totalorder %s17, 0
    %p105 = por %p103, %p104
    %p106 = scmp.ne.s32.totalorder %s98, %s100
    %p107 = scmp.eq.s32.totalorder %s22, 1
    %p108 = por %p106, %p107
    %p109 = scmp.ne.s32.totalorder %s100, %s101
    %p110 = scmp.eq.s32.totalorder %s22, 0
    %p111 = por %p109, %p110
    %p112 = scmp.ne.s32.totalorder %s100, %s101
    %p113 = scmp.eq.s32.totalorder %s23, 1
    %p114 = por %p112, %p113
    %p116 = scmp.ne.s32.totalorder %s101, %s115
    %p117 = scmp.eq.s32.totalorder %s23, 0
    %p118 = por %p116, %p117
    %s120 = sadd.s32 %s119, 1
    %p123 = scmp.eq.s32.totalorder %s17, 1
    %p124 = scmp.ne.s32.totalorder %s119, %s121
    %p125 = scmp.eq.s32.totalorder %s17, 0
    %p126 = por %p124, %p125
    %p127 = scmp.ne.s32.totalorder %s119, %s121
    %p128 = scmp.eq.s32.totalorder %s22, 1
    %p129 = por %p127, %p128
    %p130 = scmp.ne.s32.totalorder %s121, %s122
    %p131 = scmp.eq.s32.totalorder %s22, 0
    %p132 = por %p130, %p131
    %p133 = scmp.ne.s32.totalorder %s121, %s122
    %p134 = scmp.eq.s32.totalorder %s23, 1
    %p135 = por %p133, %p134
    %p137 = scmp.ne.s32.totalorder %s122, %s136
    %p138 = scmp.eq.s32.totalorder %s23, 0
    %p139 = por %p137, %p138
    %s141 = sadd.s32 %s140, 1
    %p144 = scmp.eq.s32.totalorder %s17, 1
    %p145 = scmp.ne.s32.totalorder %s140, %s142
    %p146 = scmp.eq.s32.totalorder %s17, 0
    %p147 = por %p145, %p146
    %p148 = scmp.ne.s32.totalorder %s140, %s142
    %p149 = scmp.eq.s32.totalorder %s22, 1
    %p150 = por %p148, %p149
    %p151 = scmp.ne.s32.totalorder %s142, %s143
    %p152 = scmp.eq.s32.totalorder %s22, 0
    %p153 = por %p151, %p152
    %p154 = scmp.ne.s32.totalorder %s142, %s143
    %p155 = scmp.eq.s32.totalorder %s23, 1
    %p156 = por %p154, %p155
    %p158 = scmp.ne.s32.totalorder %s143, %s157
    %p159 = scmp.eq.s32.totalorder %s23, 0
    %p160 = por %p158, %p159
    %s162 = sadd.s32 %s161, 1
    %p165 = scmp.eq.s32.totalorder %s17, 1
    %p166 = scmp.ne.s32.totalorder %s161, %s163
    %p167 = scmp.eq.s32.totalorder %s17, 0
    %p168 = por %p166, %p167
    %p169 = scmp.ne.s32.totalorder %s161, %s163
    %p170 = scmp.eq.s32.totalorder %s22, 1
    %p171 = por %p169, %p170
    %p172 = scmp.ne.s32.totalorder %s163, %s164
    %p173 = scmp.eq.s32.totalorder %s22, 0
    %p174 = por %p172, %p173
    %p175 = scmp.ne.s32.totalorder %s163, %s164
    %p176 = scmp.eq.s32.totalorder %s23, 1
    %p177 = por %p175, %p176
    %p179 = scmp.ne.s32.totalorder %s164, %s178
    %p180 = scmp.eq.s32.totalorder %s23, 0
    %p181 = por %p179, %p180
    %s183 = sadd.s32 %s182, 1
    %p186 = scmp.eq.s32.totalorder %s17, 1
    %p187 = scmp.ne.s32.totalorder %s182, %s184
    %p188 = scmp.eq.s32.totalorder %s17, 0
    %p189 = por %p187, %p188
    %p190 = scmp.ne.s32.totalorder %s182, %s184
    %p191 = scmp.eq.s32.totalorder %s22, 1
    %p192 = por %p190, %p191
    %p193 = scmp.ne.s32.totalorder %s184, %s185
    %p194 = scmp.eq.s32.totalorder %s22, 0
    %p195 = por %p193, %p194
    %p196 = scmp.ne.s32.totalorder %s184, %s185
    %p197 = scmp.eq.s32.totalorder %s23, 1
    %p198 = por %p196, %p197
    %p200 = scmp.ne.s32.totalorder %s185, %s199
    %p201 = scmp.eq.s32.totalorder %s23, 0
    %p202 = por %p200, %p201
    %s204 = sadd.s32 %s203, 1
    %p207 = scmp.eq.s32.totalorder %s17, 1
    %p208 = scmp.ne.s32.totalorder %s203, %s205
    %p209 = scmp.eq.s32.totalorder %s17, 0
    %p210 = por %p208, %p209
    %p211 = scmp.ne.s32.totalorder %s203, %s205
    %p212 = scmp.eq.s32.totalorder %s22, 1
    %p213 = por %p211, %p212
    %p214 = scmp.ne.s32.totalorder %s205, %s206
    %p215 = scmp.eq.s32.totalorder %s22, 0
    %p216 = por %p214, %p215
    %p217 = scmp.ne.s32.totalorder %s205, %s206
    %p218 = scmp.eq.s32.totalorder %s23, 1
    %p219 = por %p217, %p218
    %p221 = scmp.ne.s32.totalorder %s206, %s220
    %p222 = scmp.eq.s32.totalorder %s23, 0
    %p223 = por %p221, %p222
    %s225 = sadd.s32 %s224, 1
    %p228 = scmp.eq.s32.totalorder %s17, 1
    %p229 = scmp.ne.s32.totalorder %s224, %s226
    %p230 = scmp.eq.s32.totalorder %s17, 0
    %p231 = por %p229, %p230
    %p232 = scmp.ne.s32.totalorder %s224, %s226
    %p233 = scmp.eq.s32.totalorder %s22, 1
    %p234 = por %p232, %p233
    %p235 = scmp.ne.s32.totalorder %s226, %s227
    %p236 = scmp.eq.s32.totalorder %s22, 0
    %p237 = por %p235, %p236
    %p238 = scmp.ne.s32.totalorder %s226, %s227
    %p239 = scmp.eq.s32.totalorder %s23, 1
    %p240 = por %p238, %p239
    %p242 = scmp.ne.s32.totalorder %s227, %s241
    %p243 = scmp.eq.s32.totalorder %s23, 0
    %p244 = por %p242, %p243
    %s245 = ssub.s32 %s17, %s24
    %p246 = scmp.eq.s32.totalorder %s245, 0
    %s248 = sadd.s32 %s247, 1
    %s249 = scalar_select %p246, %s247, %s248
    %p252 = pneg %p246
    %p253 = scmp.eq.s32.totalorder %s17, 1
    %p254 = por %p252, %p253
    %p255 = scmp.ne.s32.totalorder %s247, %s250
    %p256 = scmp.eq.s32.totalorder %s17, 0
    %p257 = por %p255, %p256
    %p258 = scmp.ne.s32.totalorder %s247, %s250
    %p259 = scmp.eq.s32.totalorder %s22, 1
    %p260 = por %p258, %p259
    %p261 = scmp.ne.s32.totalorder %s250, %s251
    %p262 = scmp.eq.s32.totalorder %s22, 0
    %p263 = por %p261, %p262
    %p264 = scmp.ne.s32.totalorder %s250, %s251
    %p265 = scmp.eq.s32.totalorder %s23, 1
    %p266 = por %p264, %p265
    %p268 = scmp.ne.s32.totalorder %s251, %s267
    %p269 = scmp.eq.s32.totalorder %s23, 0
    %p270 = por %p268, %p269
    %s271 = ssub.s32 %s17, %s24
    %p272 = scmp.eq.s32.totalorder %s271, 0
    %s274 = sadd.s32 %s273, 1
    %s275 = scalar_select %p272, %s273, %s274
    %p278 = pneg %p272
    %p279 = scmp.eq.s32.totalorder %s17, 1
    %p280 = por %p278, %p279
    %p281 = scmp.ne.s32.totalorder %s273, %s276
    %p282 = scmp.eq.s32.totalorder %s17, 0
    %p283 = por %p281, %p282
    %p284 = scmp.ne.s32.totalorder %s273, %s276
    %p285 = scmp.eq.s32.totalorder %s22, 1
    %p286 = por %p284, %p285
    %p287 = scmp.ne.s32.totalorder %s276, %s277
    %p288 = scmp.eq.s32.totalorder %s22, 0
    %p289 = por %p287, %p288
    %p290 = scmp.ne.s32.totalorder %s276, %s277
    %p291 = scmp.eq.s32.totalorder %s23, 1
    %p292 = por %p290, %p291
    %p294 = scmp.ne.s32.totalorder %s277, %s293
    %p295 = scmp.eq.s32.totalorder %s23, 0
    %p296 = por %p294, %p295
    %p297 = scmp.le.s32.totalorder 1, %s17
    %p298 = scmp.lt.s32.totalorder %s17, 3
    %p299 = pnand %p297, %p298
    %p300 = pneg %p299
    // Predicated region
    $region9: #{_lambda_.17} parent=5 // pred_check
      _
    $region10: #{_lambda_.17} parent=5 // pred_check_branch
      %302 = sbr.rel (%p299) target = $region12
    $region11: #{_lambda_.17} parent=5 // pred_region
      %s303 = ssub.s32 %s17, 1
      // Predicated region
      $region13: #{_lambda_.17} parent=11 // pred_check
        %p304 = pneg %p90
      $region14: #{_lambda_.17} parent=11 // pred_check_branch
        %306 = sbr.rel (%p304) target = $region16
      $region15: #{_lambda_.17} parent=11 // pred_region
        _
      $region16: #{_lambda_.17} parent=11 // pred_fallthru
        _
      // Predicated region
      $region17: #{_lambda_.17} parent=11 // pred_check
        %p307 = pneg %p111
      $region18: #{_lambda_.17} parent=11 // pred_check_branch
        %309 = sbr.rel (%p307) target = $region20
      $region19: #{_lambda_.17} parent=11 // pred_region
        _
      $region20: #{_lambda_.17} parent=11 // pred_fallthru
        _
      // Predicated region
      $region21: #{_lambda_.17} parent=11 // pred_check
        %p310 = pneg %p132
      $region22: #{_lambda_.17} parent=11 // pred_check_branch
        %312 = sbr.rel (%p310) target = $region24
      $region23: #{_lambda_.17} parent=11 // pred_region
        _
      $region24: #{_lambda_.17} parent=11 // pred_fallthru
        _
      // Predicated region
      $region25: #{_lambda_.17} parent=11 // pred_check
        %p313 = pneg %p153
      $region26: #{_lambda_.17} parent=11 // pred_check_branch
        %315 = sbr.rel (%p313) target = $region28
      $region27: #{_lambda_.17} parent=11 // pred_region
        _
      $region28: #{_lambda_.17} parent=11 // pred_fallthru
        _
      // Predicated region
      $region29: #{_lambda_.17} parent=11 // pred_check
        %p316 = pneg %p174
      $region30: #{_lambda_.17} parent=11 // pred_check_branch
        %318 = sbr.rel (%p316) target = $region32
      $region31: #{_lambda_.17} parent=11 // pred_region
        _
      $region32: #{_lambda_.17} parent=11 // pred_fallthru
        _
      // Predicated region
      $region33: #{_lambda_.17} parent=11 // pred_check
        %p319 = pneg %p195
      $region34: #{_lambda_.17} parent=11 // pred_check_branch
        %321 = sbr.rel (%p319) target = $region36
      $region35: #{_lambda_.17} parent=11 // pred_region
        _
      $region36: #{_lambda_.17} parent=11 // pred_fallthru
        _
      // Predicated region
      $region37: #{_lambda_.17} parent=11 // pred_check
        %p322 = pneg %p216
      $region38: #{_lambda_.17} parent=11 // pred_check_branch
        %324 = sbr.rel (%p322) target = $region40
      $region39: #{_lambda_.17} parent=11 // pred_region
        _
      $region40: #{_lambda_.17} parent=11 // pred_fallthru
        _
      // Predicated region
      $region41: #{_lambda_.17} parent=11 // pred_check
        %p325 = pneg %p237
      $region42: #{_lambda_.17} parent=11 // pred_check_branch
        %327 = sbr.rel (%p325) target = $region44
      $region43: #{_lambda_.17} parent=11 // pred_region
        _
      $region44: #{_lambda_.17} parent=11 // pred_fallthru
        _
    $region12: #{_lambda_.17} parent=5 // pred_fallthru
      _
    %p328 = scmp.lt.s32.totalorder %s17, 2
    // Predicated region
    $region45: #{_lambda_.17} parent=5 // pred_check
      %p329 = pneg %p328
    $region46: #{_lambda_.17} parent=5 // pred_check_branch
      %331 = sbr.rel (%p329) target = $region48
    $region47: #{_lambda_.17} parent=5 // pred_region
      // Predicated region
      $region49: #{_lambda_.17} parent=47 // pred_check
        %p332 = pneg %p37
      $region50: #{_lambda_.17} parent=47 // pred_check_branch
        %334 = sbr.rel (%p332) target = $region52
      $region51: #{_lambda_.17} parent=47 // pred_region
        %p335 = scmp.lt.s32.totalorder %s17, 1
        %s336 = scalar_select %p335, %s17, 1
        %s337 = smul.addr %s336, 8
        %s338 = scalar_lea.vmem %s0, %s337
      $region52: #{_lambda_.17} parent=47 // pred_fallthru
        _
      // Predicated region
      $region53: #{_lambda_.17} parent=47 // pred_check
        %p339 = pneg %p63
      $region54: #{_lambda_.17} parent=47 // pred_check_branch
        %341 = sbr.rel (%p339) target = $region56
      $region55: #{_lambda_.17} parent=47 // pred_region
        %p342 = scmp.lt.s32.totalorder %s17, 1
        %s343 = scalar_select %p342, %s17, 1
        %s344 = smul.addr %s343, 8
        %s345 = scalar_lea.vmem %s1, %s344
      $region56: #{_lambda_.17} parent=47 // pred_fallthru
        _
      // Predicated region
      $region57: #{_lambda_.17} parent=47 // pred_check
        %p346 = pneg %p257
      $region58: #{_lambda_.17} parent=47 // pred_check_branch
        %348 = sbr.rel (%p346) target = $region60
      $region59: #{_lambda_.17} parent=47 // pred_region
        %p349 = scmp.lt.s32.totalorder %s17, 1
        %s350 = scalar_select %p349, %s17, 1
        %s351 = smul.addr %s350, 8
        %s352 = scalar_lea.vmem %s10, %s351
      $region60: #{_lambda_.17} parent=47 // pred_fallthru
        _
    $region48: #{_lambda_.17} parent=5 // pred_fallthru
      _
    %p353 = scmp.le.s32.totalorder 1, %s17
    %p354 = scmp.lt.s32.totalorder %s17, 3
    %p355 = pnand %p353, %p354
    %p356 = pneg %p355
    // Predicated region
    $region61: #{_lambda_.17} parent=5 // pred_check
      _
    $region62: #{_lambda_.17} parent=5 // pred_check_branch
      %358 = sbr.rel (%p355) target = $region64
    $region63: #{_lambda_.17} parent=5 // pred_region
      %s359 = ssub.s32 %s17, 1
      %p360 = scmp.lt.s32.totalorder %s22, 1
      %s361 = scalar_select %p360, %s22, 1
      %s362 = smul.addr %s361, 8
      %s363 = scalar_lea.vmem %s0, %s362
      %p364 = pneg %p43
      %p365 = pneg %p40
      %p366 = scmp.lt.s32.totalorder %s22, 1
      %s367 = scalar_select %p366, %s22, 1
      %s368 = smul.addr %s367, 8
      %s369 = scalar_lea.vmem %s1, %s368
      %p370 = pneg %p69
      %p371 = pneg %p66
      %p372 = pneg %p90
      %p373 = pneg %p87
      %p374 = pneg %p111
      %p375 = pneg %p108
      %p376 = pneg %p132
      %p377 = pneg %p129
      %p378 = pneg %p153
      %p379 = pneg %p150
      %p380 = pneg %p174
      %p381 = pneg %p171
      %p382 = pneg %p195
      %p383 = pneg %p192
      %p384 = pneg %p216
      %p385 = pneg %p213
      %p386 = pneg %p237
      %p387 = pneg %p234
      %p388 = scmp.lt.s32.totalorder %s22, 1
      %s389 = scalar_select %p388, %s22, 1
      %s390 = smul.addr %s389, 8
      %s391 = scalar_lea.vmem %s10, %s390
      %p392 = pneg %p263
      %p393 = pneg %p260
      %p394 = pneg %p289
      %p395 = pneg %p286
      %p396 = scmp.lt.s32.totalorder %s22, 1
      %s397 = scalar_select %p396, %s22, 1
      %s398 = smul.addr %s397, 8
      %s399 = scalar_lea.vmem %s11, %s398
      %p400 = scmp.lt.s32.totalorder %s22, 1
      %s401 = scalar_select %p400, %s22, 1
      %s402 = smul.addr %s401, 8
      %s403 = scalar_lea.vmem %s0, %s402
      %p404 = scmp.lt.s32.totalorder %s22, 1
      %s405 = scalar_select %p404, %s22, 1
      %s406 = smul.addr %s405, 8
      %s407 = scalar_lea.vmem %s1, %s406
      %p408 = scmp.lt.s32.totalorder %s22, 1
      %s409 = scalar_select %p408, %s22, 1
      %s410 = smul.addr %s409, 8
      %s411 = scalar_lea.vmem %s10, %s410
      %p412 = scmp.lt.s32.totalorder %s22, 1
      %s413 = scalar_select %p412, %s22, 1
      %s414 = smul.addr %s413, 8
      %s415 = scalar_lea.vmem %s11, %s414
      %v416 = vld [vmem:[%s403] sm:$0xff]
      %v417 = vld [vmem:[%s407] sm:$0xff]
      %v418 = vld [vmem:[%s2] sm:$0xff]
      %v419 = vld [vmem:[%s2 + $0x8] sm:$0xff]
      %v420 = vld [vmem:[%s2 + $0x10] sm:$0xff]
      %v421 = vld [vmem:[%s2 + $0x18] sm:$0xff]
      %v422 = vld [vmem:[%s3] sm:$0x1]
      %v424 = vlaneseq
      %v425 = vshrl.u32 %v424, 7
      %v426 = vsub.s32 0, %v425
      %v427 = vrot.slane %v422, %v426
      %vm429 = vcmask 261120
      %v431 = vsel %vm429, %v416, 0
      %433 = vmatprep.subr.mxu0 0.0
      %434 = vmatpush1.msra.mxu0 %v418
      %435 = vmatprep.subr.mxu0 0.0
      %436 = vmatpush1.msra.mxu0 %v419
      %437 = vmatprep.subr.mxu0 0.0
      %438 = vmatpush1.msra.mxu0 %v420
      %439 = vmatprep.subr.mxu0 0.0
      %440 = vmatpush1.msra.mxu0 %v421
      %441 = vmatprep.subr.mxu0 0.0
      %442 = vmatpush1.msra.mxu0 0.0
      %443 = vmatprep.subr.mxu0 0.0
      %444 = vmatpush1.msra.mxu0 0.0
      %445 = vmatprep.subr.mxu0 0.0
      %446 = vmatpush1.msra.mxu0 0.0
      %447 = vmatprep.subr.mxu0 0.0
      %448 = vmatpush1.msra.mxu0 0.0
      %449 = vmatprep.subr.mxu0 0.0
      %450 = vmatpush1.msra.mxu0 0.0
      %451 = vmatprep.subr.mxu0 0.0
      %452 = vmatpush1.msra.mxu0 0.0
      %453 = vmatprep.subr.mxu0 0.0
      %454 = vmatpush1.msra.mxu0 0.0
      %455 = vmatprep.subr.mxu0 0.0
      %456 = vmatpush1.msra.mxu0 0.0
      %457 = vmatprep.subr.mxu0 0.0
      %458 = vmatpush1.msra.mxu0 0.0
      %459 = vmatprep.subr.mxu0 0.0
      %460 = vmatpush1.msra.mxu0 0.0
      %461 = vmatprep.subr.mxu0 0.0
      %462 = vmatpush1.msra.mxu0 0.0
      %463 = vmatprep.subr.mxu0 0.0
      %464 = vmatpush1.msra.mxu0 0.0
      %465 = vmatprep.subr.mxu0 0.0
      %466 = vmatpush1.msra.mxu0 0.0
      %467 = vmatprep.subr.mxu0 0.0
      %468 = vmatpush1.msra.mxu0 0.0
      %469 = vmatprep.subr.mxu0 0.0
      %470 = vmatpush1.msra.mxu0 0.0
      %471 = vmatprep.subr.mxu0 0.0
      %472 = vmatpush1.msra.mxu0 0.0
      %473 = vmatprep.subr.mxu0 0.0
      %474 = vmatpush1.msra.mxu0 0.0
      %475 = vmatprep.subr.mxu0 0.0
      %476 = vmatpush1.msra.mxu0 0.0
      %477 = vmatprep.subr.mxu0 0.0
      %478 = vmatpush1.msra.mxu0 0.0
      %479 = vmatprep.subr.mxu0 0.0
      %480 = vmatpush1.msra.mxu0 0.0
      %481 = vmatprep.subr.mxu0 0.0
      %482 = vmatpush1.msra.mxu0 0.0
      %483 = vmatprep.subr.mxu0 0.0
      %484 = vmatpush1.msra.mxu0 0.0
      %485 = vmatprep.subr.mxu0 0.0
      %486 = vmatpush1.msra.mxu0 0.0
      %487 = vmatprep.subr.mxu0 0.0
      %488 = vmatpush1.msra.mxu0 0.0
      %489 = vmatprep.subr.mxu0 0.0
      %490 = vmatpush1.msra.mxu0 0.0
      %491 = vmatprep.subr.mxu0 0.0
      %492 = vmatpush1.msra.mxu0 0.0
      %493 = vmatprep.subr.mxu0 0.0
      %494 = vmatpush1.msra.mxu0 0.0
      %495 = vmatprep.subr.mxu0 0.0
      %496 = vmatpush1.msra.mxu0 0.0
      %497 = vmatprep.mubr.f32.mxu0 0.0
      %498 = vmatmul.mubr.f32.gmra.mrb[0].mxu0 %v431
      %v499 = vpop.f32.mrb[0].mxu0
      %v500 = vadd.f32 %v427, %v499
      %v501 = vpop.f32.mrb[0].mxu0
      %502 = vdwg.mxu0
      %v503 = vld [vmem:[%s4] sm:$0xff]
      %v504 = vld [vmem:[%s4 + $0x8] sm:$0xff]
      %v505 = vld [vmem:[%s4 + $0x10] sm:$0xff]
      %v506 = vld [vmem:[%s4 + $0x18] sm:$0xff]
      %v507 = vld [vmem:[%s5] sm:$0x1]
      %v509 = vlaneseq
      %v510 = vshrl.u32 %v509, 7
      %v511 = vsub.s32 0, %v510
      %v512 = vrot.slane %v507, %v511
      %v515 = vsel %vm429, %v417, 0
      %517 = vmatprep.subr.mxu0 0.0
      %518 = vmatpush1.msra.mxu0 %v503
      %519 = vmatprep.subr.mxu0 0.0
      %520 = vmatpush1.msra.mxu0 %v504
      %521 = vmatprep.subr.mxu0 0.0
      %522 = vmatpush1.msra.mxu0 %v505
      %523 = vmatprep.subr.mxu0 0.0
      %524 = vmatpush1.msra.mxu0 %v506
      %525 = vmatprep.subr.mxu0 0.0
      %526 = vmatpush1.msra.mxu0 0.0
      %527 = vmatprep.subr.mxu0 0.0
      %528 = vmatpush1.msra.mxu0 0.0
      %529 = vmatprep.subr.mxu0 0.0
      %530 = vmatpush1.msra.mxu0 0.0
      %531 = vmatprep.subr.mxu0 0.0
      %532 = vmatpush1.msra.mxu0 0.0
      %533 = vmatprep.subr.mxu0 0.0
      %534 = vmatpush1.msra.mxu0 0.0
      %535 = vmatprep.subr.mxu0 0.0
      %536 = vmatpush1.msra.mxu0 0.0
      %537 = vmatprep.subr.mxu0 0.0
      %538 = vmatpush1.msra.mxu0 0.0
      %539 = vmatprep.subr.mxu0 0.0
      %540 = vmatpush1.msra.mxu0 0.0
      %541 = vmatprep.subr.mxu0 0.0
      %542 = vmatpush1.msra.mxu0 0.0
      %543 = vmatprep.subr.mxu0 0.0
      %544 = vmatpush1.msra.mxu0 0.0
      %545 = vmatprep.subr.mxu0 0.0
      %546 = vmatpush1.msra.mxu0 0.0
      %547 = vmatprep.subr.mxu0 0.0
      %548 = vmatpush1.msra.mxu0 0.0
      %549 = vmatprep.subr.mxu0 0.0
      %550 = vmatpush1.msra.mxu0 0.0
      %551 = vmatprep.subr.mxu0 0.0
      %552 = vmatpush1.msra.mxu0 0.0
      %553 = vmatprep.subr.mxu0 0.0
      %554 = vmatpush1.msra.mxu0 0.0
      %555 = vmatprep.subr.mxu0 0.0
      %556 = vmatpush1.msra.mxu0 0.0
      %557 = vmatprep.subr.mxu0 0.0
      %558 = vmatpush1.msra.mxu0 0.0
      %559 = vmatprep.subr.mxu0 0.0
      %560 = vmatpush1.msra.mxu0 0.0
      %561 = vmatprep.subr.mxu0 0.0
      %562 = vmatpush1.msra.mxu0 0.0
      %563 = vmatprep.subr.mxu0 0.0
      %564 = vmatpush1.msra.mxu0 0.0
      %565 = vmatprep.subr.mxu0 0.0
      %566 = vmatpush1.msra.mxu0 0.0
      %567 = vmatprep.subr.mxu0 0.0
      %568 = vmatpush1.msra.mxu0 0.0
      %569 = vmatprep.subr.mxu0 0.0
      %570 = vmatpush1.msra.mxu0 0.0
      %571 = vmatprep.subr.mxu0 0.0
      %572 = vmatpush1.msra.mxu0 0.0
      %573 = vmatprep.subr.mxu0 0.0
      %574 = vmatpush1.msra.mxu0 0.0
      %575 = vmatprep.subr.mxu0 0.0
      %576 = vmatpush1.msra.mxu0 0.0
      %577 = vmatprep.subr.mxu0 0.0
      %578 = vmatpush1.msra.mxu0 0.0
      %579 = vmatprep.subr.mxu0 0.0
      %580 = vmatpush1.msra.mxu0 0.0
      %581 = vmatprep.mubr.f32.mxu0 0.0
      %582 = vmatmul.mubr.f32.gmra.mrb[0].mxu0 %v515
      %v583 = vpop.f32.mrb[0].mxu0
      %v584 = vadd.f32 %v512, %v583
      %v585 = vpop.f32.mrb[0].mxu0
      %586 = vdwg.mxu0
      %v587 = vld [vmem:[%s411] sm:$0xff]
      %vm588 = vcmask 64512
      %v590 = vsel %vm588, %v500, 0
      %v593 = vsel %vm588, %v584, 0
      %595 = vmatprep.subr.mxu0 0.0
      %596 = vmatpush1.xpose.msra.mxu0 %v593
      %597 = vmatprep.subr.mxu0 0.0
      %598 = vmatpush1.xpose.msra.mxu0 0.0
      %599 = vmatprep.subr.mxu0 0.0
      %600 = vmatpush1.xpose.msra.mxu0 0.0
      %601 = vmatprep.subr.mxu0 0.0
      %602 = vmatpush1.xpose.msra.mxu0 0.0
      %603 = vmatprep.subr.mxu0 0.0
      %604 = vmatpush1.xpose.msra.mxu0 0.0
      %605 = vmatprep.subr.mxu0 0.0
      %606 = vmatpush1.xpose.msra.mxu0 0.0
      %607 = vmatprep.subr.mxu0 0.0
      %608 = vmatpush1.xpose.msra.mxu0 0.0
      %609 = vmatprep.subr.mxu0 0.0
      %610 = vmatpush1.xpose.msra.mxu0 0.0
      %611 = vmatprep.subr.mxu0 0.0
      %612 = vmatpush1.xpose.msra.mxu0 0.0
      %613 = vmatprep.subr.mxu0 0.0
      %614 = vmatpush1.xpose.msra.mxu0 0.0
      %615 = vmatprep.subr.mxu0 0.0
      %616 = vmatpush1.xpose.msra.mxu0 0.0
      %617 = vmatprep.subr.mxu0 0.0
      %618 = vmatpush1.xpose.msra.mxu0 0.0
      %619 = vmatprep.subr.mxu0 0.0
      %620 = vmatpush1.xpose.msra.mxu0 0.0
      %621 = vmatprep.subr.mxu0 0.0
      %622 = vmatpush1.xpose.msra.mxu0 0.0
      %623 = vmatprep.subr.mxu0 0.0
      %624 = vmatpush1.xpose.msra.mxu0 0.0
      %625 = vmatprep.subr.mxu0 0.0
      %626 = vmatpush1.xpose.msra.mxu0 0.0
      %627 = vmatprep.subr.mxu0 0.0
      %628 = vmatpush1.xpose.msra.mxu0 0.0
      %629 = vmatprep.subr.mxu0 0.0
      %630 = vmatpush1.xpose.msra.mxu0 0.0
      %631 = vmatprep.subr.mxu0 0.0
      %632 = vmatpush1.xpose.msra.mxu0 0.0
      %633 = vmatprep.subr.mxu0 0.0
      %634 = vmatpush1.xpose.msra.mxu0 0.0
      %635 = vmatprep.subr.mxu0 0.0
      %636 = vmatpush1.xpose.msra.mxu0 0.0
      %637 = vmatprep.subr.mxu0 0.0
      %638 = vmatpush1.xpose.msra.mxu0 0.0
      %639 = vmatprep.subr.mxu0 0.0
      %640 = vmatpush1.xpose.msra.mxu0 0.0
      %641 = vmatprep.subr.mxu0 0.0
      %642 = vmatpush1.xpose.msra.mxu0 0.0
      %643 = vmatprep.subr.mxu0 0.0
      %644 = vmatpush1.xpose.msra.mxu0 0.0
      %645 = vmatprep.subr.mxu0 0.0
      %646 = vmatpush1.xpose.msra.mxu0 0.0
      %647 = vmatprep.subr.mxu0 0.0
      %648 = vmatpush1.xpose.msra.mxu0 0.0
      %649 = vmatprep.subr.mxu0 0.0
      %650 = vmatpush1.xpose.msra.mxu0 0.0
      %651 = vmatprep.subr.mxu0 0.0
      %652 = vmatpush1.xpose.msra.mxu0 0.0
      %653 = vmatprep.subr.mxu0 0.0
      %654 = vmatpush1.xpose.msra.mxu0 0.0
      %655 = vmatprep.subr.mxu0 0.0
      %656 = vmatpush1.xpose.msra.mxu0 0.0
      %657 = vmatprep.subr.mxu0 0.0
      %658 = vmatpush1.xpose.msra.mxu0 0.0
      %659 = vmatprep.mubr.f32.mxu0 0.0
      %660 = vmatmul.mubr.f32.gmra.mrb[0].mxu0 %v590
      %v661 = vpop.f32.mrb[0].mxu0
      %v662 = vadd.f32 0.0, %v661
      %v663 = vpop.f32.mrb[0].mxu0
      %664 = vdwg.mxu0
      %v665 = vmul.f32 %v662, 0.35355338
      %v666 = vadd.f32 %v665, %v587
      %v667 = vsel %vm588, %v666, -inf
      %668 = vmax.xlane.f32.xlu0 %v667
      %v669 = vpop.xlane.xlu0 %668
      %v670 = vsub.f32 %v666, %v669
      %v671 = vmul.f32 %v670, 1.442695
      %v672 = vpow.pop %v671
      %v673 = vsel %vm588, %v672, 0.0
      %674 = vadd.xlane.f32.xlu0 %v673
      %v675 = vpop.xlane.xlu0 %674
      %v676 = vrcp.pop %v675
      %v677 = vmul.f32 %v672, %v676
      %678 = vrot.lane.b32.xlu0 %v584, 96
      %v679 = vpop.permute.xlu0 %678
      %v682 = vsel %vm588, %v677, 0
      %684 = vmatprep.subr.mxu0 0.0
      %685 = vmatpush1.msra.mxu0 %v679
      %686 = vmatprep.subr.mxu0 0.0
      %687 = vmatpush1.msra.mxu0 0.0
      %688 = vmatprep.subr.mxu0 0.0
      %689 = vmatpush1.msra.mxu0 0.0
      %690 = vmatprep.subr.mxu0 0.0
      %691 = vmatpush1.msra.mxu0 0.0
      %692 = vmatprep.subr.mxu0 0.0
      %693 = vmatpush1.msra.mxu0 0.0
      %694 = vmatprep.subr.mxu0 0.0
      %695 = vmatpush1.msra.mxu0 0.0
      %696 = vmatprep.subr.mxu0 0.0
      %697 = vmatpush1.msra.mxu0 0.0
      %698 = vmatprep.subr.mxu0 0.0
      %699 = vmatpush1.msra.mxu0 0.0
      %700 = vmatprep.subr.mxu0 0.0
      %701 = vmatpush1.msra.mxu0 0.0
      %702 = vmatprep.subr.mxu0 0.0
      %703 = vmatpush1.msra.mxu0 0.0
      %704 = vmatprep.subr.mxu0 0.0
      %705 = vmatpush1.msra.mxu0 0.0
      %706 = vmatprep.subr.mxu0 0.0
      %707 = vmatpush1.msra.mxu0 0.0
      %708 = vmatprep.subr.mxu0 0.0
      %709 = vmatpush1.msra.mxu0 0.0
      %710 = vmatprep.subr.mxu0 0.0
      %711 = vmatpush1.msra.mxu0 0.0
      %712 = vmatprep.subr.mxu0 0.0
      %713 = vmatpush1.msra.mxu0 0.0
      %714 = vmatprep.subr.mxu0 0.0
      %715 = vmatpush1.msra.mxu0 0.0
      %716 = vmatprep.subr.mxu0 0.0
      %717 = vmatpush1.msra.mxu0 0.0
      %718 = vmatprep.subr.mxu0 0.0
      %719 = vmatpush1.msra.mxu0 0.0
      %720 = vmatprep.subr.mxu0 0.0
      %721 = vmatpush1.msra.mxu0 0.0
      %722 = vmatprep.subr.mxu0 0.0
      %723 = vmatpush1.msra.mxu0 0.0
      %724 = vmatprep.subr.mxu0 0.0
      %725 = vmatpush1.msra.mxu0 0.0
      %726 = vmatprep.subr.mxu0 0.0
      %727 = vmatpush1.msra.mxu0 0.0
      %728 = vmatprep.subr.mxu0 0.0
      %729 = vmatpush1.msra.mxu0 0.0
      %730 = vmatprep.subr.mxu0 0.0
      %731 = vmatpush1.msra.mxu0 0.0
      %732 = vmatprep.subr.mxu0 0.0
      %733 = vmatpush1.msra.mxu0 0.0
      %734 = vmatprep.subr.mxu0 0.0
      %735 = vmatpush1.msra.mxu0 0.0
      %736 = vmatprep.subr.mxu0 0.0
      %737 = vmatpush1.msra.mxu0 0.0
      %738 = vmatprep.subr.mxu0 0.0
      %739 = vmatpush1.msra.mxu0 0.0
      %740 = vmatprep.subr.mxu0 0.0
      %741 = vmatpush1.msra.mxu0 0.0
      %742 = vmatprep.subr.mxu0 0.0
      %743 = vmatpush1.msra.mxu0 0.0
      %744 = vmatprep.subr.mxu0 0.0
      %745 = vmatpush1.msra.mxu0 0.0
      %746 = vmatprep.subr.mxu0 0.0
      %747 = vmatpush1.msra.mxu0 0.0
      %748 = vmatprep.mubr.f32.mxu0 0.0
      %749 = vmatmul.mubr.f32.gmra.mrb[0].mxu0 %v682
      %v750 = vpop.f32.mrb[0].mxu0
      %v751 = vadd.f32 0.0, %v750
      %v752 = vpop.f32.mrb[0].mxu0
      %753 = vdwg.mxu0
      %754 = vrot.lane.b32.xlu0 %v500, 120
      %v755 = vpop.permute.xlu0 %754
      %756 = vrot.lane.b32.xlu0 %v584, 120
      %v757 = vpop.permute.xlu0 %756
      %v758 = vsel %vm588, %v755, 0
      %v760 = vsel %vm588, %v757, 0
      %762 = vmatprep.subr.mxu0 0.0
      %763 = vmatpush1.xpose.msra.mxu0 %v760
      %764 = vmatprep.subr.mxu0 0.0
      %765 = vmatpush1.xpose.msra.mxu0 0.0
      %766 = vmatprep.subr.mxu0 0.0
      %767 = vmatpush1.xpose.msra.mxu0 0.0
      %768 = vmatprep.subr.mxu0 0.0
      %769 = vmatpush1.xpose.msra.mxu0 0.0
      %770 = vmatprep.subr.mxu0 0.0
      %771 = vmatpush1.xpose.msra.mxu0 0.0
      %772 = vmatprep.subr.mxu0 0.0
      %773 = vmatpush1.xpose.msra.mxu0 0.0
      %774 = vmatprep.subr.mxu0 0.0
      %775 = vmatpush1.xpose.msra.mxu0 0.0
      %776 = vmatprep.subr.mxu0 0.0
      %777 = vmatpush1.xpose.msra.mxu0 0.0
      %778 = vmatprep.subr.mxu0 0.0
      %779 = vmatpush1.xpose.msra.mxu0 0.0
      %780 = vmatprep.subr.mxu0 0.0
      %781 = vmatpush1.xpose.msra.mxu0 0.0
      %782 = vmatprep.subr.mxu0 0.0
      %783 = vmatpush1.xpose.msra.mxu0 0.0
      %784 = vmatprep.subr.mxu0 0.0
      %785 = vmatpush1.xpose.msra.mxu0 0.0
      %786 = vmatprep.subr.mxu0 0.0
      %787 = vmatpush1.xpose.msra.mxu0 0.0
      %788 = vmatprep.subr.mxu0 0.0
      %789 = vmatpush1.xpose.msra.mxu0 0.0
      %790 = vmatprep.subr.mxu0 0.0
      %791 = vmatpush1.xpose.msra.mxu0 0.0
      %792 = vmatprep.subr.mxu0 0.0
      %793 = vmatpush1.xpose.msra.mxu0 0.0
      %794 = vmatprep.subr.mxu0 0.0
      %795 = vmatpush1.xpose.msra.mxu0 0.0
      %796 = vmatprep.subr.mxu0 0.0
      %797 = vmatpush1.xpose.msra.mxu0 0.0
      %798 = vmatprep.subr.mxu0 0.0
      %799 = vmatpush1.xpose.msra.mxu0 0.0
      %800 = vmatprep.subr.mxu0 0.0
      %801 = vmatpush1.xpose.msra.mxu0 0.0
      %802 = vmatprep.subr.mxu0 0.0
      %803 = vmatpush1.xpose.msra.mxu0 0.0
      %804 = vmatprep.subr.mxu0 0.0
      %805 = vmatpush1.xpose.msra.mxu0 0.0
      %806 = vmatprep.subr.mxu0 0.0
      %807 = vmatpush1.xpose.msra.mxu0 0.0
      %808 = vmatprep.subr.mxu0 0.0
      %809 = vmatpush1.xpose.msra.mxu0 0.0
      %810 = vmatprep.subr.mxu0 0.0
      %811 = vmatpush1.xpose.msra.mxu0 0.0
      %812 = vmatprep.subr.mxu0 0.0
      %813 = vmatpush1.xpose.msra.mxu0 0.0
      %814 = vmatprep.subr.mxu0 0.0
      %815 = vmatpush1.xpose.msra.mxu0 0.0
      %816 = vmatprep.subr.mxu0 0.0
      %817 = vmatpush1.xpose.msra.mxu0 0.0
      %818 = vmatprep.subr.mxu0 0.0
      %819 = vmatpush1.xpose.msra.mxu0 0.0
      %820 = vmatprep.subr.mxu0 0.0
      %821 = vmatpush1.xpose.msra.mxu0 0.0
      %822 = vmatprep.subr.mxu0 0.0
      %823 = vmatpush1.xpose.msra.mxu0 0.0
      %824 = vmatprep.subr.mxu0 0.0
      %825 = vmatpush1.xpose.msra.mxu0 0.0
      %826 = vmatprep.mubr.f32.mxu0 0.0
      %827 = vmatmul.mubr.f32.gmra.mrb[0].mxu0 %v758
      %v828 = vpop.f32.mrb[0].mxu0
      %v829 = vadd.f32 0.0, %v828
      %v830 = vpop.f32.mrb[0].mxu0
      %831 = vdwg.mxu0
      %v832 = vmul.f32 %v829, 0.35355338
      %v833 = vadd.f32 %v832, %v587
      %v834 = vsel %vm588, %v833, -inf
      %835 = vmax.xlane.f32.xlu0 %v834
      %v836 = vpop.xlane.xlu0 %835
      %v837 = vsub.f32 %v833, %v836
      %v838 = vmul.f32 %v837, 1.442695
      %v839 = vpow.pop %v838
      %v840 = vsel %vm588, %v839, 0.0
      %841 = vadd.xlane.f32.xlu0 %v840
      %v842 = vpop.xlane.xlu0 %841
      %v843 = vrcp.pop %v842
      %v844 = vmul.f32 %v839, %v843
      %845 = vrot.lane.b32.xlu0 %v584, 88
      %v846 = vpop.permute.xlu0 %845
      %v849 = vsel %vm588, %v844, 0
      %851 = vmatprep.subr.mxu0 0.0
      %852 = vmatpush1.msra.mxu0 %v846
      %853 = vmatprep.subr.mxu0 0.0
      %854 = vmatpush1.msra.mxu0 0.0
      %855 = vmatprep.subr.mxu0 0.0
      %856 = vmatpush1.msra.mxu0 0.0
      %857 = vmatprep.subr.mxu0 0.0
      %858 = vmatpush1.msra.mxu0 0.0
      %859 = vmatprep.subr.mxu0 0.0
      %860 = vmatpush1.msra.mxu0 0.0
      %861 = vmatprep.subr.mxu0 0.0
      %862 = vmatpush1.msra.mxu0 0.0
      %863 = vmatprep.subr.mxu0 0.0
      %864 = vmatpush1.msra.mxu0 0.0
      %865 = vmatprep.subr.mxu0 0.0
      %866 = vmatpush1.msra.mxu0 0.0
      %867 = vmatprep.subr.mxu0 0.0
      %868 = vmatpush1.msra.mxu0 0.0
      %869 = vmatprep.subr.mxu0 0.0
      %870 = vmatpush1.msra.mxu0 0.0
      %871 = vmatprep.subr.mxu0 0.0
      %872 = vmatpush1.msra.mxu0 0.0
      %873 = vmatprep.subr.mxu0 0.0
      %874 = vmatpush1.msra.mxu0 0.0
      %875 = vmatprep.subr.mxu0 0.0
      %876 = vmatpush1.msra.mxu0 0.0
      %877 = vmatprep.subr.mxu0 0.0
      %878 = vmatpush1.msra.mxu0 0.0
      %879 = vmatprep.subr.mxu0 0.0
      %880 = vmatpush1.msra.mxu0 0.0
      %881 = vmatprep.subr.mxu0 0.0
      %882 = vmatpush1.msra.mxu0 0.0
      %883 = vmatprep.subr.mxu0 0.0
      %884 = vmatpush1.msra.mxu0 0.0
      %885 = vmatprep.subr.mxu0 0.0
      %886 = vmatpush1.msra.mxu0 0.0
      %887 = vmatprep.subr.mxu0 0.0
      %888 = vmatpush1.msra.mxu0 0.0
      %889 = vmatprep.subr.mxu0 0.0
      %890 = vmatpush1.msra.mxu0 0.0
      %891 = vmatprep.subr.mxu0 0.0
      %892 = vmatpush1.msra.mxu0 0.0
      %893 = vmatprep.subr.mxu0 0.0
      %894 = vmatpush1.msra.mxu0 0.0
      %895 = vmatprep.subr.mxu0 0.0
      %896 = vmatpush1.msra.mxu0 0.0
      %897 = vmatprep.subr.mxu0 0.0
      %898 = vmatpush1.msra.mxu0 0.0
      %899 = vmatprep.subr.mxu0 0.0
      %900 = vmatpush1.msra.mxu0 0.0
      %901 = vmatprep.subr.mxu0 0.0
      %902 = vmatpush1.msra.mxu0 0.0
      %903 = vmatprep.subr.mxu0 0.0
      %904 = vmatpush1.msra.mxu0 0.0
      %905 = vmatprep.subr.mxu0 0.0
      %906 = vmatpush1.msra.mxu0 0.0
      %907 = vmatprep.subr.mxu0 0.0
      %908 = vmatpush1.msra.mxu0 0.0
      %909 = vmatprep.subr.mxu0 0.0
      %910 = vmatpush1.msra.mxu0 0.0
      %911 = vmatprep.subr.mxu0 0.0
      %912 = vmatpush1.msra.mxu0 0.0
      %913 = vmatprep.subr.mxu0 0.0
      %914 = vmatpush1.msra.mxu0 0.0
      %915 = vmatprep.mubr.f32.mxu0 0.0
      %916 = vmatmul.mubr.f32.gmra.mrb[0].mxu0 %v849
      %v917 = vpop.f32.mrb[0].mxu0
      %v918 = vadd.f32 0.0, %v917
      %v919 = vpop.f32.mrb[0].mxu0
      %920 = vdwg.mxu0
      %921 = vrot.lane.b32.xlu0 %v500, 112
      %v922 = vpop.permute.xlu0 %921
      %923 = vrot.lane.b32.xlu0 %v584, 112
      %v924 = vpop.permute.xlu0 %923
      %v925 = vsel %vm588, %v922, 0
      %v927 = vsel %vm588, %v924, 0
      %929 = vmatprep.subr.mxu0 0.0
      %930 = vmatpush1.xpose.msra.mxu0 %v927
      %931 = vmatprep.subr.mxu0 0.0
      %932 = vmatpush1.xpose.msra.mxu0 0.0
      %933 = vmatprep.subr.mxu0 0.0
      %934 = vmatpush1.xpose.msra.mxu0 0.0
      %935 = vmatprep.subr.mxu0 0.0
      %936 = vmatpush1.xpose.msra.mxu0 0.0
      %937 = vmatprep.subr.mxu0 0.0
      %938 = vmatpush1.xpose.msra.mxu0 0.0
      %939 = vmatprep.subr.mxu0 0.0
      %940 = vmatpush1.xpose.msra.mxu0 0.0
      %941 = vmatprep.subr.mxu0 0.0
      %942 = vmatpush1.xpose.msra.mxu0 0.0
      %943 = vmatprep.subr.mxu0 0.0
      %944 = vmatpush1.xpose.msra.mxu0 0.0
      %945 = vmatprep.subr.mxu0 0.0
      %946 = vmatpush1.xpose.msra.mxu0 0.0
      %947 = vmatprep.subr.mxu0 0.0
      %948 = vmatpush1.xpose.msra.mxu0 0.0
      %949 = vmatprep.subr.mxu0 0.0
      %950 = vmatpush1.xpose.msra.mxu0 0.0
      %951 = vmatprep.subr.mxu0 0.0
      %952 = vmatpush1.xpose.msra.mxu0 0.0
      %953 = vmatprep.subr.mxu0 0.0
      %954 = vmatpush1.xpose.msra.mxu0 0.0
      %955 = vmatprep.subr.mxu0 0.0
      %956 = vmatpush1.xpose.msra.mxu0 0.0
      %957 = vmatprep.subr.mxu0 0.0
      %958 = vmatpush1.xpose.msra.mxu0 0.0
      %959 = vmatprep.subr.mxu0 0.0
      %960 = vmatpush1.xpose.msra.mxu0 0.0
      %961 = vmatprep.subr.mxu0 0.0
      %962 = vmatpush1.xpose.msra.mxu0 0.0
      %963 = vmatprep.subr.mxu0 0.0
      %964 = vmatpush1.xpose.msra.mxu0 0.0
      %965 = vmatprep.subr.mxu0 0.0
      %966 = vmatpush1.xpose.msra.mxu0 0.0
      %967 = vmatprep.subr.mxu0 0.0
      %968 = vmatpush1.xpose.msra.mxu0 0.0
      %969 = vmatprep.subr.mxu0 0.0
      %970 = vmatpush1.xpose.msra.mxu0 0.0
      %971 = vmatprep.subr.mxu0 0.0
      %972 = vmatpush1.xpose.msra.mxu0 0.0
      %973 = vmatprep.subr.mxu0 0.0
      %974 = vmatpush1.xpose.msra.mxu0 0.0
      %975 = vmatprep.subr.mxu0 0.0
      %976 = vmatpush1.xpose.msra.mxu0 0.0
      %977 = vmatprep.subr.mxu0 0.0
      %978 = vmatpush1.xpose.msra.mxu0 0.0
      %979 = vmatprep.subr.mxu0 0.0
      %980 = vmatpush1.xpose.msra.mxu0 0.0
      %981 = vmatprep.subr.mxu0 0.0
      %982 = vmatpush1.xpose.msra.mxu0 0.0
      %983 = vmatprep.subr.mxu0 0.0
      %984 = vmatpush1.xpose.msra.mxu0 0.0
      %985 = vmatprep.subr.mxu0 0.0
      %986 = vmatpush1.xpose.msra.mxu0 0.0
      %987 = vmatprep.subr.mxu0 0.0
      %988 = vmatpush1.xpose.msra.mxu0 0.0
      %989 = vmatprep.subr.mxu0 0.0
      %990 = vmatpush1.xpose.msra.mxu0 0.0
      %991 = vmatprep.subr.mxu0 0.0
      %992 = vmatpush1.xpose.msra.mxu0 0.0
      %993 = vmatprep.mubr.f32.mxu0 0.0
      %994 = vmatmul.mubr.f32.gmra.mrb[0].mxu0 %v925
      %v995 = vpop.f32.mrb[0].mxu0
      %v996 = vadd.f32 0.0, %v995
      %v997 = vpop.f32.mrb[0].mxu0
      %998 = vdwg.mxu0
      %v999 = vmul.f32 %v996, 0.35355338
      %v1000 = vadd.f32 %v999, %v587
      %v1001 = vsel %vm588, %v1000, -inf
      %1002 = vmax.xlane.f32.xlu0 %v1001
      %v1003 = vpop.xlane.xlu0 %1002
      %v1004 = vsub.f32 %v1000, %v1003
      %v1005 = vmul.f32 %v1004, 1.442695
      %v1006 = vpow.pop %v1005
      %v1007 = vsel %vm588, %v1006, 0.0
      %1008 = vadd.xlane.f32.xlu0 %v1007
      %v1009 = vpop.xlane.xlu0 %1008
      %v1010 = vrcp.pop %v1009
      %v1011 = vmul.f32 %v1006, %v1010
      %1012 = vrot.lane.b32.xlu0 %v584, 80
      %v1013 = vpop.permute.xlu0 %1012
      %v1016 = vsel %vm588, %v1011, 0
      %1018 = vmatprep.subr.mxu0 0.0
      %1019 = vmatpush1.msra.mxu0 %v1013
      %1020 = vmatprep.subr.mxu0 0.0
      %1021 = vmatpush1.msra.mxu0 0.0
      %1022 = vmatprep.subr.mxu0 0.0
      %1023 = vmatpush1.msra.mxu0 0.0
      %1024 = vmatprep.subr.mxu0 0.0
      %1025 = vmatpush1.msra.mxu0 0.0
      %1026 = vmatprep.subr.mxu0 0.0
      %1027 = vmatpush1.msra.mxu0 0.0
      %1028 = vmatprep.subr.mxu0 0.0
      %1029 = vmatpush1.msra.mxu0 0.0
      %1030 = vmatprep.subr.mxu0 0.0
      %1031 = vmatpush1.msra.mxu0 0.0
      %1032 = vmatprep.subr.mxu0 0.0
      %1033 = vmatpush1.msra.mxu0 0.0
      %1034 = vmatprep.subr.mxu0 0.0
      %1035 = vmatpush1.msra.mxu0 0.0
      %1036 = vmatprep.subr.mxu0 0.0
      %1037 = vmatpush1.msra.mxu0 0.0
      %1038 = vmatprep.subr.mxu0 0.0
      %1039 = vmatpush1.msra.mxu0 0.0
      %1040 = vmatprep.subr.mxu0 0.0
      %1041 = vmatpush1.msra.mxu0 0.0
      %1042 = vmatprep.subr.mxu0 0.0
      %1043 = vmatpush1.msra.mxu0 0.0
      %1044 = vmatprep.subr.mxu0 0.0
      %1045 = vmatpush1.msra.mxu0 0.0
      %1046 = vmatprep.subr.mxu0 0.0
      %1047 = vmatpush1.msra.mxu0 0.0
      %1048 = vmatprep.subr.mxu0 0.0
      %1049 = vmatpush1.msra.mxu0 0.0
      %1050 = vmatprep.subr.mxu0 0.0
      %1051 = vmatpush1.msra.mxu0 0.0
      %1052 = vmatprep.subr.mxu0 0.0
      %1053 = vmatpush1.msra.mxu0 0.0
      %1054 = vmatprep.subr.mxu0 0.0
      %1055 = vmatpush1.msra.mxu0 0.0
      %1056 = vmatprep.subr.mxu0 0.0
      %1057 = vmatpush1.msra.mxu0 0.0
      %1058 = vmatprep.subr.mxu0 0.0
      %1059 = vmatpush1.msra.mxu0 0.0
      %1060 = vmatprep.subr.mxu0 0.0
      %1061 = vmatpush1.msra.mxu0 0.0
      %1062 = vmatprep.subr.mxu0 0.0
      %1063 = vmatpush1.msra.mxu0 0.0
      %1064 = vmatprep.subr.mxu0 0.0
      %1065 = vmatpush1.msra.mxu0 0.0
      %1066 = vmatprep.subr.mxu0 0.0
      %1067 = vmatpush1.msra.mxu0 0.0
      %1068 = vmatprep.subr.mxu0 0.0
      %1069 = vmatpush1.msra.mxu0 0.0
      %1070 = vmatprep.subr.mxu0 0.0
      %1071 = vmatpush1.msra.mxu0 0.0
      %1072 = vmatprep.subr.mxu0 0.0
      %1073 = vmatpush1.msra.mxu0 0.0
      %1074 = vmatprep.subr.mxu0 0.0
      %1075 = vmatpush1.msra.mxu0 0.0
      %1076 = vmatprep.subr.mxu0 0.0
      %1077 = vmatpush1.msra.mxu0 0.0
      %1078 = vmatprep.subr.mxu0 0.0
      %1079 = vmatpush1.msra.mxu0 0.0
      %1080 = vmatprep.subr.mxu0 0.0
      %1081 = vmatpush1.msra.mxu0 0.0
      %1082 = vmatprep.mubr.f32.mxu0 0.0
      %1083 = vmatmul.mubr.f32.gmra.mrb[0].mxu0 %v1016
      %v1084 = vpop.f32.mrb[0].mxu0
      %v1085 = vadd.f32 0.0, %v1084
      %v1086 = vpop.f32.mrb[0].mxu0
      %1087 = vdwg.mxu0
      %1088 = vrot.lane.b32.xlu0 %v500, 104
      %v1089 = vpop.permute.xlu0 %1088
      %1090 = vrot.lane.b32.xlu0 %v584, 104
      %v1091 = vpop.permute.xlu0 %1090
      %v1092 = vsel %vm588, %v1089, 0
      %v1094 = vsel %vm588, %v1091, 0
      %1096 = vmatprep.subr.mxu0 0.0
      %1097 = vmatpush1.xpose.msra.mxu0 %v1094
      %1098 = vmatprep.subr.mxu0 0.0
      %1099 = vmatpush1.xpose.msra.mxu0 0.0
      %1100 = vmatprep.subr.mxu0 0.0
      %1101 = vmatpush1.xpose.msra.mxu0 0.0
      %1102 = vmatprep.subr.mxu0 0.0
      %1103 = vmatpush1.xpose.msra.mxu0 0.0
      %1104 = vmatprep.subr.mxu0 0.0
      %1105 = vmatpush1.xpose.msra.mxu0 0.0
      %1106 = vmatprep.subr.mxu0 0.0
      %1107 = vmatpush1.xpose.msra.mxu0 0.0
      %1108 = vmatprep.subr.mxu0 0.0
      %1109 = vmatpush1.xpose.msra.mxu0 0.0
      %1110 = vmatprep.subr.mxu0 0.0
      %1111 = vmatpush1.xpose.msra.mxu0 0.0
      %1112 = vmatprep.subr.mxu0 0.0
      %1113 = vmatpush1.xpose.msra.mxu0 0.0
      %1114 = vmatprep.subr.mxu0 0.0
      %1115 = vmatpush1.xpose.msra.mxu0 0.0
      %1116 = vmatprep.subr.mxu0 0.0
      %1117 = vmatpush1.xpose.msra.mxu0 0.0
      %1118 = vmatprep.subr.mxu0 0.0
      %1119 = vmatpush1.xpose.msra.mxu0 0.0
      %1120 = vmatprep.subr.mxu0 0.0
      %1121 = vmatpush1.xpose.msra.mxu0 0.0
      %1122 = vmatprep.subr.mxu0 0.0
      %1123 = vmatpush1.xpose.msra.mxu0 0.0
      %1124 = vmatprep.subr.mxu0 0.0
      %1125 = vmatpush1.xpose.msra.mxu0 0.0
      %1126 = vmatprep.subr.mxu0 0.0
      %1127 = vmatpush1.xpose.msra.mxu0 0.0
      %1128 = vmatprep.subr.mxu0 0.0
      %1129 = vmatpush1.xpose.msra.mxu0 0.0
      %1130 = vmatprep.subr.mxu0 0.0
      %1131 = vmatpush1.xpose.msra.mxu0 0.0
      %1132 = vmatprep.subr.mxu0 0.0
      %1133 = vmatpush1.xpose.msra.mxu0 0.0
      %1134 = vmatprep.subr.mxu0 0.0
      %1135 = vmatpush1.xpose.msra.mxu0 0.0
      %1136 = vmatprep.subr.mxu0 0.0
      %1137 = vmatpush1.xpose.msra.mxu0 0.0
      %1138 = vmatprep.subr.mxu0 0.0
      %1139 = vmatpush1.xpose.msra.mxu0 0.0
      %1140 = vmatprep.subr.mxu0 0.0
      %1141 = vmatpush1.xpose.msra.mxu0 0.0
      %1142 = vmatprep.subr.mxu0 0.0
      %1143 = vmatpush1.xpose.msra.mxu0 0.0
      %1144 = vmatprep.subr.mxu0 0.0
      %1145 = vmatpush1.xpose.msra.mxu0 0.0
      %1146 = vmatprep.subr.mxu0 0.0
      %1147 = vmatpush1.xpose.msra.mxu0 0.0
      %1148 = vmatprep.subr.mxu0 0.0
      %1149 = vmatpush1.xpose.msra.mxu0 0.0
      %1150 = vmatprep.subr.mxu0 0.0
      %1151 = vmatpush1.xpose.msra.mxu0 0.0
      %1152 = vmatprep.subr.mxu0 0.0
      %1153 = vmatpush1.xpose.msra.mxu0 0.0
      %1154 = vmatprep.subr.mxu0 0.0
      %1155 = vmatpush1.xpose.msra.mxu0 0.0
      %1156 = vmatprep.subr.mxu0 0.0
      %1157 = vmatpush1.xpose.msra.mxu0 0.0
      %1158 = vmatprep.subr.mxu0 0.0
      %1159 = vmatpush1.xpose.msra.mxu0 0.0
      %1160 = vmatprep.mubr.f32.mxu0 0.0
      %1161 = vmatmul.mubr.f32.gmra.mrb[0].mxu0 %v1092
      %v1162 = vpop.f32.mrb[0].mxu0
      %v1163 = vadd.f32 0.0, %v1162
      %v1164 = vpop.f32.mrb[0].mxu0
      %1165 = vdwg.mxu0
      %v1166 = vmul.f32 %v1163, 0.35355338
      %v1167 = vadd.f32 %v1166, %v587
      %v1168 = vsel %vm588, %v1167, -inf
      %1169 = vmax.xlane.f32.xlu0 %v1168
      %v1170 = vpop.xlane.xlu0 %1169
      %v1171 = vsub.f32 %v1167, %v1170
      %v1172 = vmul.f32 %v1171, 1.442695
      %v1173 = vpow.pop %v1172
      %v1174 = vsel %vm588, %v1173, 0.0
      %1175 = vadd.xlane.f32.xlu0 %v1174
      %v1176 = vpop.xlane.xlu0 %1175
      %v1177 = vrcp.pop %v1176
      %v1178 = vmul.f32 %v1173, %v1177
      %1179 = vrot.lane.b32.xlu0 %v584, 72
      %v1180 = vpop.permute.xlu0 %1179
      %v1183 = vsel %vm588, %v1178, 0
      %1185 = vmatprep.subr.mxu0 0.0
      %1186 = vmatpush1.msra.mxu0 %v1180
      %1187 = vmatprep.subr.mxu0 0.0
      %1188 = vmatpush1.msra.mxu0 0.0
      %1189 = vmatprep.subr.mxu0 0.0
      %1190 = vmatpush1.msra.mxu0 0.0
      %1191 = vmatprep.subr.mxu0 0.0
      %1192 = vmatpush1.msra.mxu0 0.0
      %1193 = vmatprep.subr.mxu0 0.0
      %1194 = vmatpush1.msra.mxu0 0.0
      %1195 = vmatprep.subr.mxu0 0.0
      %1196 = vmatpush1.msra.mxu0 0.0
      %1197 = vmatprep.subr.mxu0 0.0
      %1198 = vmatpush1.msra.mxu0 0.0
      %1199 = vmatprep.subr.mxu0 0.0
      %1200 = vmatpush1.msra.mxu0 0.0
      %1201 = vmatprep.subr.mxu0 0.0
      %1202 = vmatpush1.msra.mxu0 0.0
      %1203 = vmatprep.subr.mxu0 0.0
      %1204 = vmatpush1.msra.mxu0 0.0
      %1205 = vmatprep.subr.mxu0 0.0
      %1206 = vmatpush1.msra.mxu0 0.0
      %1207 = vmatprep.subr.mxu0 0.0
      %1208 = vmatpush1.msra.mxu0 0.0
      %1209 = vmatprep.subr.mxu0 0.0
      %1210 = vmatpush1.msra.mxu0 0.0
      %1211 = vmatprep.subr.mxu0 0.0
      %1212 = vmatpush1.msra.mxu0 0.0
      %1213 = vmatprep.subr.mxu0 0.0
      %1214 = vmatpush1.msra.mxu0 0.0
      %1215 = vmatprep.subr.mxu0 0.0
      %1216 = vmatpush1.msra.mxu0 0.0
      %1217 = vmatprep.subr.mxu0 0.0
      %1218 = vmatpush1.msra.mxu0 0.0
      %1219 = vmatprep.subr.mxu0 0.0
      %1220 = vmatpush1.msra.mxu0 0.0
      %1221 = vmatprep.subr.mxu0 0.0
      %1222 = vmatpush1.msra.mxu0 0.0
      %1223 = vmatprep.subr.mxu0 0.0
      %1224 = vmatpush1.msra.mxu0 0.0
      %1225 = vmatprep.subr.mxu0 0.0
      %1226 = vmatpush1.msra.mxu0 0.0
      %1227 = vmatprep.subr.mxu0 0.0
      %1228 = vmatpush1.msra.mxu0 0.0
      %1229 = vmatprep.subr.mxu0 0.0
      %1230 = vmatpush1.msra.mxu0 0.0
      %1231 = vmatprep.subr.mxu0 0.0
      %1232 = vmatpush1.msra.mxu0 0.0
      %1233 = vmatprep.subr.mxu0 0.0
      %1234 = vmatpush1.msra.mxu0 0.0
      %1235 = vmatprep.subr.mxu0 0.0
      %1236 = vmatpush1.msra.mxu0 0.0
      %1237 = vmatprep.subr.mxu0 0.0
      %1238 = vmatpush1.msra.mxu0 0.0
      %1239 = vmatprep.subr.mxu0 0.0
      %1240 = vmatpush1.msra.mxu0 0.0
      %1241 = vmatprep.subr.mxu0 0.0
      %1242 = vmatpush1.msra.mxu0 0.0
      %1243 = vmatprep.subr.mxu0 0.0
      %1244 = vmatpush1.msra.mxu0 0.0
      %1245 = vmatprep.subr.mxu0 0.0
      %1246 = vmatpush1.msra.mxu0 0.0
      %1247 = vmatprep.subr.mxu0 0.0
      %1248 = vmatpush1.msra.mxu0 0.0
      %1249 = vmatprep.mubr.f32.mxu0 0.0
      %1250 = vmatmul.mubr.f32.gmra.mrb[0].mxu0 %v1183
      %v1251 = vpop.f32.mrb[0].mxu0
      %v1252 = vadd.f32 0.0, %v1251
      %v1253 = vpop.f32.mrb[0].mxu0
      %1254 = vdwg.mxu0
      %1256 = vrot.lane.b32.xlu0 %v918, 8
      %v1257 = vpop.permute.xlu0 %1256
      %1260 = vrot.lane.b32.xlu0 %v1085, 16
      %v1261 = vpop.permute.xlu0 %1260
      %1264 = vrot.lane.b32.xlu0 %v1252, 24
      %v1265 = vpop.permute.xlu0 %1264
      %v1267 = vsel %vm588, %v751, %v1257
      %vm1268 = vcmask 130048
      %v1269 = vsel %vm1268, %v1267, %v1261
      %vm1270 = vcmask 195584
      %v1271 = vsel %vm1270, %v1269, %v1265
      %v1272 = vld [vmem:[%s6] sm:$0xff]
      %v1273 = vld [vmem:[%s6 + $0x8] sm:$0xff]
      %v1274 = vld [vmem:[%s6 + $0x10] sm:$0xff]
      %v1275 = vld [vmem:[%s6 + $0x18] sm:$0xff]
      %v1276 = vld [vmem:[%s7] sm:$0x1]
      %v1278 = vlaneseq
      %v1279 = vshrl.u32 %v1278, 7
      %v1280 = vsub.s32 0, %v1279
      %v1281 = vrot.slane %v1276, %v1280
      %v1284 = vsel %vm429, %v1271, 0
      %1286 = vmatprep.subr.mxu0 0.0
      %1287 = vmatpush1.msra.mxu0 %v1272
      %1288 = vmatprep.subr.mxu0 0.0
      %1289 = vmatpush1.msra.mxu0 %v1273
      %1290 = vmatprep.subr.mxu0 0.0
      %1291 = vmatpush1.msra.mxu0 %v1274
      %1292 = vmatprep.subr.mxu0 0.0
      %1293 = vmatpush1.msra.mxu0 %v1275
      %1294 = vmatprep.subr.mxu0 0.0
      %1295 = vmatpush1.msra.mxu0 0.0
      %1296 = vmatprep.subr.mxu0 0.0
      %1297 = vmatpush1.msra.mxu0 0.0
      %1298 = vmatprep.subr.mxu0 0.0
      %1299 = vmatpush1.msra.mxu0 0.0
      %1300 = vmatprep.subr.mxu0 0.0
      %1301 = vmatpush1.msra.mxu0 0.0
      %1302 = vmatprep.subr.mxu0 0.0
      %1303 = vmatpush1.msra.mxu0 0.0
      %1304 = vmatprep.subr.mxu0 0.0
      %1305 = vmatpush1.msra.mxu0 0.0
      %1306 = vmatprep.subr.mxu0 0.0
      %1307 = vmatpush1.msra.mxu0 0.0
      %1308 = vmatprep.subr.mxu0 0.0
      %1309 = vmatpush1.msra.mxu0 0.0
      %1310 = vmatprep.subr.mxu0 0.0
      %1311 = vmatpush1.msra.mxu0 0.0
      %1312 = vmatprep.subr.mxu0 0.0
      %1313 = vmatpush1.msra.mxu0 0.0
      %1314 = vmatprep.subr.mxu0 0.0
      %1315 = vmatpush1.msra.mxu0 0.0
      %1316 = vmatprep.subr.mxu0 0.0
      %1317 = vmatpush1.msra.mxu0 0.0
      %1318 = vmatprep.subr.mxu0 0.0
      %1319 = vmatpush1.msra.mxu0 0.0
      %1320 = vmatprep.subr.mxu0 0.0
      %1321 = vmatpush1.msra.mxu0 0.0
      %1322 = vmatprep.subr.mxu0 0.0
      %1323 = vmatpush1.msra.mxu0 0.0
      %1324 = vmatprep.subr.mxu0 0.0
      %1325 = vmatpush1.msra.mxu0 0.0
      %1326 = vmatprep.subr.mxu0 0.0
      %1327 = vmatpush1.msra.mxu0 0.0
      %1328 = vmatprep.subr.mxu0 0.0
      %1329 = vmatpush1.msra.mxu0 0.0
      %1330 = vmatprep.subr.mxu0 0.0
      %1331 = vmatpush1.msra.mxu0 0.0
      %1332 = vmatprep.subr.mxu0 0.0
      %1333 = vmatpush1.msra.mxu0 0.0
      %1334 = vmatprep.subr.mxu0 0.0
      %1335 = vmatpush1.msra.mxu0 0.0
      %1336 = vmatprep.subr.mxu0 0.0
      %1337 = vmatpush1.msra.mxu0 0.0
      %1338 = vmatprep.subr.mxu0 0.0
      %1339 = vmatpush1.msra.mxu0 0.0
      %1340 = vmatprep.subr.mxu0 0.0
      %1341 = vmatpush1.msra.mxu0 0.0
      %1342 = vmatprep.subr.mxu0 0.0
      %1343 = vmatpush1.msra.mxu0 0.0
      %1344 = vmatprep.subr.mxu0 0.0
      %1345 = vmatpush1.msra.mxu0 0.0
      %1346 = vmatprep.subr.mxu0 0.0
      %1347 = vmatpush1.msra.mxu0 0.0
      %1348 = vmatprep.subr.mxu0 0.0
      %1349 = vmatpush1.msra.mxu0 0.0
      %1350 = vmatprep.mubr.f32.mxu0 0.0
      %1351 = vmatmul.mubr.f32.gmra.mrb[0].mxu0 %v1284
      %v1352 = vpop.f32.mrb[0].mxu0
      %v1353 = vadd.f32 %v1281, %v1352
      %v1354 = vpop.f32.mrb[0].mxu0
      %1355 = vdwg.mxu0
      %v1356 = vadd.f32 %v416, %v1353
      %v1357 = vsel %vm429, %v1356, 0.0
      %1358 = vadd.xlane.f32.xlu0 %v1357
      %v1359 = vpop.xlane.xlu0 %1358
      %v1360 = vrcp.pop 32.0
      %v1361 = vmul.f32 %v1359, %v1360
      %v1362 = vsub.f32 %v1356, %v1361
      %v1363 = vmul.f32 %v1362, %v1362
      %v1364 = vsel %vm429, %v1363, 0.0
      %1365 = vadd.xlane.f32.xlu0 %v1364
      %v1366 = vpop.xlane.xlu0 %1365
      %v1367 = vmul.f32 %v1366, %v1360
      %v1368 = vadd.f32 %v1367, 1e-05
      %v1369 = vrsqrt.pop %v1368
      %v1370 = vmul.f32 %v1362, %v1369
      %v1371 = vld [vmem:[%s8] sm:$0x1]
      %v1373 = vlaneseq
      %v1374 = vshrl.u32 %v1373, 7
      %v1375 = vsub.s32 0, %v1374
      %v1376 = vrot.slane %v1371, %v1375
      %v1378 = vmul.f32 %v1370, %v1376
      %v1379 = vld [vmem:[%s9] sm:$0x1]
      %v1381 = vlaneseq
      %v1382 = vshrl.u32 %v1381, 7
      %v1383 = vsub.s32 0, %v1382
      %v1384 = vrot.slane %v1379, %v1383
      %v1386 = vadd.f32 %v1378, %v1384
      %1387 = vst.msk [vmem:[%s415] sm:$0xff] %vm429, %v1386
      %p1388 = scmp.lt.s32.totalorder %s22, 1
      %s1389 = scalar_select %p1388, %s22, 1
      %s1390 = smul.addr %s1389, 8
      %s1391 = scalar_lea.vmem %s11, %s1390
      // Predicated region
      $region65: #{_lambda_.17} parent=63 // pred_check
        %p1392 = pneg %p286
      $region66: #{_lambda_.17} parent=63 // pred_check_branch
        %1394 = sbr.rel (%p1392) target = $region68
      $region67: #{_lambda_.17} parent=63 // pred_region
        _
      $region68: #{_lambda_.17} parent=63 // pred_fallthru
        _
    $region64: #{_lambda_.17} parent=5 // pred_fallthru
      _
    %p1395 = scmp.le.s32.totalorder 2, %s17
    // Predicated region
    $region69: #{_lambda_.17} parent=5 // pred_check
      %p1396 = pneg %p1395
    $region70: #{_lambda_.17} parent=5 // pred_check_branch
      %1398 = sbr.rel (%p1396) target = $region72
    $region71: #{_lambda_.17} parent=5 // pred_region
      %s1399 = ssub.s32 %s17, 2
      // Predicated region
      $region73: #{_lambda_.17} parent=71 // pred_check
        %p1400 = pneg %p292
      $region74: #{_lambda_.17} parent=71 // pred_check_branch
        %1402 = sbr.rel (%p1400) target = $region76
      $region75: #{_lambda_.17} parent=71 // pred_region
        %p1403 = scmp.lt.s32.totalorder %s23, 1
        %s1404 = scalar_select %p1403, %s23, 1
        %s1405 = smul.addr %s1404, 8
        %s1406 = scalar_lea.vmem %s11, %s1405
      $region76: #{_lambda_.17} parent=71 // pred_fallthru
        _
    $region72: #{_lambda_.17} parent=5 // pred_fallthru
      _
  $region6: #{_lambda_.17} parent=0 // loop_footer
    %s21 = sadd.s32 1, %s17
  $region7: #{_lambda_.17} parent=0 // loop_footer_branch
    %16 = sbr.rel target = $region3
  $region8: #{_lambda_.17} parent=0 // loop_exit
    _

// kernel: _lambda_.14
$region0: #{_lambda_.14}
  #allocation0 [shape = 'u32[]', space=smem, size = 0x4, offset = 0x4, fixed_abs, tag = 'smem constant byte address 0x4 - core index']
  #allocation1 [shape = 'u32[144,128]{1,0:T(1,128)}', space=vmem, size = 0x12000, scoped, tag = 'internal scratch']
  %s0 = inlined_call_operand.vmem [shape: f32[16,32], index: 0, kind: input, shape index: {}]
  %s1 = inlined_call_operand.vmem [shape: f32[32,128], index: 1, kind: input, shape index: {}]
  %s2 = inlined_call_operand.vmem [shape: f32[1,128], index: 2, kind: input, shape index: {}]
  %s3 = inlined_call_operand.vmem [shape: f32[128,32], index: 3, kind: input, shape index: {}]
  %s4 = inlined_call_operand.vmem [shape: f32[1,32], index: 4, kind: input, shape index: {}]
  %s5 = inlined_call_operand.vmem [shape: f32[1,32], index: 5, kind: input, shape index: {}]
  %s6 = inlined_call_operand.vmem [shape: f32[1,32], index: 6, kind: input, shape index: {}]
  %s7 = inlined_call_operand.vmem [shape: f32[16,32], index: 7, kind: output, shape index: {}]
  %s8 = sld [smem:[#allocation0]]
  $region38: #{_lambda_.14} parent=0
    _
  %s10 = ssub.s32 1, %s8
  %s11 = scalar_select 0, %s10, %s8
  // Predicated region
  $region2: #{_lambda_.14} parent=0 // pred_check
    _
  $region3: #{_lambda_.14} parent=0 // pred_check_branch
    %13 = sbr.rel (0) target = $region5
  $region4: #{_lambda_.14} parent=0 // pred_region
    _
  $region5: #{_lambda_.14} parent=0 // pred_fallthru
    _
  // Predicated region
  $region6: #{_lambda_.14} parent=0 // pred_check
    _
  $region7: #{_lambda_.14} parent=0 // pred_check_branch
    %15 = sbr.rel (0) target = $region9
  $region8: #{_lambda_.14} parent=0 // pred_region
    _
  $region9: #{_lambda_.14} parent=0 // pred_fallthru
    _
  // Predicated region
  $region10: #{_lambda_.14} parent=0 // pred_check
    _
  $region11: #{_lambda_.14} parent=0 // pred_check_branch
    %17 = sbr.rel (0) target = $region13
  $region12: #{_lambda_.14} parent=0 // pred_region
    _
  $region13: #{_lambda_.14} parent=0 // pred_fallthru
    _
  // Predicated region
  $region14: #{_lambda_.14} parent=0 // pred_check
    _
  $region15: #{_lambda_.14} parent=0 // pred_check_branch
    %19 = sbr.rel (0) target = $region17
  $region16: #{_lambda_.14} parent=0 // pred_region
    _
  $region17: #{_lambda_.14} parent=0 // pred_fallthru
    _
  // Predicated region
  $region18: #{_lambda_.14} parent=0 // pred_check
    _
  $region19: #{_lambda_.14} parent=0 // pred_check_branch
    %21 = sbr.rel (0) target = $region21
  $region20: #{_lambda_.14} parent=0 // pred_region
    _
  $region21: #{_lambda_.14} parent=0 // pred_fallthru
    _
  // Predicated region
  $region22: #{_lambda_.14} parent=0 // pred_check
    _
  $region23: #{_lambda_.14} parent=0 // pred_check_branch
    %23 = sbr.rel (0) target = $region25
  $region24: #{_lambda_.14} parent=0 // pred_region
    _
  $region25: #{_lambda_.14} parent=0 // pred_fallthru
    _
  // Predicated region
  $region26: #{_lambda_.14} parent=0 // pred_check
    _
  $region27: #{_lambda_.14} parent=0 // pred_check_branch
    %25 = sbr.rel (0) target = $region29
  $region28: #{_lambda_.14} parent=0 // pred_region
    _
  $region29: #{_lambda_.14} parent=0 // pred_fallthru
    _
  %v26 = vld [vmem:[%s0] sm:$0xff]
  %v27 = vld [vmem:[%s0 + $0x8] sm:$0xff]
  %v28 = vld [vmem:[%s1] sm:$0xff]
  %v29 = vld [vmem:[%s1 + $0x8] sm:$0xff]
  %v30 = vld [vmem:[%s1 + $0x10] sm:$0xff]
  %v31 = vld [vmem:[%s1 + $0x18] sm:$0xff]
  %v32 = vld [vmem:[%s2] sm:$0x1]
  %v34 = vlaneseq
  %v35 = vshrl.u32 %v34, 7
  %v36 = vsub.s32 0, %v35
  %v37 = vrot.slane %v32, %v36
  %vm39 = vcmask 261120
  %v41 = vsel %vm39, %v26, 0
  %v44 = vsel %vm39, %v27, 0
  %46 = vmatprep.subr.mxu0 0.0
  %47 = vmatpush1.msra.mxu0 %v28
  %48 = vmatprep.subr.mxu0 0.0
  %49 = vmatpush1.msra.mxu0 %v29
  %50 = vmatprep.subr.mxu0 0.0
  %51 = vmatpush1.msra.mxu0 %v30
  %52 = vmatprep.subr.mxu0 0.0
  %53 = vmatpush1.msra.mxu0 %v31
  %54 = vmatprep.subr.mxu0 0.0
  %55 = vmatpush1.msra.mxu0 0.0
  %56 = vmatprep.subr.mxu0 0.0
  %57 = vmatpush1.msra.mxu0 0.0
  %58 = vmatprep.subr.mxu0 0.0
  %59 = vmatpush1.msra.mxu0 0.0
  %60 = vmatprep.subr.mxu0 0.0
  %61 = vmatpush1.msra.mxu0 0.0
  %62 = vmatprep.subr.mxu0 0.0
  %63 = vmatpush1.msra.mxu0 0.0
  %64 = vmatprep.subr.mxu0 0.0
  %65 = vmatpush1.msra.mxu0 0.0
  %66 = vmatprep.subr.mxu0 0.0
  %67 = vmatpush1.msra.mxu0 0.0
  %68 = vmatprep.subr.mxu0 0.0
  %69 = vmatpush1.msra.mxu0 0.0
  %70 = vmatprep.subr.mxu0 0.0
  %71 = vmatpush1.msra.mxu0 0.0
  %72 = vmatprep.subr.mxu0 0.0
  %73 = vmatpush1.msra.mxu0 0.0
  %74 = vmatprep.subr.mxu0 0.0
  %75 = vmatpush1.msra.mxu0 0.0
  %76 = vmatprep.subr.mxu0 0.0
  %77 = vmatpush1.msra.mxu0 0.0
  %78 = vmatprep.subr.mxu0 0.0
  %79 = vmatpush1.msra.mxu0 0.0
  %80 = vmatprep.subr.mxu0 0.0
  %81 = vmatpush1.msra.mxu0 0.0
  %82 = vmatprep.subr.mxu0 0.0
  %83 = vmatpush1.msra.mxu0 0.0
  %84 = vmatprep.subr.mxu0 0.0
  %85 = vmatpush1.msra.mxu0 0.0
  %86 = vmatprep.subr.mxu0 0.0
  %87 = vmatpush1.msra.mxu0 0.0
  %88 = vmatprep.subr.mxu0 0.0
  %89 = vmatpush1.msra.mxu0 0.0
  %90 = vmatprep.subr.mxu0 0.0
  %91 = vmatpush1.msra.mxu0 0.0
  %92 = vmatprep.subr.mxu0 0.0
  %93 = vmatpush1.msra.mxu0 0.0
  %94 = vmatprep.subr.mxu0 0.0
  %95 = vmatpush1.msra.mxu0 0.0
  %96 = vmatprep.subr.mxu0 0.0
  %97 = vmatpush1.msra.mxu0 0.0
  %98 = vmatprep.subr.mxu0 0.0
  %99 = vmatpush1.msra.mxu0 0.0
  %100 = vmatprep.subr.mxu0 0.0
  %101 = vmatpush1.msra.mxu0 0.0
  %102 = vmatprep.subr.mxu0 0.0
  %103 = vmatpush1.msra.mxu0 0.0
  %104 = vmatprep.subr.mxu0 0.0
  %105 = vmatpush1.msra.mxu0 0.0
  %106 = vmatprep.subr.mxu0 0.0
  %107 = vmatpush1.msra.mxu0 0.0
  %108 = vmatprep.subr.mxu0 0.0
  %109 = vmatpush1.msra.mxu0 0.0
  %110 = vmatprep.mubr.f32.mxu0 0.0
  %111 = vmatmul.mubr.f32.gmra.mrb[0].mxu0 %v41
  %v112 = vpop.f32.mrb[0].mxu0
  %v113 = vadd.f32 %v37, %v112
  %v114 = vpop.f32.mrb[0].mxu0
  %115 = vmatprep.mubr.f32.mxu0 0.0
  %116 = vmatmul.mubr.f32.gmra.mrb[0].mxu0 %v44
  %v117 = vpop.f32.mrb[0].mxu0
  %v118 = vadd.f32 %v37, %v117
  %v119 = vpop.f32.mrb[0].mxu0
  %120 = vdwg.mxu0
  %v121 = vmax.f32 %v113, 0.0
  %v122 = vmax.f32 %v118, 0.0
  %v123 = vld [vmem:[%s3] sm:$0xff]
  %v124 = vld [vmem:[%s3 + $0x8] sm:$0xff]
  %v125 = vld [vmem:[%s3 + $0x10] sm:$0xff]
  %v126 = vld [vmem:[%s3 + $0x18] sm:$0xff]
  %v127 = vld [vmem:[%s3 + $0x20] sm:$0xff]
  %v128 = vld [vmem:[%s3 + $0x28] sm:$0xff]
  %v129 = vld [vmem:[%s3 + $0x30] sm:$0xff]
  %v130 = vld [vmem:[%s3 + $0x38] sm:$0xff]
  %v131 = vld [vmem:[%s3 + $0x40] sm:$0xff]
  %v132 = vld [vmem:[%s3 + $0x48] sm:$0xff]
  %v133 = vld [vmem:[%s3 + $0x50] sm:$0xff]
  %v134 = vld [vmem:[%s3 + $0x58] sm:$0xff]
  %v135 = vld [vmem:[%s3 + $0x60] sm:$0xff]
  %v136 = vld [vmem:[%s3 + $0x68] sm:$0xff]
  %v137 = vld [vmem:[%s3 + $0x70] sm:$0xff]
  %v138 = vld [vmem:[%s3 + $0x78] sm:$0xff]
  %v139 = vld [vmem:[%s4] sm:$0x1]
  %v141 = vlaneseq
  %v142 = vshrl.u32 %v141, 7
  %v143 = vsub.s32 0, %v142
  %v144 = vrot.slane %v139, %v143
  %146 = vmatprep.subr.mxu0 0.0
  %147 = vmatpush1.msra.mxu0 %v123
  %148 = vmatprep.subr.mxu0 0.0
  %149 = vmatpush1.msra.mxu0 %v124
  %150 = vmatprep.subr.mxu0 0.0
  %151 = vmatpush1.msra.mxu0 %v125
  %152 = vmatprep.subr.mxu0 0.0
  %153 = vmatpush1.msra.mxu0 %v126
  %154 = vmatprep.subr.mxu0 0.0
  %155 = vmatpush1.msra.mxu0 %v127
  %156 = vmatprep.subr.mxu0 0.0
  %157 = vmatpush1.msra.mxu0 %v128
  %158 = vmatprep.subr.mxu0 0.0
  %159 = vmatpush1.msra.mxu0 %v129
  %160 = vmatprep.subr.mxu0 0.0
  %161 = vmatpush1.msra.mxu0 %v130
  %162 = vmatprep.subr.mxu0 0.0
  %163 = vmatpush1.msra.mxu0 %v131
  %164 = vmatprep.subr.mxu0 0.0
  %165 = vmatpush1.msra.mxu0 %v132
  %166 = vmatprep.subr.mxu0 0.0
  %167 = vmatpush1.msra.mxu0 %v133
  %168 = vmatprep.subr.mxu0 0.0
  %169 = vmatpush1.msra.mxu0 %v134
  %170 = vmatprep.subr.mxu0 0.0
  %171 = vmatpush1.msra.mxu0 %v135
  %172 = vmatprep.subr.mxu0 0.0
  %173 = vmatpush1.msra.mxu0 %v136
  %174 = vmatprep.subr.mxu0 0.0
  %175 = vmatpush1.msra.mxu0 %v137
  %176 = vmatprep.subr.mxu0 0.0
  %177 = vmatpush1.msra.mxu0 %v138
  %178 = vmatprep.subr.mxu0 0.0
  %179 = vmatpush1.msra.mxu0 0.0
  %180 = vmatprep.subr.mxu0 0.0
  %181 = vmatpush1.msra.mxu0 0.0
  %182 = vmatprep.subr.mxu0 0.0
  %183 = vmatpush1.msra.mxu0 0.0
  %184 = vmatprep.subr.mxu0 0.0
  %185 = vmatpush1.msra.mxu0 0.0
  %186 = vmatprep.subr.mxu0 0.0
  %187 = vmatpush1.msra.mxu0 0.0
  %188 = vmatprep.subr.mxu0 0.0
  %189 = vmatpush1.msra.mxu0 0.0
  %190 = vmatprep.subr.mxu0 0.0
  %191 = vmatpush1.msra.mxu0 0.0
  %192 = vmatprep.subr.mxu0 0.0
  %193 = vmatpush1.msra.mxu0 0.0
  %194 = vmatprep.subr.mxu0 0.0
  %195 = vmatpush1.msra.mxu0 0.0
  %196 = vmatprep.subr.mxu0 0.0
  %197 = vmatpush1.msra.mxu0 0.0
  %198 = vmatprep.subr.mxu0 0.0
  %199 = vmatpush1.msra.mxu0 0.0
  %200 = vmatprep.subr.mxu0 0.0
  %201 = vmatpush1.msra.mxu0 0.0
  %202 = vmatprep.subr.mxu0 0.0
  %203 = vmatpush1.msra.mxu0 0.0
  %204 = vmatprep.subr.mxu0 0.0
  %205 = vmatpush1.msra.mxu0 0.0
  %206 = vmatprep.subr.mxu0 0.0
  %207 = vmatpush1.msra.mxu0 0.0
  %208 = vmatprep.subr.mxu0 0.0
  %209 = vmatpush1.msra.mxu0 0.0
  %210 = vmatprep.mubr.f32.mxu0 0.0
  %211 = vmatmul.mubr.f32.gmra.mrb[0].mxu0 %v121
  %v212 = vpop.f32.mrb[0].mxu0
  %v213 = vadd.f32 %v144, %v212
  %v214 = vpop.f32.mrb[0].mxu0
  %215 = vmatprep.mubr.f32.mxu0 0.0
  %216 = vmatmul.mubr.f32.gmra.mrb[0].mxu0 %v122
  %v217 = vpop.f32.mrb[0].mxu0
  %v218 = vadd.f32 %v144, %v217
  %v219 = vpop.f32.mrb[0].mxu0
  %220 = vdwg.mxu0
  %v221 = vadd.f32 %v26, %v213
  %v222 = vadd.f32 %v27, %v218
  %v223 = vsel %vm39, %v221, 0.0
  %224 = vadd.xlane.f32.xlu0 %v223
  %v225 = vpop.xlane.xlu0 %224
  %v226 = vsel %vm39, %v222, 0.0
  %227 = vadd.xlane.f32.xlu0 %v226
  %v228 = vpop.xlane.xlu0 %227
  %v229 = vrcp.pop 32.0
  %v230 = vmul.f32 %v225, %v229
  %v231 = vmul.f32 %v228, %v229
  %v232 = vsub.f32 %v221, %v230
  %v233 = vsub.f32 %v222, %v231
  %v234 = vmul.f32 %v232, %v232
  %v235 = vmul.f32 %v233, %v233
  %v236 = vsel %vm39, %v234, 0.0
  %237 = vadd.xlane.f32.xlu0 %v236
  %v238 = vpop.xlane.xlu0 %237
  %v239 = vsel %vm39, %v235, 0.0
  %240 = vadd.xlane.f32.xlu0 %v239
  %v241 = vpop.xlane.xlu0 %240
  %v242 = vmul.f32 %v238, %v229
  %v243 = vmul.f32 %v241, %v229
  %v244 = vadd.f32 %v242, 1e-05
  %v245 = vadd.f32 %v243, 1e-05
  %v246 = vrsqrt.pop %v244
  %v247 = vrsqrt.pop %v245
  %v248 = vmul.f32 %v232, %v246
  %v249 = vmul.f32 %v233, %v247
  %v250 = vld [vmem:[%s5] sm:$0x1]
  %v252 = vlaneseq
  %v253 = vshrl.u32 %v252, 7
  %v254 = vsub.s32 0, %v253
  %v255 = vrot.slane %v250, %v254
  %v257 = vmul.f32 %v248, %v255
  %v258 = vmul.f32 %v249, %v255
  %v259 = vld [vmem:[%s6] sm:$0x1]
  %v261 = vlaneseq
  %v262 = vshrl.u32 %v261, 7
  %v263 = vsub.s32 0, %v262
  %v264 = vrot.slane %v259, %v263
  %v266 = vadd.f32 %v257, %v264
  %v267 = vadd.f32 %v258, %v264
  %268 = vst.msk [vmem:[%s7] sm:$0xff] %vm39, %v266
  %269 = vst.msk [vmem:[%s7 + $0x8] sm:$0xff] %vm39, %v267
  // Predicated region
  $region30: #{_lambda_.14} parent=0 // pred_check
    _
  $region31: #{_lambda_.14} parent=0 // pred_check_branch
    %271 = sbr.rel (0) target = $region33
  $region32: #{_lambda_.14} parent=0 // pred_region
    _
  $region33: #{_lambda_.14} parent=0 // pred_fallthru
    _
  // Predicated region
  $region34: #{_lambda_.14} parent=0 // pred_check
    _
  $region35: #{_lambda_.14} parent=0 // pred_check_branch
    %273 = sbr.rel (0) target = $region37
  $region36: #{_lambda_.14} parent=0 // pred_region
    _
  $region37: #{_lambda_.14} parent=0 // pred_fallthru
    _

// kernel: _lambda_.13
$region0: #{_lambda_.13}
  #allocation0 [shape = 'u32[]', space=smem, size = 0x4, offset = 0x4, fixed_abs, tag = 'smem constant byte address 0x4 - core index']
  #allocation1 [shape = 'u32[144,128]{1,0:T(1,128)}', space=vmem, size = 0x12000, scoped, tag = 'internal scratch']
  %s0 = inlined_call_operand.vmem [shape: f32[2,8,32], index: 0, kind: input, shape index: {}, may-alias: {0,1}]
  %s1 = inlined_call_operand.vmem [shape: f32[2,8,32], index: 1, kind: input, shape index: {}, may-alias: {0,1}]
  %s2 = inlined_call_operand.vmem [shape: f32[32,32], index: 2, kind: input, shape index: {}]
  %s3 = inlined_call_operand.vmem [shape: f32[1,32], index: 3, kind: input, shape index: {}]
  %s4 = inlined_call_operand.vmem [shape: f32[32,64], index: 4, kind: input, shape index: {}]
  %s5 = inlined_call_operand.vmem [shape: f32[1,64], index: 5, kind: input, shape index: {}]
  %s6 = inlined_call_operand.vmem [shape: f32[32,32], index: 6, kind: input, shape index: {}]
  %s7 = inlined_call_operand.vmem [shape: f32[1,32], index: 7, kind: input, shape index: {}]
  %s8 = inlined_call_operand.vmem [shape: f32[1,32], index: 8, kind: input, shape index: {}]
  %s9 = inlined_call_operand.vmem [shape: f32[1,32], index: 9, kind: input, shape index: {}]
  %s10 = inlined_call_operand.vmem [shape: f32[2,8,32], index: 10, kind: output, shape index: {}]
  %s11 = sld [smem:[#allocation0]]
  $region73: #{_lambda_.13} parent=0
    _
  %s13 = ssub.s32 1, %s11
  %s14 = scalar_select 0, %s13, %s11
  loop: start=0, step=1, limit=4
  $region2: #{_lambda_.13} parent=0 // loop_pre_header
    _
  $region3: #{_lambda_.13} parent=0 // loop_header
    %s16 = sphi 0, %s20
    %p17 = scmp.ge.s32.totalorder %s16, 4
    %s26 = sphi 0, %s28
    %s29 = sphi 0, %s26
    %s30 = sphi 0, %s29
    %s46 = sphi 0, %s30
    %s52 = sphi 0, %s54
    %s55 = sphi 0, %s52
    %s56 = sphi 0, %s55
    %s72 = sphi 0, %s56
    %s76 = sphi 0, %s76
    %s78 = sphi 0, %s76
    %s79 = sphi 0, %s78
    %s93 = sphi 0, %s79
    %s97 = sphi 0, %s97
    %s99 = sphi 0, %s97
    %s100 = sphi 0, %s99
    %s114 = sphi 0, %s100
    %s118 = sphi 0, %s118
    %s120 = sphi 0, %s118
    %s121 = sphi 0, %s120
    %s135 = sphi 0, %s121
    %s139 = sphi 0, %s139
    %s141 = sphi 0, %s139
    %s142 = sphi 0, %s141
    %s156 = sphi 0, %s142
    %s160 = sphi 0, %s160
    %s162 = sphi 0, %s160
    %s163 = sphi 0, %s162
    %s177 = sphi 0, %s163
    %s181 = sphi 0, %s181
    %s183 = sphi 0, %s181
    %s184 = sphi 0, %s183
    %s198 = sphi 0, %s184
    %s202 = sphi 0, %s202
    %s204 = sphi 0, %s202
    %s205 = sphi 0, %s204
    %s219 = sphi 0, %s205
    %s223 = sphi 0, %s223
    %s225 = sphi 0, %s223
    %s226 = sphi 0, %s225
    %s240 = sphi 0, %s226
    %s246 = sphi 0, %s248
    %s249 = sphi 0, %s246
    %s250 = sphi 0, %s249
    %s266 = sphi 0, %s250
  $region4: #{_lambda_.13} parent=0 // loop_header_branch
    %19 = sbr.rel (%p17) target = $region8
  $region5: #{_lambda_.13} parent=0 // loop_body
    %s21 = ssub.s32 %s16, 1
    %s22 = ssub.s32 %s16, 2
    %s23 = sadd.s32 %s16, 1
    %s24 = ssub.s32 %s16, %s23
    %p25 = scmp.eq.s32.totalorder %s24, 0
    %s27 = sadd.s32 %s26, 1
    %s28 = scalar_select %p25, %s26, %s27
    %p31 = pneg %p25
    %p32 = scmp.eq.s32.totalorder %s16, 1
    %p33 = por %p31, %p32
    %p34 = scmp.ne.s32.totalorder %s26, %s29
    %p35 = scmp.eq.s32.totalorder %s16, 0
    %p36 = por %p34, %p35
    %p37 = scmp.ne.s32.totalorder %s26, %s29
    %p38 = scmp.eq.s32.totalorder %s21, 1
    %p39 = por %p37, %p38
    %p40 = scmp.ne.s32.totalorder %s29, %s30
    %p41 = scmp.eq.s32.totalorder %s21, 0
    %p42 = por %p40, %p41
    %p43 = scmp.ne.s32.totalorder %s29, %s30
    %p44 = scmp.eq.s32.totalorder %s22, 1
    %p45 = por %p43, %p44
    %p47 = scmp.ne.s32.totalorder %s30, %s46
    %p48 = scmp.eq.s32.totalorder %s22, 0
    %p49 = por %p47, %p48
    %s50 = ssub.s32 %s16, %s23
    %p51 = scmp.eq.s32.totalorder %s50, 0
    %s53 = sadd.s32 %s52, 1
    %s54 = scalar_select %p51, %s52, %s53
    %p57 = pneg %p51
    %p58 = scmp.eq.s32.totalorder %s16, 1
    %p59 = por %p57, %p58
    %p60 = scmp.ne.s32.totalorder %s52, %s55
    %p61 = scmp.eq.s32.totalorder %s16, 0
    %p62 = por %p60, %p61
    %p63 = scmp.ne.s32.totalorder %s52, %s55
    %p64 = scmp.eq.s32.totalorder %s21, 1
    %p65 = por %p63, %p64
    %p66 = scmp.ne.s32.totalorder %s55, %s56
    %p67 = scmp.eq.s32.totalorder %s21, 0
    %p68 = por %p66, %p67
    %p69 = scmp.ne.s32.totalorder %s55, %s56
    %p70 = scmp.eq.s32.totalorder %s22, 1
    %p71 = por %p69, %p70
    %p73 = scmp.ne.s32.totalorder %s56, %s72
    %p74 = scmp.eq.s32.totalorder %s22, 0
    %p75 = por %p73, %p74
    %s77 = sadd.s32 %s76, 1
    %p80 = scmp.eq.s32.totalorder %s16, 1
    %p81 = scmp.ne.s32.totalorder %s76, %s78
    %p82 = scmp.eq.s32.totalorder %s16, 0
    %p83 = por %p81, %p82
    %p84 = scmp.ne.s32.totalorder %s76, %s78
    %p85 = scmp.eq.s32.totalorder %s21, 1
    %p86 = por %p84, %p85
    %p87 = scmp.ne.s32.totalorder %s78, %s79
    %p88 = scmp.eq.s32.totalorder %s21, 0
    %p89 = por %p87, %p88
    %p90 = scmp.ne.s32.totalorder %s78, %s79
    %p91 = scmp.eq.s32.totalorder %s22, 1
    %p92 = por %p90, %p91
    %p94 = scmp.ne.s32.totalorder %s79, %s93
    %p95 = scmp.eq.s32.totalorder %s22, 0
    %p96 = por %p94, %p95
    %s98 = sadd.s32 %s97, 1
    %p101 = scmp.eq.s32.totalorder %s16, 1
    %p102 = scmp.ne.s32.totalorder %s97, %s99
    %p103 = scmp.eq.s32.totalorder %s16, 0
    %p104 = por %p102, %p103
    %p105 = scmp.ne.s32.totalorder %s97, %s99
    %p106 = scmp.eq.s32.totalorder %s21, 1
    %p107 = por %p105, %p106
    %p108 = scmp.ne.s32.totalorder %s99, %s100
    %p109 = scmp.eq.s32.totalorder %s21, 0
    %p110 = por %p108, %p109
    %p111 = scmp.ne.s32.totalorder %s99, %s100
    %p112 = scmp.eq.s32.totalorder %s22, 1
    %p113 = por %p111, %p112
    %p115 = scmp.ne.s32.totalorder %s100, %s114
    %p116 = scmp.eq.s32.totalorder %s22, 0
    %p117 = por %p115, %p116
    %s119 = sadd.s32 %s118, 1
    %p122 = scmp.eq.s32.totalorder %s16, 1
    %p123 = scmp.ne.s32.totalorder %s118, %s120
    %p124 = scmp.eq.s32.totalorder %s16, 0
    %p125 = por %p123, %p124
    %p126 = scmp.ne.s32.totalorder %s118, %s120
    %p127 = scmp.eq.s32.totalorder %s21, 1
    %p128 = por %p126, %p127
    %p129 = scmp.ne.s32.totalorder %s120, %s121
    %p130 = scmp.eq.s32.totalorder %s21, 0
    %p131 = por %p129, %p130
    %p132 = scmp.ne.s32.totalorder %s120, %s121
    %p133 = scmp.eq.s32.totalorder %s22, 1
    %p134 = por %p132, %p133
    %p136 = scmp.ne.s32.totalorder %s121, %s135
    %p137 = scmp.eq.s32.totalorder %s22, 0
    %p138 = por %p136, %p137
    %s140 = sadd.s32 %s139, 1
    %p143 = scmp.eq.s32.totalorder %s16, 1
    %p144 = scmp.ne.s32.totalorder %s139, %s141
    %p145 = scmp.eq.s32.totalorder %s16, 0
    %p146 = por %p144, %p145
    %p147 = scmp.ne.s32.totalorder %s139, %s141
    %p148 = scmp.eq.s32.totalorder %s21, 1
    %p149 = por %p147, %p148
    %p150 = scmp.ne.s32.totalorder %s141, %s142
    %p151 = scmp.eq.s32.totalorder %s21, 0
    %p152 = por %p150, %p151
    %p153 = scmp.ne.s32.totalorder %s141, %s142
    %p154 = scmp.eq.s32.totalorder %s22, 1
    %p155 = por %p153, %p154
    %p157 = scmp.ne.s32.totalorder %s142, %s156
    %p158 = scmp.eq.s32.totalorder %s22, 0
    %p159 = por %p157, %p158
    %s161 = sadd.s32 %s160, 1
    %p164 = scmp.eq.s32.totalorder %s16, 1
    %p165 = scmp.ne.s32.totalorder %s160, %s162
    %p166 = scmp.eq.s32.totalorder %s16, 0
    %p167 = por %p165, %p166
    %p168 = scmp.ne.s32.totalorder %s160, %s162
    %p169 = scmp.eq.s32.totalorder %s21, 1
    %p170 = por %p168, %p169
    %p171 = scmp.ne.s32.totalorder %s162, %s163
    %p172 = scmp.eq.s32.totalorder %s21, 0
    %p173 = por %p171, %p172
    %p174 = scmp.ne.s32.totalorder %s162, %s163
    %p175 = scmp.eq.s32.totalorder %s22, 1
    %p176 = por %p174, %p175
    %p178 = scmp.ne.s32.totalorder %s163, %s177
    %p179 = scmp.eq.s32.totalorder %s22, 0
    %p180 = por %p178, %p179
    %s182 = sadd.s32 %s181, 1
    %p185 = scmp.eq.s32.totalorder %s16, 1
    %p186 = scmp.ne.s32.totalorder %s181, %s183
    %p187 = scmp.eq.s32.totalorder %s16, 0
    %p188 = por %p186, %p187
    %p189 = scmp.ne.s32.totalorder %s181, %s183
    %p190 = scmp.eq.s32.totalorder %s21, 1
    %p191 = por %p189, %p190
    %p192 = scmp.ne.s32.totalorder %s183, %s184
    %p193 = scmp.eq.s32.totalorder %s21, 0
    %p194 = por %p192, %p193
    %p195 = scmp.ne.s32.totalorder %s183, %s184
    %p196 = scmp.eq.s32.totalorder %s22, 1
    %p197 = por %p195, %p196
    %p199 = scmp.ne.s32.totalorder %s184, %s198
    %p200 = scmp.eq.s32.totalorder %s22, 0
    %p201 = por %p199, %p200
    %s203 = sadd.s32 %s202, 1
    %p206 = scmp.eq.s32.totalorder %s16, 1
    %p207 = scmp.ne.s32.totalorder %s202, %s204
    %p208 = scmp.eq.s32.totalorder %s16, 0
    %p209 = por %p207, %p208
    %p210 = scmp.ne.s32.totalorder %s202, %s204
    %p211 = scmp.eq.s32.totalorder %s21, 1
    %p212 = por %p210, %p211
    %p213 = scmp.ne.s32.totalorder %s204, %s205
    %p214 = scmp.eq.s32.totalorder %s21, 0
    %p215 = por %p213, %p214
    %p216 = scmp.ne.s32.totalorder %s204, %s205
    %p217 = scmp.eq.s32.totalorder %s22, 1
    %p218 = por %p216, %p217
    %p220 = scmp.ne.s32.totalorder %s205, %s219
    %p221 = scmp.eq.s32.totalorder %s22, 0
    %p222 = por %p220, %p221
    %s224 = sadd.s32 %s223, 1
    %p227 = scmp.eq.s32.totalorder %s16, 1
    %p228 = scmp.ne.s32.totalorder %s223, %s225
    %p229 = scmp.eq.s32.totalorder %s16, 0
    %p230 = por %p228, %p229
    %p231 = scmp.ne.s32.totalorder %s223, %s225
    %p232 = scmp.eq.s32.totalorder %s21, 1
    %p233 = por %p231, %p232
    %p234 = scmp.ne.s32.totalorder %s225, %s226
    %p235 = scmp.eq.s32.totalorder %s21, 0
    %p236 = por %p234, %p235
    %p237 = scmp.ne.s32.totalorder %s225, %s226
    %p238 = scmp.eq.s32.totalorder %s22, 1
    %p239 = por %p237, %p238
    %p241 = scmp.ne.s32.totalorder %s226, %s240
    %p242 = scmp.eq.s32.totalorder %s22, 0
    %p243 = por %p241, %p242
    %s244 = ssub.s32 %s16, %s23
    %p245 = scmp.eq.s32.totalorder %s244, 0
    %s247 = sadd.s32 %s246, 1
    %s248 = scalar_select %p245, %s246, %s247
    %p251 = pneg %p245
    %p252 = scmp.eq.s32.totalorder %s16, 1
    %p253 = por %p251, %p252
    %p254 = scmp.ne.s32.totalorder %s246, %s249
    %p255 = scmp.eq.s32.totalorder %s16, 0
    %p256 = por %p254, %p255
    %p257 = scmp.ne.s32.totalorder %s246, %s249
    %p258 = scmp.eq.s32.totalorder %s21, 1
    %p259 = por %p257, %p258
    %p260 = scmp.ne.s32.totalorder %s249, %s250
    %p261 = scmp.eq.s32.totalorder %s21, 0
    %p262 = por %p260, %p261
    %p263 = scmp.ne.s32.totalorder %s249, %s250
    %p264 = scmp.eq.s32.totalorder %s22, 1
    %p265 = por %p263, %p264
    %p267 = scmp.ne.s32.totalorder %s250, %s266
    %p268 = scmp.eq.s32.totalorder %s22, 0
    %p269 = por %p267, %p268
    %p270 = scmp.le.s32.totalorder 1, %s16
    %p271 = scmp.lt.s32.totalorder %s16, 3
    %p272 = pnand %p270, %p271
    %p273 = pneg %p272
    // Predicated region
    $region9: #{_lambda_.13} parent=5 // pred_check
      _
    $region10: #{_lambda_.13} parent=5 // pred_check_branch
      %275 = sbr.rel (%p272) target = $region12
    $region11: #{_lambda_.13} parent=5 // pred_region
      %s276 = ssub.s32 %s16, 1
      // Predicated region
      $region13: #{_lambda_.13} parent=11 // pred_check
        %p277 = pneg %p89
      $region14: #{_lambda_.13} parent=11 // pred_check_branch
        %279 = sbr.rel (%p277) target = $region16
      $region15: #{_lambda_.13} parent=11 // pred_region
        _
      $region16: #{_lambda_.13} parent=11 // pred_fallthru
        _
      // Predicated region
      $region17: #{_lambda_.13} parent=11 // pred_check
        %p280 = pneg %p110
      $region18: #{_lambda_.13} parent=11 // pred_check_branch
        %282 = sbr.rel (%p280) target = $region20
      $region19: #{_lambda_.13} parent=11 // pred_region
        _
      $region20: #{_lambda_.13} parent=11 // pred_fallthru
        _
      // Predicated region
      $region21: #{_lambda_.13} parent=11 // pred_check
        %p283 = pneg %p131
      $region22: #{_lambda_.13} parent=11 // pred_check_branch
        %285 = sbr.rel (%p283) target = $region24
      $region23: #{_lambda_.13} parent=11 // pred_region
        _
      $region24: #{_lambda_.13} parent=11 // pred_fallthru
        _
      // Predicated region
      $region25: #{_lambda_.13} parent=11 // pred_check
        %p286 = pneg %p152
      $region26: #{_lambda_.13} parent=11 // pred_check_branch
        %288 = sbr.rel (%p286) target = $region28
      $region27: #{_lambda_.13} parent=11 // pred_region
        _
      $region28: #{_lambda_.13} parent=11 // pred_fallthru
        _
      // Predicated region
      $region29: #{_lambda_.13} parent=11 // pred_check
        %p289 = pneg %p173
      $region30: #{_lambda_.13} parent=11 // pred_check_branch
        %291 = sbr.rel (%p289) target = $region32
      $region31: #{_lambda_.13} parent=11 // pred_region
        _
      $region32: #{_lambda_.13} parent=11 // pred_fallthru
        _
      // Predicated region
      $region33: #{_lambda_.13} parent=11 // pred_check
        %p292 = pneg %p194
      $region34: #{_lambda_.13} parent=11 // pred_check_branch
        %294 = sbr.rel (%p292) target = $region36
      $region35: #{_lambda_.13} parent=11 // pred_region
        _
      $region36: #{_lambda_.13} parent=11 // pred_fallthru
        _
      // Predicated region
      $region37: #{_lambda_.13} parent=11 // pred_check
        %p295 = pneg %p215
      $region38: #{_lambda_.13} parent=11 // pred_check_branch
        %297 = sbr.rel (%p295) target = $region40
      $region39: #{_lambda_.13} parent=11 // pred_region
        _
      $region40: #{_lambda_.13} parent=11 // pred_fallthru
        _
      // Predicated region
      $region41: #{_lambda_.13} parent=11 // pred_check
        %p298 = pneg %p236
      $region42: #{_lambda_.13} parent=11 // pred_check_branch
        %300 = sbr.rel (%p298) target = $region44
      $region43: #{_lambda_.13} parent=11 // pred_region
        _
      $region44: #{_lambda_.13} parent=11 // pred_fallthru
        _
    $region12: #{_lambda_.13} parent=5 // pred_fallthru
      _
    %p301 = scmp.lt.s32.totalorder %s16, 2
    // Predicated region
    $region45: #{_lambda_.13} parent=5 // pred_check
      %p302 = pneg %p301
    $region46: #{_lambda_.13} parent=5 // pred_check_branch
      %304 = sbr.rel (%p302) target = $region48
    $region47: #{_lambda_.13} parent=5 // pred_region
      // Predicated region
      $region49: #{_lambda_.13} parent=47 // pred_check
        %p305 = pneg %p36
      $region50: #{_lambda_.13} parent=47 // pred_check_branch
        %307 = sbr.rel (%p305) target = $region52
      $region51: #{_lambda_.13} parent=47 // pred_region
        %p308 = scmp.lt.s32.totalorder %s16, 1
        %s309 = scalar_select %p308, %s16, 1
        %s310 = smul.addr %s309, 8
        %s311 = scalar_lea.vmem %s0, %s310
      $region52: #{_lambda_.13} parent=47 // pred_fallthru
        _
      // Predicated region
      $region53: #{_lambda_.13} parent=47 // pred_check
        %p312 = pneg %p62
      $region54: #{_lambda_.13} parent=47 // pred_check_branch
        %314 = sbr.rel (%p312) target = $region56
      $region55: #{_lambda_.13} parent=47 // pred_region
        %p315 = scmp.lt.s32.totalorder %s16, 1
        %s316 = scalar_select %p315, %s16, 1
        %s317 = smul.addr %s316, 8
        %s318 = scalar_lea.vmem %s1, %s317
      $region56: #{_lambda_.13} parent=47 // pred_fallthru
        _
    $region48: #{_lambda_.13} parent=5 // pred_fallthru
      _
    %p319 = scmp.le.s32.totalorder 1, %s16
    %p320 = scmp.lt.s32.totalorder %s16, 3
    %p321 = pnand %p319, %p320
    %p322 = pneg %p321
    // Predicated region
    $region57: #{_lambda_.13} parent=5 // pred_check
      _
    $region58: #{_lambda_.13} parent=5 // pred_check_branch
      %324 = sbr.rel (%p321) target = $region60
    $region59: #{_lambda_.13} parent=5 // pred_region
      %s325 = ssub.s32 %s16, 1
      %p326 = scmp.lt.s32.totalorder %s21, 1
      %s327 = scalar_select %p326, %s21, 1
      %s328 = smul.addr %s327, 8
      %s329 = scalar_lea.vmem %s0, %s328
      %p330 = pneg %p42
      %p331 = pneg %p39
      %p332 = scmp.lt.s32.totalorder %s21, 1
      %s333 = scalar_select %p332, %s21, 1
      %s334 = smul.addr %s333, 8
      %s335 = scalar_lea.vmem %s1, %s334
      %p336 = pneg %p68
      %p337 = pneg %p65
      %p338 = pneg %p89
      %p339 = pneg %p86
      %p340 = pneg %p110
      %p341 = pneg %p107
      %p342 = pneg %p131
      %p343 = pneg %p128
      %p344 = pneg %p152
      %p345 = pneg %p149
      %p346 = pneg %p173
      %p347 = pneg %p170
      %p348 = pneg %p194
      %p349 = pneg %p191
      %p350 = pneg %p215
      %p351 = pneg %p212
      %p352 = pneg %p236
      %p353 = pneg %p233
      %p354 = pneg %p262
      %p355 = pneg %p259
      %p356 = scmp.lt.s32.totalorder %s21, 1
      %s357 = scalar_select %p356, %s21, 1
      %s358 = smul.addr %s357, 8
      %s359 = scalar_lea.vmem %s10, %s358
      %p360 = scmp.lt.s32.totalorder %s21, 1
      %s361 = scalar_select %p360, %s21, 1
      %s362 = smul.addr %s361, 8
      %s363 = scalar_lea.vmem %s0, %s362
      %p364 = scmp.lt.s32.totalorder %s21, 1
      %s365 = scalar_select %p364, %s21, 1
      %s366 = smul.addr %s365, 8
      %s367 = scalar_lea.vmem %s1, %s366
      %p368 = scmp.lt.s32.totalorder %s21, 1
      %s369 = scalar_select %p368, %s21, 1
      %s370 = smul.addr %s369, 8
      %s371 = scalar_lea.vmem %s10, %s370
      %v372 = vld [vmem:[%s363] sm:$0xff]
      %v373 = vld [vmem:[%s367] sm:$0xff]
      %v374 = vld [vmem:[%s2] sm:$0xff]
      %v375 = vld [vmem:[%s2 + $0x8] sm:$0xff]
      %v376 = vld [vmem:[%s2 + $0x10] sm:$0xff]
      %v377 = vld [vmem:[%s2 + $0x18] sm:$0xff]
      %v378 = vld [vmem:[%s3] sm:$0x1]
      %v380 = vlaneseq
      %v381 = vshrl.u32 %v380, 7
      %v382 = vsub.s32 0, %v381
      %v383 = vrot.slane %v378, %v382
      %vm385 = vcmask 261120
      %v387 = vsel %vm385, %v372, 0
      %389 = vmatprep.subr.mxu0 0.0
      %390 = vmatpush1.msra.mxu0 %v374
      %391 = vmatprep.subr.mxu0 0.0
      %392 = vmatpush1.msra.mxu0 %v375
      %393 = vmatprep.subr.mxu0 0.0
      %394 = vmatpush1.msra.mxu0 %v376
      %395 = vmatprep.subr.mxu0 0.0
      %396 = vmatpush1.msra.mxu0 %v377
      %397 = vmatprep.subr.mxu0 0.0
      %398 = vmatpush1.msra.mxu0 0.0
      %399 = vmatprep.subr.mxu0 0.0
      %400 = vmatpush1.msra.mxu0 0.0
      %401 = vmatprep.subr.mxu0 0.0
      %402 = vmatpush1.msra.mxu0 0.0
      %403 = vmatprep.subr.mxu0 0.0
      %404 = vmatpush1.msra.mxu0 0.0
      %405 = vmatprep.subr.mxu0 0.0
      %406 = vmatpush1.msra.mxu0 0.0
      %407 = vmatprep.subr.mxu0 0.0
      %408 = vmatpush1.msra.mxu0 0.0
      %409 = vmatprep.subr.mxu0 0.0
      %410 = vmatpush1.msra.mxu0 0.0
      %411 = vmatprep.subr.mxu0 0.0
      %412 = vmatpush1.msra.mxu0 0.0
      %413 = vmatprep.subr.mxu0 0.0
      %414 = vmatpush1.msra.mxu0 0.0
      %415 = vmatprep.subr.mxu0 0.0
      %416 = vmatpush1.msra.mxu0 0.0
      %417 = vmatprep.subr.mxu0 0.0
      %418 = vmatpush1.msra.mxu0 0.0
      %419 = vmatprep.subr.mxu0 0.0
      %420 = vmatpush1.msra.mxu0 0.0
      %421 = vmatprep.subr.mxu0 0.0
      %422 = vmatpush1.msra.mxu0 0.0
      %423 = vmatprep.subr.mxu0 0.0
      %424 = vmatpush1.msra.mxu0 0.0
      %425 = vmatprep.subr.mxu0 0.0
      %426 = vmatpush1.msra.mxu0 0.0
      %427 = vmatprep.subr.mxu0 0.0
      %428 = vmatpush1.msra.mxu0 0.0
      %429 = vmatprep.subr.mxu0 0.0
      %430 = vmatpush1.msra.mxu0 0.0
      %431 = vmatprep.subr.mxu0 0.0
      %432 = vmatpush1.msra.mxu0 0.0
      %433 = vmatprep.subr.mxu0 0.0
      %434 = vmatpush1.msra.mxu0 0.0
      %435 = vmatprep.subr.mxu0 0.0
      %436 = vmatpush1.msra.mxu0 0.0
      %437 = vmatprep.subr.mxu0 0.0
      %438 = vmatpush1.msra.mxu0 0.0
      %439 = vmatprep.subr.mxu0 0.0
      %440 = vmatpush1.msra.mxu0 0.0
      %441 = vmatprep.subr.mxu0 0.0
      %442 = vmatpush1.msra.mxu0 0.0
      %443 = vmatprep.subr.mxu0 0.0
      %444 = vmatpush1.msra.mxu0 0.0
      %445 = vmatprep.subr.mxu0 0.0
      %446 = vmatpush1.msra.mxu0 0.0
      %447 = vmatprep.subr.mxu0 0.0
      %448 = vmatpush1.msra.mxu0 0.0
      %449 = vmatprep.subr.mxu0 0.0
      %450 = vmatpush1.msra.mxu0 0.0
      %451 = vmatprep.subr.mxu0 0.0
      %452 = vmatpush1.msra.mxu0 0.0
      %453 = vmatprep.mubr.f32.mxu0 0.0
      %454 = vmatmul.mubr.f32.gmra.mrb[0].mxu0 %v387
      %v455 = vpop.f32.mrb[0].mxu0
      %v456 = vadd.f32 %v383, %v455
      %v457 = vpop.f32.mrb[0].mxu0
      %458 = vdwg.mxu0
      %v459 = vld [vmem:[%s4] sm:$0xff]
      %v460 = vld [vmem:[%s4 + $0x8] sm:$0xff]
      %v461 = vld [vmem:[%s4 + $0x10] sm:$0xff]
      %v462 = vld [vmem:[%s4 + $0x18] sm:$0xff]
      %v463 = vld [vmem:[%s5] sm:$0x1]
      %v465 = vlaneseq
      %v466 = vshrl.u32 %v465, 7
      %v467 = vsub.s32 0, %v466
      %v468 = vrot.slane %v463, %v467
      %v471 = vsel %vm385, %v373, 0
      %473 = vmatprep.subr.mxu0 0.0
      %474 = vmatpush1.msra.mxu0 %v459
      %475 = vmatprep.subr.mxu0 0.0
      %476 = vmatpush1.msra.mxu0 %v460
      %477 = vmatprep.subr.mxu0 0.0
      %478 = vmatpush1.msra.mxu0 %v461
      %479 = vmatprep.subr.mxu0 0.0
      %480 = vmatpush1.msra.mxu0 %v462
      %481 = vmatprep.subr.mxu0 0.0
      %482 = vmatpush1.msra.mxu0 0.0
      %483 = vmatprep.subr.mxu0 0.0
      %484 = vmatpush1.msra.mxu0 0.0
      %485 = vmatprep.subr.mxu0 0.0
      %486 = vmatpush1.msra.mxu0 0.0
      %487 = vmatprep.subr.mxu0 0.0
      %488 = vmatpush1.msra.mxu0 0.0
      %489 = vmatprep.subr.mxu0 0.0
      %490 = vmatpush1.msra.mxu0 0.0
      %491 = vmatprep.subr.mxu0 0.0
      %492 = vmatpush1.msra.mxu0 0.0
      %493 = vmatprep.subr.mxu0 0.0
      %494 = vmatpush1.msra.mxu0 0.0
      %495 = vmatprep.subr.mxu0 0.0
      %496 = vmatpush1.msra.mxu0 0.0
      %497 = vmatprep.subr.mxu0 0.0
      %498 = vmatpush1.msra.mxu0 0.0
      %499 = vmatprep.subr.mxu0 0.0
      %500 = vmatpush1.msra.mxu0 0.0
      %501 = vmatprep.subr.mxu0 0.0
      %502 = vmatpush1.msra.mxu0 0.0
      %503 = vmatprep.subr.mxu0 0.0
      %504 = vmatpush1.msra.mxu0 0.0
      %505 = vmatprep.subr.mxu0 0.0
      %506 = vmatpush1.msra.mxu0 0.0
      %507 = vmatprep.subr.mxu0 0.0
      %508 = vmatpush1.msra.mxu0 0.0
      %509 = vmatprep.subr.mxu0 0.0
      %510 = vmatpush1.msra.mxu0 0.0
      %511 = vmatprep.subr.mxu0 0.0
      %512 = vmatpush1.msra.mxu0 0.0
      %513 = vmatprep.subr.mxu0 0.0
      %514 = vmatpush1.msra.mxu0 0.0
      %515 = vmatprep.subr.mxu0 0.0
      %516 = vmatpush1.msra.mxu0 0.0
      %517 = vmatprep.subr.mxu0 0.0
      %518 = vmatpush1.msra.mxu0 0.0
      %519 = vmatprep.subr.mxu0 0.0
      %520 = vmatpush1.msra.mxu0 0.0
      %521 = vmatprep.subr.mxu0 0.0
      %522 = vmatpush1.msra.mxu0 0.0
      %523 = vmatprep.subr.mxu0 0.0
      %524 = vmatpush1.msra.mxu0 0.0
      %525 = vmatprep.subr.mxu0 0.0
      %526 = vmatpush1.msra.mxu0 0.0
      %527 = vmatprep.subr.mxu0 0.0
      %528 = vmatpush1.msra.mxu0 0.0
      %529 = vmatprep.subr.mxu0 0.0
      %530 = vmatpush1.msra.mxu0 0.0
      %531 = vmatprep.subr.mxu0 0.0
      %532 = vmatpush1.msra.mxu0 0.0
      %533 = vmatprep.subr.mxu0 0.0
      %534 = vmatpush1.msra.mxu0 0.0
      %535 = vmatprep.subr.mxu0 0.0
      %536 = vmatpush1.msra.mxu0 0.0
      %537 = vmatprep.mubr.f32.mxu0 0.0
      %538 = vmatmul.mubr.f32.gmra.mrb[0].mxu0 %v471
      %v539 = vpop.f32.mrb[0].mxu0
      %v540 = vadd.f32 %v468, %v539
      %v541 = vpop.f32.mrb[0].mxu0
      %542 = vdwg.mxu0
      %vm543 = vcmask 64512
      %v545 = vsel %vm543, %v456, 0
      %v548 = vsel %vm543, %v540, 0
      %550 = vmatprep.subr.mxu0 0.0
      %551 = vmatpush1.xpose.msra.mxu0 %v548
      %552 = vmatprep.subr.mxu0 0.0
      %553 = vmatpush1.xpose.msra.mxu0 0.0
      %554 = vmatprep.subr.mxu0 0.0
      %555 = vmatpush1.xpose.msra.mxu0 0.0
      %556 = vmatprep.subr.mxu0 0.0
      %557 = vmatpush1.xpose.msra.mxu0 0.0
      %558 = vmatprep.subr.mxu0 0.0
      %559 = vmatpush1.xpose.msra.mxu0 0.0
      %560 = vmatprep.subr.mxu0 0.0
      %561 = vmatpush1.xpose.msra.mxu0 0.0
      %562 = vmatprep.subr.mxu0 0.0
      %563 = vmatpush1.xpose.msra.mxu0 0.0
      %564 = vmatprep.subr.mxu0 0.0
      %565 = vmatpush1.xpose.msra.mxu0 0.0
      %566 = vmatprep.subr.mxu0 0.0
      %567 = vmatpush1.xpose.msra.mxu0 0.0
      %568 = vmatprep.subr.mxu0 0.0
      %569 = vmatpush1.xpose.msra.mxu0 0.0
      %570 = vmatprep.subr.mxu0 0.0
      %571 = vmatpush1.xpose.msra.mxu0 0.0
      %572 = vmatprep.subr.mxu0 0.0
      %573 = vmatpush1.xpose.msra.mxu0 0.0
      %574 = vmatprep.subr.mxu0 0.0
      %575 = vmatpush1.xpose.msra.mxu0 0.0
      %576 = vmatprep.subr.mxu0 0.0
      %577 = vmatpush1.xpose.msra.mxu0 0.0
      %578 = vmatprep.subr.mxu0 0.0
      %579 = vmatpush1.xpose.msra.mxu0 0.0
      %580 = vmatprep.subr.mxu0 0.0
      %581 = vmatpush1.xpose.msra.mxu0 0.0
      %582 = vmatprep.subr.mxu0 0.0
      %583 = vmatpush1.xpose.msra.mxu0 0.0
      %584 = vmatprep.subr.mxu0 0.0
      %585 = vmatpush1.xpose.msra.mxu0 0.0
      %586 = vmatprep.subr.mxu0 0.0
      %587 = vmatpush1.xpose.msra.mxu0 0.0
      %588 = vmatprep.subr.mxu0 0.0
      %589 = vmatpush1.xpose.msra.mxu0 0.0
      %590 = vmatprep.subr.mxu0 0.0
      %591 = vmatpush1.xpose.msra.mxu0 0.0
      %592 = vmatprep.subr.mxu0 0.0
      %593 = vmatpush1.xpose.msra.mxu0 0.0
      %594 = vmatprep.subr.mxu0 0.0
      %595 = vmatpush1.xpose.msra.mxu0 0.0
      %596 = vmatprep.subr.mxu0 0.0
      %597 = vmatpush1.xpose.msra.mxu0 0.0
      %598 = vmatprep.subr.mxu0 0.0
      %599 = vmatpush1.xpose.msra.mxu0 0.0
      %600 = vmatprep.subr.mxu0 0.0
      %601 = vmatpush1.xpose.msra.mxu0 0.0
      %602 = vmatprep.subr.mxu0 0.0
      %603 = vmatpush1.xpose.msra.mxu0 0.0
      %604 = vmatprep.subr.mxu0 0.0
      %605 = vmatpush1.xpose.msra.mxu0 0.0
      %606 = vmatprep.subr.mxu0 0.0
      %607 = vmatpush1.xpose.msra.mxu0 0.0
      %608 = vmatprep.subr.mxu0 0.0
      %609 = vmatpush1.xpose.msra.mxu0 0.0
      %610 = vmatprep.subr.mxu0 0.0
      %611 = vmatpush1.xpose.msra.mxu0 0.0
      %612 = vmatprep.subr.mxu0 0.0
      %613 = vmatpush1.xpose.msra.mxu0 0.0
      %614 = vmatprep.mubr.f32.mxu0 0.0
      %615 = vmatmul.mubr.f32.gmra.mrb[0].mxu0 %v545
      %v616 = vpop.f32.mrb[0].mxu0
      %v617 = vadd.f32 0.0, %v616
      %v618 = vpop.f32.mrb[0].mxu0
      %619 = vdwg.mxu0
      %v620 = vmul.f32 %v617, 0.35355338
      %v621 = vsel %vm543, %v620, -inf
      %622 = vmax.xlane.f32.xlu0 %v621
      %v623 = vpop.xlane.xlu0 %622
      %v624 = vsub.f32 %v620, %v623
      %v625 = vmul.f32 %v624, 1.442695
      %v626 = vpow.pop %v625
      %v627 = vsel %vm543, %v626, 0.0
      %628 = vadd.xlane.f32.xlu0 %v627
      %v629 = vpop.xlane.xlu0 %628
      %v630 = vrcp.pop %v629
      %v631 = vmul.f32 %v626, %v630
      %632 = vrot.lane.b32.xlu0 %v540, 96
      %v633 = vpop.permute.xlu0 %632
      %v636 = vsel %vm543, %v631, 0
      %638 = vmatprep.subr.mxu0 0.0
      %639 = vmatpush1.msra.mxu0 %v633
      %640 = vmatprep.subr.mxu0 0.0
      %641 = vmatpush1.msra.mxu0 0.0
      %642 = vmatprep.subr.mxu0 0.0
      %643 = vmatpush1.msra.mxu0 0.0
      %644 = vmatprep.subr.mxu0 0.0
      %645 = vmatpush1.msra.mxu0 0.0
      %646 = vmatprep.subr.mxu0 0.0
      %647 = vmatpush1.msra.mxu0 0.0
      %648 = vmatprep.subr.mxu0 0.0
      %649 = vmatpush1.msra.mxu0 0.0
      %650 = vmatprep.subr.mxu0 0.0
      %651 = vmatpush1.msra.mxu0 0.0
      %652 = vmatprep.subr.mxu0 0.0
      %653 = vmatpush1.msra.mxu0 0.0
      %654 = vmatprep.subr.mxu0 0.0
      %655 = vmatpush1.msra.mxu0 0.0
      %656 = vmatprep.subr.mxu0 0.0
      %657 = vmatpush1.msra.mxu0 0.0
      %658 = vmatprep.subr.mxu0 0.0
      %659 = vmatpush1.msra.mxu0 0.0
      %660 = vmatprep.subr.mxu0 0.0
      %661 = vmatpush1.msra.mxu0 0.0
      %662 = vmatprep.subr.mxu0 0.0
      %663 = vmatpush1.msra.mxu0 0.0
      %664 = vmatprep.subr.mxu0 0.0
      %665 = vmatpush1.msra.mxu0 0.0
      %666 = vmatprep.subr.mxu0 0.0
      %667 = vmatpush1.msra.mxu0 0.0
      %668 = vmatprep.subr.mxu0 0.0
      %669 = vmatpush1.msra.mxu0 0.0
      %670 = vmatprep.subr.mxu0 0.0
      %671 = vmatpush1.msra.mxu0 0.0
      %672 = vmatprep.subr.mxu0 0.0
      %673 = vmatpush1.msra.mxu0 0.0
      %674 = vmatprep.subr.mxu0 0.0
      %675 = vmatpush1.msra.mxu0 0.0
      %676 = vmatprep.subr.mxu0 0.0
      %677 = vmatpush1.msra.mxu0 0.0
      %678 = vmatprep.subr.mxu0 0.0
      %679 = vmatpush1.msra.mxu0 0.0
      %680 = vmatprep.subr.mxu0 0.0
      %681 = vmatpush1.msra.mxu0 0.0
      %682 = vmatprep.subr.mxu0 0.0
      %683 = vmatpush1.msra.mxu0 0.0
      %684 = vmatprep.subr.mxu0 0.0
      %685 = vmatpush1.msra.mxu0 0.0
      %686 = vmatprep.subr.mxu0 0.0
      %687 = vmatpush1.msra.mxu0 0.0
      %688 = vmatprep.subr.mxu0 0.0
      %689 = vmatpush1.msra.mxu0 0.0
      %690 = vmatprep.subr.mxu0 0.0
      %691 = vmatpush1.msra.mxu0 0.0
      %692 = vmatprep.subr.mxu0 0.0
      %693 = vmatpush1.msra.mxu0 0.0
      %694 = vmatprep.subr.mxu0 0.0
      %695 = vmatpush1.msra.mxu0 0.0
      %696 = vmatprep.subr.mxu0 0.0
      %697 = vmatpush1.msra.mxu0 0.0
      %698 = vmatprep.subr.mxu0 0.0
      %699 = vmatpush1.msra.mxu0 0.0
      %700 = vmatprep.subr.mxu0 0.0
      %701 = vmatpush1.msra.mxu0 0.0
      %702 = vmatprep.mubr.f32.mxu0 0.0
      %703 = vmatmul.mubr.f32.gmra.mrb[0].mxu0 %v636
      %v704 = vpop.f32.mrb[0].mxu0
      %v705 = vadd.f32 0.0, %v704
      %v706 = vpop.f32.mrb[0].mxu0
      %707 = vdwg.mxu0
      %708 = vrot.lane.b32.xlu0 %v456, 120
      %v709 = vpop.permute.xlu0 %708
      %710 = vrot.lane.b32.xlu0 %v540, 120
      %v711 = vpop.permute.xlu0 %710
      %v712 = vsel %vm543, %v709, 0
      %v714 = vsel %vm543, %v711, 0
      %716 = vmatprep.subr.mxu0 0.0
      %717 = vmatpush1.xpose.msra.mxu0 %v714
      %718 = vmatprep.subr.mxu0 0.0
      %719 = vmatpush1.xpose.msra.mxu0 0.0
      %720 = vmatprep.subr.mxu0 0.0
      %721 = vmatpush1.xpose.msra.mxu0 0.0
      %722 = vmatprep.subr.mxu0 0.0
      %723 = vmatpush1.xpose.msra.mxu0 0.0
      %724 = vmatprep.subr.mxu0 0.0
      %725 = vmatpush1.xpose.msra.mxu0 0.0
      %726 = vmatprep.subr.mxu0 0.0
      %727 = vmatpush1.xpose.msra.mxu0 0.0
      %728 = vmatprep.subr.mxu0 0.0
      %729 = vmatpush1.xpose.msra.mxu0 0.0
      %730 = vmatprep.subr.mxu0 0.0
      %731 = vmatpush1.xpose.msra.mxu0 0.0
      %732 = vmatprep.subr.mxu0 0.0
      %733 = vmatpush1.xpose.msra.mxu0 0.0
      %734 = vmatprep.subr.mxu0 0.0
      %735 = vmatpush1.xpose.msra.mxu0 0.0
      %736 = vmatprep.subr.mxu0 0.0
      %737 = vmatpush1.xpose.msra.mxu0 0.0
      %738 = vmatprep.subr.mxu0 0.0
      %739 = vmatpush1.xpose.msra.mxu0 0.0
      %740 = vmatprep.subr.mxu0 0.0
      %741 = vmatpush1.xpose.msra.mxu0 0.0
      %742 = vmatprep.subr.mxu0 0.0
      %743 = vmatpush1.xpose.msra.mxu0 0.0
      %744 = vmatprep.subr.mxu0 0.0
      %745 = vmatpush1.xpose.msra.mxu0 0.0
      %746 = vmatprep.subr.mxu0 0.0
      %747 = vmatpush1.xpose.msra.mxu0 0.0
      %748 = vmatprep.subr.mxu0 0.0
      %749 = vmatpush1.xpose.msra.mxu0 0.0
      %750 = vmatprep.subr.mxu0 0.0
      %751 = vmatpush1.xpose.msra.mxu0 0.0
      %752 = vmatprep.subr.mxu0 0.0
      %753 = vmatpush1.xpose.msra.mxu0 0.0
      %754 = vmatprep.subr.mxu0 0.0
      %755 = vmatpush1.xpose.msra.mxu0 0.0
      %756 = vmatprep.subr.mxu0 0.0
      %757 = vmatpush1.xpose.msra.mxu0 0.0
      %758 = vmatprep.subr.mxu0 0.0
      %759 = vmatpush1.xpose.msra.mxu0 0.0
      %760 = vmatprep.subr.mxu0 0.0
      %761 = vmatpush1.xpose.msra.mxu0 0.0
      %762 = vmatprep.subr.mxu0 0.0
      %763 = vmatpush1.xpose.msra.mxu0 0.0
      %764 = vmatprep.subr.mxu0 0.0
      %765 = vmatpush1.xpose.msra.mxu0 0.0
      %766 = vmatprep.subr.mxu0 0.0
      %767 = vmatpush1.xpose.msra.mxu0 0.0
      %768 = vmatprep.subr.mxu0 0.0
      %769 = vmatpush1.xpose.msra.mxu0 0.0
      %770 = vmatprep.subr.mxu0 0.0
      %771 = vmatpush1.xpose.msra.mxu0 0.0
      %772 = vmatprep.subr.mxu0 0.0
      %773 = vmatpush1.xpose.msra.mxu0 0.0
      %774 = vmatprep.subr.mxu0 0.0
      %775 = vmatpush1.xpose.msra.mxu0 0.0
      %776 = vmatprep.subr.mxu0 0.0
      %777 = vmatpush1.xpose.msra.mxu0 0.0
      %778 = vmatprep.subr.mxu0 0.0
      %779 = vmatpush1.xpose.msra.mxu0 0.0
      %780 = vmatprep.mubr.f32.mxu0 0.0
      %781 = vmatmul.mubr.f32.gmra.mrb[0].mxu0 %v712
      %v782 = vpop.f32.mrb[0].mxu0
      %v783 = vadd.f32 0.0, %v782
      %v784 = vpop.f32.mrb[0].mxu0
      %785 = vdwg.mxu0
      %v786 = vmul.f32 %v783, 0.35355338
      %v787 = vsel %vm543, %v786, -inf
      %788 = vmax.xlane.f32.xlu0 %v787
      %v789 = vpop.xlane.xlu0 %788
      %v790 = vsub.f32 %v786, %v789
      %v791 = vmul.f32 %v790, 1.442695
      %v792 = vpow.pop %v791
      %v793 = vsel %vm543, %v792, 0.0
      %794 = vadd.xlane.f32.xlu0 %v793
      %v795 = vpop.xlane.xlu0 %794
      %v796 = vrcp.pop %v795
      %v797 = vmul.f32 %v792, %v796
      %798 = vrot.lane.b32.xlu0 %v540, 88
      %v799 = vpop.permute.xlu0 %798
      %v802 = vsel %vm543, %v797, 0
      %804 = vmatprep.subr.mxu0 0.0
      %805 = vmatpush1.msra.mxu0 %v799
      %806 = vmatprep.subr.mxu0 0.0
      %807 = vmatpush1.msra.mxu0 0.0
      %808 = vmatprep.subr.mxu0 0.0
      %809 = vmatpush1.msra.mxu0 0.0
      %810 = vmatprep.subr.mxu0 0.0
      %811 = vmatpush1.msra.mxu0 0.0
      %812 = vmatprep.subr.mxu0 0.0
      %813 = vmatpush1.msra.mxu0 0.0
      %814 = vmatprep.subr.mxu0 0.0
      %815 = vmatpush1.msra.mxu0 0.0
      %816 = vmatprep.subr.mxu0 0.0
      %817 = vmatpush1.msra.mxu0 0.0
      %818 = vmatprep.subr.mxu0 0.0
      %819 = vmatpush1.msra.mxu0 0.0
      %820 = vmatprep.subr.mxu0 0.0
      %821 = vmatpush1.msra.mxu0 0.0
      %822 = vmatprep.subr.mxu0 0.0
      %823 = vmatpush1.msra.mxu0 0.0
      %824 = vmatprep.subr.mxu0 0.0
      %825 = vmatpush1.msra.mxu0 0.0
      %826 = vmatprep.subr.mxu0 0.0
      %827 = vmatpush1.msra.mxu0 0.0
      %828 = vmatprep.subr.mxu0 0.0
      %829 = vmatpush1.msra.mxu0 0.0
      %830 = vmatprep.subr.mxu0 0.0
      %831 = vmatpush1.msra.mxu0 0.0
      %832 = vmatprep.subr.mxu0 0.0
      %833 = vmatpush1.msra.mxu0 0.0
      %834 = vmatprep.subr.mxu0 0.0
      %835 = vmatpush1.msra.mxu0 0.0
      %836 = vmatprep.subr.mxu0 0.0
      %837 = vmatpush1.msra.mxu0 0.0
      %838 = vmatprep.subr.mxu0 0.0
      %839 = vmatpush1.msra.mxu0 0.0
      %840 = vmatprep.subr.mxu0 0.0
      %841 = vmatpush1.msra.mxu0 0.0
      %842 = vmatprep.subr.mxu0 0.0
      %843 = vmatpush1.msra.mxu0 0.0
      %844 = vmatprep.subr.mxu0 0.0
      %845 = vmatpush1.msra.mxu0 0.0
      %846 = vmatprep.subr.mxu0 0.0
      %847 = vmatpush1.msra.mxu0 0.0
      %848 = vmatprep.subr.mxu0 0.0
      %849 = vmatpush1.msra.mxu0 0.0
      %850 = vmatprep.subr.mxu0 0.0
      %851 = vmatpush1.msra.mxu0 0.0
      %852 = vmatprep.subr.mxu0 0.0
      %853 = vmatpush1.msra.mxu0 0.0
      %854 = vmatprep.subr.mxu0 0.0
      %855 = vmatpush1.msra.mxu0 0.0
      %856 = vmatprep.subr.mxu0 0.0
      %857 = vmatpush1.msra.mxu0 0.0
      %858 = vmatprep.subr.mxu0 0.0
      %859 = vmatpush1.msra.mxu0 0.0
      %860 = vmatprep.subr.mxu0 0.0
      %861 = vmatpush1.msra.mxu0 0.0
      %862 = vmatprep.subr.mxu0 0.0
      %863 = vmatpush1.msra.mxu0 0.0
      %864 = vmatprep.subr.mxu0 0.0
      %865 = vmatpush1.msra.mxu0 0.0
      %866 = vmatprep.subr.mxu0 0.0
      %867 = vmatpush1.msra.mxu0 0.0
      %868 = vmatprep.mubr.f32.mxu0 0.0
      %869 = vmatmul.mubr.f32.gmra.mrb[0].mxu0 %v802
      %v870 = vpop.f32.mrb[0].mxu0
      %v871 = vadd.f32 0.0, %v870
      %v872 = vpop.f32.mrb[0].mxu0
      %873 = vdwg.mxu0
      %874 = vrot.lane.b32.xlu0 %v456, 112
      %v875 = vpop.permute.xlu0 %874
      %876 = vrot.lane.b32.xlu0 %v540, 112
      %v877 = vpop.permute.xlu0 %876
      %v878 = vsel %vm543, %v875, 0
      %v880 = vsel %vm543, %v877, 0
      %882 = vmatprep.subr.mxu0 0.0
      %883 = vmatpush1.xpose.msra.mxu0 %v880
      %884 = vmatprep.subr.mxu0 0.0
      %885 = vmatpush1.xpose.msra.mxu0 0.0
      %886 = vmatprep.subr.mxu0 0.0
      %887 = vmatpush1.xpose.msra.mxu0 0.0
      %888 = vmatprep.subr.mxu0 0.0
      %889 = vmatpush1.xpose.msra.mxu0 0.0
      %890 = vmatprep.subr.mxu0 0.0
      %891 = vmatpush1.xpose.msra.mxu0 0.0
      %892 = vmatprep.subr.mxu0 0.0
      %893 = vmatpush1.xpose.msra.mxu0 0.0
      %894 = vmatprep.subr.mxu0 0.0
      %895 = vmatpush1.xpose.msra.mxu0 0.0
      %896 = vmatprep.subr.mxu0 0.0
      %897 = vmatpush1.xpose.msra.mxu0 0.0
      %898 = vmatprep.subr.mxu0 0.0
      %899 = vmatpush1.xpose.msra.mxu0 0.0
      %900 = vmatprep.subr.mxu0 0.0
      %901 = vmatpush1.xpose.msra.mxu0 0.0
      %902 = vmatprep.subr.mxu0 0.0
      %903 = vmatpush1.xpose.msra.mxu0 0.0
      %904 = vmatprep.subr.mxu0 0.0
      %905 = vmatpush1.xpose.msra.mxu0 0.0
      %906 = vmatprep.subr.mxu0 0.0
      %907 = vmatpush1.xpose.msra.mxu0 0.0
      %908 = vmatprep.subr.mxu0 0.0
      %909 = vmatpush1.xpose.msra.mxu0 0.0
      %910 = vmatprep.subr.mxu0 0.0
      %911 = vmatpush1.xpose.msra.mxu0 0.0
      %912 = vmatprep.subr.mxu0 0.0
      %913 = vmatpush1.xpose.msra.mxu0 0.0
      %914 = vmatprep.subr.mxu0 0.0
      %915 = vmatpush1.xpose.msra.mxu0 0.0
      %916 = vmatprep.subr.mxu0 0.0
      %917 = vmatpush1.xpose.msra.mxu0 0.0
      %918 = vmatprep.subr.mxu0 0.0
      %919 = vmatpush1.xpose.msra.mxu0 0.0
      %920 = vmatprep.subr.mxu0 0.0
      %921 = vmatpush1.xpose.msra.mxu0 0.0
      %922 = vmatprep.subr.mxu0 0.0
      %923 = vmatpush1.xpose.msra.mxu0 0.0
      %924 = vmatprep.subr.mxu0 0.0
      %925 = vmatpush1.xpose.msra.mxu0 0.0
      %926 = vmatprep.subr.mxu0 0.0
      %927 = vmatpush1.xpose.msra.mxu0 0.0
      %928 = vmatprep.subr.mxu0 0.0
      %929 = vmatpush1.xpose.msra.mxu0 0.0
      %930 = vmatprep.subr.mxu0 0.0
      %931 = vmatpush1.xpose.msra.mxu0 0.0
      %932 = vmatprep.subr.mxu0 0.0
      %933 = vmatpush1.xpose.msra.mxu0 0.0
      %934 = vmatprep.subr.mxu0 0.0
      %935 = vmatpush1.xpose.msra.mxu0 0.0
      %936 = vmatprep.subr.mxu0 0.0
      %937 = vmatpush1.xpose.msra.mxu0 0.0
      %938 = vmatprep.subr.mxu0 0.0
      %939 = vmatpush1.xpose.msra.mxu0 0.0
      %940 = vmatprep.subr.mxu0 0.0
      %941 = vmatpush1.xpose.msra.mxu0 0.0
      %942 = vmatprep.subr.mxu0 0.0
      %943 = vmatpush1.xpose.msra.mxu0 0.0
      %944 = vmatprep.subr.mxu0 0.0
      %945 = vmatpush1.xpose.msra.mxu0 0.0
      %946 = vmatprep.mubr.f32.mxu0 0.0
      %947 = vmatmul.mubr.f32.gmra.mrb[0].mxu0 %v878
      %v948 = vpop.f32.mrb[0].mxu0
      %v949 = vadd.f32 0.0, %v948
      %v950 = vpop.f32.mrb[0].mxu0
      %951 = vdwg.mxu0
      %v952 = vmul.f32 %v949, 0.35355338
      %v953 = vsel %vm543, %v952, -inf
      %954 = vmax.xlane.f32.xlu0 %v953
      %v955 = vpop.xlane.xlu0 %954
      %v956 = vsub.f32 %v952, %v955
      %v957 = vmul.f32 %v956, 1.442695
      %v958 = vpow.pop %v957
      %v959 = vsel %vm543, %v958, 0.0
      %960 = vadd.xlane.f32.xlu0 %v959
      %v961 = vpop.xlane.xlu0 %960
      %v962 = vrcp.pop %v961
      %v963 = vmul.f32 %v958, %v962
      %964 = vrot.lane.b32.xlu0 %v540, 80
      %v965 = vpop.permute.xlu0 %964
      %v968 = vsel %vm543, %v963, 0
      %970 = vmatprep.subr.mxu0 0.0
      %971 = vmatpush1.msra.mxu0 %v965
      %972 = vmatprep.subr.mxu0 0.0
      %973 = vmatpush1.msra.mxu0 0.0
      %974 = vmatprep.subr.mxu0 0.0
      %975 = vmatpush1.msra.mxu0 0.0
      %976 = vmatprep.subr.mxu0 0.0
      %977 = vmatpush1.msra.mxu0 0.0
      %978 = vmatprep.subr.mxu0 0.0
      %979 = vmatpush1.msra.mxu0 0.0
      %980 = vmatprep.subr.mxu0 0.0
      %981 = vmatpush1.msra.mxu0 0.0
      %982 = vmatprep.subr.mxu0 0.0
      %983 = vmatpush1.msra.mxu0 0.0
      %984 = vmatprep.subr.mxu0 0.0
      %985 = vmatpush1.msra.mxu0 0.0
      %986 = vmatprep.subr.mxu0 0.0
      %987 = vmatpush1.msra.mxu0 0.0
      %988 = vmatprep.subr.mxu0 0.0
      %989 = vmatpush1.msra.mxu0 0.0
      %990 = vmatprep.subr.mxu0 0.0
      %991 = vmatpush1.msra.mxu0 0.0
      %992 = vmatprep.subr.mxu0 0.0
      %993 = vmatpush1.msra.mxu0 0.0
      %994 = vmatprep.subr.mxu0 0.0
      %995 = vmatpush1.msra.mxu0 0.0
      %996 = vmatprep.subr.mxu0 0.0
      %997 = vmatpush1.msra.mxu0 0.0
      %998 = vmatprep.subr.mxu0 0.0
      %999 = vmatpush1.msra.mxu0 0.0
      %1000 = vmatprep.subr.mxu0 0.0
      %1001 = vmatpush1.msra.mxu0 0.0
      %1002 = vmatprep.subr.mxu0 0.0
      %1003 = vmatpush1.msra.mxu0 0.0
      %1004 = vmatprep.subr.mxu0 0.0
      %1005 = vmatpush1.msra.mxu0 0.0
      %1006 = vmatprep.subr.mxu0 0.0
      %1007 = vmatpush1.msra.mxu0 0.0
      %1008 = vmatprep.subr.mxu0 0.0
      %1009 = vmatpush1.msra.mxu0 0.0
      %1010 = vmatprep.subr.mxu0 0.0
      %1011 = vmatpush1.msra.mxu0 0.0
      %1012 = vmatprep.subr.mxu0 0.0
      %1013 = vmatpush1.msra.mxu0 0.0
      %1014 = vmatprep.subr.mxu0 0.0
      %1015 = vmatpush1.msra.mxu0 0.0
      %1016 = vmatprep.subr.mxu0 0.0
      %1017 = vmatpush1.msra.mxu0 0.0
      %1018 = vmatprep.subr.mxu0 0.0
      %1019 = vmatpush1.msra.mxu0 0.0
      %1020 = vmatprep.subr.mxu0 0.0
      %1021 = vmatpush1.msra.mxu0 0.0
      %1022 = vmatprep.subr.mxu0 0.0
      %1023 = vmatpush1.msra.mxu0 0.0
      %1024 = vmatprep.subr.mxu0 0.0
      %1025 = vmatpush1.msra.mxu0 0.0
      %1026 = vmatprep.subr.mxu0 0.0
      %1027 = vmatpush1.msra.mxu0 0.0
      %1028 = vmatprep.subr.mxu0 0.0
      %1029 = vmatpush1.msra.mxu0 0.0
      %1030 = vmatprep.subr.mxu0 0.0
      %1031 = vmatpush1.msra.mxu0 0.0
      %1032 = vmatprep.subr.mxu0 0.0
      %1033 = vmatpush1.msra.mxu0 0.0
      %1034 = vmatprep.mubr.f32.mxu0 0.0
      %1035 = vmatmul.mubr.f32.gmra.mrb[0].mxu0 %v968
      %v1036 = vpop.f32.mrb[0].mxu0
      %v1037 = vadd.f32 0.0, %v1036
      %v1038 = vpop.f32.mrb[0].mxu0
      %1039 = vdwg.mxu0
      %1040 = vrot.lane.b32.xlu0 %v456, 104
      %v1041 = vpop.permute.xlu0 %1040
      %1042 = vrot.lane.b32.xlu0 %v540, 104
      %v1043 = vpop.permute.xlu0 %1042
      %v1044 = vsel %vm543, %v1041, 0
      %v1046 = vsel %vm543, %v1043, 0
      %1048 = vmatprep.subr.mxu0 0.0
      %1049 = vmatpush1.xpose.msra.mxu0 %v1046
      %1050 = vmatprep.subr.mxu0 0.0
      %1051 = vmatpush1.xpose.msra.mxu0 0.0
      %1052 = vmatprep.subr.mxu0 0.0
      %1053 = vmatpush1.xpose.msra.mxu0 0.0
      %1054 = vmatprep.subr.mxu0 0.0
      %1055 = vmatpush1.xpose.msra.mxu0 0.0
      %1056 = vmatprep.subr.mxu0 0.0
      %1057 = vmatpush1.xpose.msra.mxu0 0.0
      %1058 = vmatprep.subr.mxu0 0.0
      %1059 = vmatpush1.xpose.msra.mxu0 0.0
      %1060 = vmatprep.subr.mxu0 0.0
      %1061 = vmatpush1.xpose.msra.mxu0 0.0
      %1062 = vmatprep.subr.mxu0 0.0
      %1063 = vmatpush1.xpose.msra.mxu0 0.0
      %1064 = vmatprep.subr.mxu0 0.0
      %1065 = vmatpush1.xpose.msra.mxu0 0.0
      %1066 = vmatprep.subr.mxu0 0.0
      %1067 = vmatpush1.xpose.msra.mxu0 0.0
      %1068 = vmatprep.subr.mxu0 0.0
      %1069 = vmatpush1.xpose.msra.mxu0 0.0
      %1070 = vmatprep.subr.mxu0 0.0
      %1071 = vmatpush1.xpose.msra.mxu0 0.0
      %1072 = vmatprep.subr.mxu0 0.0
      %1073 = vmatpush1.xpose.msra.mxu0 0.0
      %1074 = vmatprep.subr.mxu0 0.0
      %1075 = vmatpush1.xpose.msra.mxu0 0.0
      %1076 = vmatprep.subr.mxu0 0.0
      %1077 = vmatpush1.xpose.msra.mxu0 0.0
      %1078 = vmatprep.subr.mxu0 0.0
      %1079 = vmatpush1.xpose.msra.mxu0 0.0
      %1080 = vmatprep.subr.mxu0 0.0
      %1081 = vmatpush1.xpose.msra.mxu0 0.0
      %1082 = vmatprep.subr.mxu0 0.0
      %1083 = vmatpush1.xpose.msra.mxu0 0.0
      %1084 = vmatprep.subr.mxu0 0.0
      %1085 = vmatpush1.xpose.msra.mxu0 0.0
      %1086 = vmatprep.subr.mxu0 0.0
      %1087 = vmatpush1.xpose.msra.mxu0 0.0
      %1088 = vmatprep.subr.mxu0 0.0
      %1089 = vmatpush1.xpose.msra.mxu0 0.0
      %1090 = vmatprep.subr.mxu0 0.0
      %1091 = vmatpush1.xpose.msra.mxu0 0.0
      %1092 = vmatprep.subr.mxu0 0.0
      %1093 = vmatpush1.xpose.msra.mxu0 0.0
      %1094 = vmatprep.subr.mxu0 0.0
      %1095 = vmatpush1.xpose.msra.mxu0 0.0
      %1096 = vmatprep.subr.mxu0 0.0
      %1097 = vmatpush1.xpose.msra.mxu0 0.0
      %1098 = vmatprep.subr.mxu0 0.0
      %1099 = vmatpush1.xpose.msra.mxu0 0.0
      %1100 = vmatprep.subr.mxu0 0.0
      %1101 = vmatpush1.xpose.msra.mxu0 0.0
      %1102 = vmatprep.subr.mxu0 0.0
      %1103 = vmatpush1.xpose.msra.mxu0 0.0
      %1104 = vmatprep.subr.mxu0 0.0
      %1105 = vmatpush1.xpose.msra.mxu0 0.0
      %1106 = vmatprep.subr.mxu0 0.0
      %1107 = vmatpush1.xpose.msra.mxu0 0.0
      %1108 = vmatprep.subr.mxu0 0.0
      %1109 = vmatpush1.xpose.msra.mxu0 0.0
      %1110 = vmatprep.subr.mxu0 0.0
      %1111 = vmatpush1.xpose.msra.mxu0 0.0
      %1112 = vmatprep.mubr.f32.mxu0 0.0
      %1113 = vmatmul.mubr.f32.gmra.mrb[0].mxu0 %v1044
      %v1114 = vpop.f32.mrb[0].mxu0
      %v1115 = vadd.f32 0.0, %v1114
      %v1116 = vpop.f32.mrb[0].mxu0
      %1117 = vdwg.mxu0
      %v1118 = vmul.f32 %v1115, 0.35355338
      %v1119 = vsel %vm543, %v1118, -inf
      %1120 = vmax.xlane.f32.xlu0 %v1119
      %v1121 = vpop.xlane.xlu0 %1120
      %v1122 = vsub.f32 %v1118, %v1121
      %v1123 = vmul.f32 %v1122, 1.442695
      %v1124 = vpow.pop %v1123
      %v1125 = vsel %vm543, %v1124, 0.0
      %1126 = vadd.xlane.f32.xlu0 %v1125
      %v1127 = vpop.xlane.xlu0 %1126
      %v1128 = vrcp.pop %v1127
      %v1129 = vmul.f32 %v1124, %v1128
      %1130 = vrot.lane.b32.xlu0 %v540, 72
      %v1131 = vpop.permute.xlu0 %1130
      %v1134 = vsel %vm543, %v1129, 0
      %1136 = vmatprep.subr.mxu0 0.0
      %1137 = vmatpush1.msra.mxu0 %v1131
      %1138 = vmatprep.subr.mxu0 0.0
      %1139 = vmatpush1.msra.mxu0 0.0
      %1140 = vmatprep.subr.mxu0 0.0
      %1141 = vmatpush1.msra.mxu0 0.0
      %1142 = vmatprep.subr.mxu0 0.0
      %1143 = vmatpush1.msra.mxu0 0.0
      %1144 = vmatprep.subr.mxu0 0.0
      %1145 = vmatpush1.msra.mxu0 0.0
      %1146 = vmatprep.subr.mxu0 0.0
      %1147 = vmatpush1.msra.mxu0 0.0
      %1148 = vmatprep.subr.mxu0 0.0
      %1149 = vmatpush1.msra.mxu0 0.0
      %1150 = vmatprep.subr.mxu0 0.0
      %1151 = vmatpush1.msra.mxu0 0.0
      %1152 = vmatprep.subr.mxu0 0.0
      %1153 = vmatpush1.msra.mxu0 0.0
      %1154 = vmatprep.subr.mxu0 0.0
      %1155 = vmatpush1.msra.mxu0 0.0
      %1156 = vmatprep.subr.mxu0 0.0
      %1157 = vmatpush1.msra.mxu0 0.0
      %1158 = vmatprep.subr.mxu0 0.0
      %1159 = vmatpush1.msra.mxu0 0.0
      %1160 = vmatprep.subr.mxu0 0.0
      %1161 = vmatpush1.msra.mxu0 0.0
      %1162 = vmatprep.subr.mxu0 0.0
      %1163 = vmatpush1.msra.mxu0 0.0
      %1164 = vmatprep.subr.mxu0 0.0
      %1165 = vmatpush1.msra.mxu0 0.0
      %1166 = vmatprep.subr.mxu0 0.0
      %1167 = vmatpush1.msra.mxu0 0.0
      %1168 = vmatprep.subr.mxu0 0.0
      %1169 = vmatpush1.msra.mxu0 0.0
      %1170 = vmatprep.subr.mxu0 0.0
      %1171 = vmatpush1.msra.mxu0 0.0
      %1172 = vmatprep.subr.mxu0 0.0
      %1173 = vmatpush1.msra.mxu0 0.0
      %1174 = vmatprep.subr.mxu0 0.0
      %1175 = vmatpush1.msra.mxu0 0.0
      %1176 = vmatprep.subr.mxu0 0.0
      %1177 = vmatpush1.msra.mxu0 0.0
      %1178 = vmatprep.subr.mxu0 0.0
      %1179 = vmatpush1.msra.mxu0 0.0
      %1180 = vmatprep.subr.mxu0 0.0
      %1181 = vmatpush1.msra.mxu0 0.0
      %1182 = vmatprep.subr.mxu0 0.0
      %1183 = vmatpush1.msra.mxu0 0.0
      %1184 = vmatprep.subr.mxu0 0.0
      %1185 = vmatpush1.msra.mxu0 0.0
      %1186 = vmatprep.subr.mxu0 0.0
      %1187 = vmatpush1.msra.mxu0 0.0
      %1188 = vmatprep.subr.mxu0 0.0
      %1189 = vmatpush1.msra.mxu0 0.0
      %1190 = vmatprep.subr.mxu0 0.0
      %1191 = vmatpush1.msra.mxu0 0.0
      %1192 = vmatprep.subr.mxu0 0.0
      %1193 = vmatpush1.msra.mxu0 0.0
      %1194 = vmatprep.subr.mxu0 0.0
      %1195 = vmatpush1.msra.mxu0 0.0
      %1196 = vmatprep.subr.mxu0 0.0
      %1197 = vmatpush1.msra.mxu0 0.0
      %1198 = vmatprep.subr.mxu0 0.0
      %1199 = vmatpush1.msra.mxu0 0.0
      %1200 = vmatprep.mubr.f32.mxu0 0.0
      %1201 = vmatmul.mubr.f32.gmra.mrb[0].mxu0 %v1134
      %v1202 = vpop.f32.mrb[0].mxu0
      %v1203 = vadd.f32 0.0, %v1202
      %v1204 = vpop.f32.mrb[0].mxu0
      %1205 = vdwg.mxu0
      %1207 = vrot.lane.b32.xlu0 %v871, 8
      %v1208 = vpop.permute.xlu0 %1207
      %1211 = vrot.lane.b32.xlu0 %v1037, 16
      %v1212 = vpop.permute.xlu0 %1211
      %1215 = vrot.lane.b32.xlu0 %v1203, 24
      %v1216 = vpop.permute.xlu0 %1215
      %v1218 = vsel %vm543, %v705, %v1208
      %vm1219 = vcmask 130048
      %v1220 = vsel %vm1219, %v1218, %v1212
      %vm1221 = vcmask 195584
      %v1222 = vsel %vm1221, %v1220, %v1216
      %v1223 = vld [vmem:[%s6] sm:$0xff]
      %v1224 = vld [vmem:[%s6 + $0x8] sm:$0xff]
      %v1225 = vld [vmem:[%s6 + $0x10] sm:$0xff]
      %v1226 = vld [vmem:[%s6 + $0x18] sm:$0xff]
      %v1227 = vld [vmem:[%s7] sm:$0x1]
      %v1229 = vlaneseq
      %v1230 = vshrl.u32 %v1229, 7
      %v1231 = vsub.s32 0, %v1230
      %v1232 = vrot.slane %v1227, %v1231
      %v1235 = vsel %vm385, %v1222, 0
      %1237 = vmatprep.subr.mxu0 0.0
      %1238 = vmatpush1.msra.mxu0 %v1223
      %1239 = vmatprep.subr.mxu0 0.0
      %1240 = vmatpush1.msra.mxu0 %v1224
      %1241 = vmatprep.subr.mxu0 0.0
      %1242 = vmatpush1.msra.mxu0 %v1225
      %1243 = vmatprep.subr.mxu0 0.0
      %1244 = vmatpush1.msra.mxu0 %v1226
      %1245 = vmatprep.subr.mxu0 0.0
      %1246 = vmatpush1.msra.mxu0 0.0
      %1247 = vmatprep.subr.mxu0 0.0
      %1248 = vmatpush1.msra.mxu0 0.0
      %1249 = vmatprep.subr.mxu0 0.0
      %1250 = vmatpush1.msra.mxu0 0.0
      %1251 = vmatprep.subr.mxu0 0.0
      %1252 = vmatpush1.msra.mxu0 0.0
      %1253 = vmatprep.subr.mxu0 0.0
      %1254 = vmatpush1.msra.mxu0 0.0
      %1255 = vmatprep.subr.mxu0 0.0
      %1256 = vmatpush1.msra.mxu0 0.0
      %1257 = vmatprep.subr.mxu0 0.0
      %1258 = vmatpush1.msra.mxu0 0.0
      %1259 = vmatprep.subr.mxu0 0.0
      %1260 = vmatpush1.msra.mxu0 0.0
      %1261 = vmatprep.subr.mxu0 0.0
      %1262 = vmatpush1.msra.mxu0 0.0
      %1263 = vmatprep.subr.mxu0 0.0
      %1264 = vmatpush1.msra.mxu0 0.0
      %1265 = vmatprep.subr.mxu0 0.0
      %1266 = vmatpush1.msra.mxu0 0.0
      %1267 = vmatprep.subr.mxu0 0.0
      %1268 = vmatpush1.msra.mxu0 0.0
      %1269 = vmatprep.subr.mxu0 0.0
      %1270 = vmatpush1.msra.mxu0 0.0
      %1271 = vmatprep.subr.mxu0 0.0
      %1272 = vmatpush1.msra.mxu0 0.0
      %1273 = vmatprep.subr.mxu0 0.0
      %1274 = vmatpush1.msra.mxu0 0.0
      %1275 = vmatprep.subr.mxu0 0.0
      %1276 = vmatpush1.msra.mxu0 0.0
      %1277 = vmatprep.subr.mxu0 0.0
      %1278 = vmatpush1.msra.mxu0 0.0
      %1279 = vmatprep.subr.mxu0 0.0
      %1280 = vmatpush1.msra.mxu0 0.0
      %1281 = vmatprep.subr.mxu0 0.0
      %1282 = vmatpush1.msra.mxu0 0.0
      %1283 = vmatprep.subr.mxu0 0.0
      %1284 = vmatpush1.msra.mxu0 0.0
      %1285 = vmatprep.subr.mxu0 0.0
      %1286 = vmatpush1.msra.mxu0 0.0
      %1287 = vmatprep.subr.mxu0 0.0
      %1288 = vmatpush1.msra.mxu0 0.0
      %1289 = vmatprep.subr.mxu0 0.0
      %1290 = vmatpush1.msra.mxu0 0.0
      %1291 = vmatprep.subr.mxu0 0.0
      %1292 = vmatpush1.msra.mxu0 0.0
      %1293 = vmatprep.subr.mxu0 0.0
      %1294 = vmatpush1.msra.mxu0 0.0
      %1295 = vmatprep.subr.mxu0 0.0
      %1296 = vmatpush1.msra.mxu0 0.0
      %1297 = vmatprep.subr.mxu0 0.0
      %1298 = vmatpush1.msra.mxu0 0.0
      %1299 = vmatprep.subr.mxu0 0.0
      %1300 = vmatpush1.msra.mxu0 0.0
      %1301 = vmatprep.mubr.f32.mxu0 0.0
      %1302 = vmatmul.mubr.f32.gmra.mrb[0].mxu0 %v1235
      %v1303 = vpop.f32.mrb[0].mxu0
      %v1304 = vadd.f32 %v1232, %v1303
      %v1305 = vpop.f32.mrb[0].mxu0
      %1306 = vdwg.mxu0
      %v1307 = vadd.f32 %v372, %v1304
      %v1308 = vsel %vm385, %v1307, 0.0
      %1309 = vadd.xlane.f32.xlu0 %v1308
      %v1310 = vpop.xlane.xlu0 %1309
      %v1311 = vrcp.pop 32.0
      %v1312 = vmul.f32 %v1310, %v1311
      %v1313 = vsub.f32 %v1307, %v1312
      %v1314 = vmul.f32 %v1313, %v1313
      %v1315 = vsel %vm385, %v1314, 0.0
      %1316 = vadd.xlane.f32.xlu0 %v1315
      %v1317 = vpop.xlane.xlu0 %1316
      %v1318 = vmul.f32 %v1317, %v1311
      %v1319 = vadd.f32 %v1318, 1e-05
      %v1320 = vrsqrt.pop %v1319
      %v1321 = vmul.f32 %v1313, %v1320
      %v1322 = vld [vmem:[%s8] sm:$0x1]
      %v1324 = vlaneseq
      %v1325 = vshrl.u32 %v1324, 7
      %v1326 = vsub.s32 0, %v1325
      %v1327 = vrot.slane %v1322, %v1326
      %v1329 = vmul.f32 %v1321, %v1327
      %v1330 = vld [vmem:[%s9] sm:$0x1]
      %v1332 = vlaneseq
      %v1333 = vshrl.u32 %v1332, 7
      %v1334 = vsub.s32 0, %v1333
      %v1335 = vrot.slane %v1330, %v1334
      %v1337 = vadd.f32 %v1329, %v1335
      %1338 = vst.msk [vmem:[%s371] sm:$0xff] %vm385, %v1337
      %p1339 = scmp.lt.s32.totalorder %s21, 1
      %s1340 = scalar_select %p1339, %s21, 1
      %s1341 = smul.addr %s1340, 8
      %s1342 = scalar_lea.vmem %s10, %s1341
      // Predicated region
      $region61: #{_lambda_.13} parent=59 // pred_check
        %p1343 = pneg %p259
      $region62: #{_lambda_.13} parent=59 // pred_check_branch
        %1345 = sbr.rel (%p1343) target = $region64
      $region63: #{_lambda_.13} parent=59 // pred_region
        _
      $region64: #{_lambda_.13} parent=59 // pred_fallthru
        _
    $region60: #{_lambda_.13} parent=5 // pred_fallthru
      _
    %p1346 = scmp.le.s32.totalorder 2, %s16
    // Predicated region
    $region65: #{_lambda_.13} parent=5 // pred_check
      %p1347 = pneg %p1346
    $region66: #{_lambda_.13} parent=5 // pred_check_branch
      %1349 = sbr.rel (%p1347) target = $region68
    $region67: #{_lambda_.13} parent=5 // pred_region
      %s1350 = ssub.s32 %s16, 2
      // Predicated region
      $region69: #{_lambda_.13} parent=67 // pred_check
        %p1351 = pneg %p265
      $region70: #{_lambda_.13} parent=67 // pred_check_branch
        %1353 = sbr.rel (%p1351) target = $region72
      $region71: #{_lambda_.13} parent=67 // pred_region
        %p1354 = scmp.lt.s32.totalorder %s22, 1
        %s1355 = scalar_select %p1354, %s22, 1
        %s1356 = smul.addr %s1355, 8
        %s1357 = scalar_lea.vmem %s10, %s1356
      $region72: #{_lambda_.13} parent=67 // pred_fallthru
        _
    $region68: #{_lambda_.13} parent=5 // pred_fallthru
      _
  $region6: #{_lambda_.13} parent=0 // loop_footer
    %s20 = sadd.s32 1, %s16
  $region7: #{_lambda_.13} parent=0 // loop_footer_branch
    %15 = sbr.rel target = $region3
  $region8: #{_lambda_.13} parent=0 // loop_exit
    _

// kernel: _lambda_.23
$region0: #{_lambda_.23}
  #allocation0 [shape = 'u32[]', space=smem, size = 0x4, offset = 0x4, fixed_abs, tag = 'smem constant byte address 0x4 - core index']
  #allocation1 [shape = 'u32[144,128]{1,0:T(1,128)}', space=vmem, size = 0x12000, scoped, tag = 'internal scratch']
  %s0 = inlined_call_operand.vmem [shape: f32[16,32], index: 0, kind: input, shape index: {}]
  %s1 = inlined_call_operand.vmem [shape: f32[32,128], index: 1, kind: input, shape index: {}]
  %s2 = inlined_call_operand.vmem [shape: f32[1,128], index: 2, kind: input, shape index: {}]
  %s3 = inlined_call_operand.hbm [shape: f32[16,128], index: 3, kind: output, shape index: {}]
  %s4 = sld [smem:[#allocation0]]
  $region22: #{_lambda_.23} parent=0
    _
  %s6 = ssub.s32 1, %s4
  %s7 = scalar_select 0, %s6, %s4
  $region1: #{_lambda_.23} parent=0
    #allocation2 [shape = 'u8[8192]{0}', space=vmem, size = 0x2000, scoped, tag = 'output window, operand 0, single buffered']
    #allocation3 [shape = 's32[1]{0}', space=sflag, size = 0x4, scoped, tag = 'scoped memory for _lambda_.23']
    %8 = vsyncpa [#allocation3], 0
    // Predicated region
    $region2: #{_lambda_.23} parent=1 // pred_check
      _
    $region3: #{_lambda_.23} parent=1 // pred_check_branch
      %10 = sbr.rel (0) target = $region5
    $region4: #{_lambda_.23} parent=1 // pred_region
      _
    $region5: #{_lambda_.23} parent=1 // pred_fallthru
      _
    // Predicated region
    $region6: #{_lambda_.23} parent=1 // pred_check
      _
    $region7: #{_lambda_.23} parent=1 // pred_check_branch
      %12 = sbr.rel (0) target = $region9
    $region8: #{_lambda_.23} parent=1 // pred_region
      _
    $region9: #{_lambda_.23} parent=1 // pred_fallthru
      _
    // Predicated region
    $region10: #{_lambda_.23} parent=1 // pred_check
      _
    $region11: #{_lambda_.23} parent=1 // pred_check_branch
      %14 = sbr.rel (0) target = $region13
    $region12: #{_lambda_.23} parent=1 // pred_region
      _
    $region13: #{_lambda_.23} parent=1 // pred_fallthru
      _
    %v15 = vld [vmem:[%s0] sm:$0xff]
    %v16 = vld [vmem:[%s0 + $0x8] sm:$0xff]
    %v17 = vld [vmem:[%s1] sm:$0xff]
    %v18 = vld [vmem:[%s1 + $0x8] sm:$0xff]
    %v19 = vld [vmem:[%s1 + $0x10] sm:$0xff]
    %v20 = vld [vmem:[%s1 + $0x18] sm:$0xff]
    %v21 = vld [vmem:[%s2] sm:$0x1]
    %v23 = vlaneseq
    %v24 = vshrl.u32 %v23, 7
    %v25 = vsub.s32 0, %v24
    %v26 = vrot.slane %v21, %v25
    %vm28 = vcmask 261120
    %v30 = vsel %vm28, %v15, 0
    %v33 = vsel %vm28, %v16, 0
    %35 = vmatprep.subr.mxu0 0.0
    %36 = vmatpush1.msra.mxu0 %v17
    %37 = vmatprep.subr.mxu0 0.0
    %38 = vmatpush1.msra.mxu0 %v18
    %39 = vmatprep.subr.mxu0 0.0
    %40 = vmatpush1.msra.mxu0 %v19
    %41 = vmatprep.subr.mxu0 0.0
    %42 = vmatpush1.msra.mxu0 %v20
    %43 = vmatprep.subr.mxu0 0.0
    %44 = vmatpush1.msra.mxu0 0.0
    %45 = vmatprep.subr.mxu0 0.0
    %46 = vmatpush1.msra.mxu0 0.0
    %47 = vmatprep.subr.mxu0 0.0
    %48 = vmatpush1.msra.mxu0 0.0
    %49 = vmatprep.subr.mxu0 0.0
    %50 = vmatpush1.msra.mxu0 0.0
    %51 = vmatprep.subr.mxu0 0.0
    %52 = vmatpush1.msra.mxu0 0.0
    %53 = vmatprep.subr.mxu0 0.0
    %54 = vmatpush1.msra.mxu0 0.0
    %55 = vmatprep.subr.mxu0 0.0
    %56 = vmatpush1.msra.mxu0 0.0
    %57 = vmatprep.subr.mxu0 0.0
    %58 = vmatpush1.msra.mxu0 0.0
    %59 = vmatprep.subr.mxu0 0.0
    %60 = vmatpush1.msra.mxu0 0.0
    %61 = vmatprep.subr.mxu0 0.0
    %62 = vmatpush1.msra.mxu0 0.0
    %63 = vmatprep.subr.mxu0 0.0
    %64 = vmatpush1.msra.mxu0 0.0
    %65 = vmatprep.subr.mxu0 0.0
    %66 = vmatpush1.msra.mxu0 0.0
    %67 = vmatprep.subr.mxu0 0.0
    %68 = vmatpush1.msra.mxu0 0.0
    %69 = vmatprep.subr.mxu0 0.0
    %70 = vmatpush1.msra.mxu0 0.0
    %71 = vmatprep.subr.mxu0 0.0
    %72 = vmatpush1.msra.mxu0 0.0
    %73 = vmatprep.subr.mxu0 0.0
    %74 = vmatpush1.msra.mxu0 0.0
    %75 = vmatprep.subr.mxu0 0.0
    %76 = vmatpush1.msra.mxu0 0.0
    %77 = vmatprep.subr.mxu0 0.0
    %78 = vmatpush1.msra.mxu0 0.0
    %79 = vmatprep.subr.mxu0 0.0
    %80 = vmatpush1.msra.mxu0 0.0
    %81 = vmatprep.subr.mxu0 0.0
    %82 = vmatpush1.msra.mxu0 0.0
    %83 = vmatprep.subr.mxu0 0.0
    %84 = vmatpush1.msra.mxu0 0.0
    %85 = vmatprep.subr.mxu0 0.0
    %86 = vmatpush1.msra.mxu0 0.0
    %87 = vmatprep.subr.mxu0 0.0
    %88 = vmatpush1.msra.mxu0 0.0
    %89 = vmatprep.subr.mxu0 0.0
    %90 = vmatpush1.msra.mxu0 0.0
    %91 = vmatprep.subr.mxu0 0.0
    %92 = vmatpush1.msra.mxu0 0.0
    %93 = vmatprep.subr.mxu0 0.0
    %94 = vmatpush1.msra.mxu0 0.0
    %95 = vmatprep.subr.mxu0 0.0
    %96 = vmatpush1.msra.mxu0 0.0
    %97 = vmatprep.subr.mxu0 0.0
    %98 = vmatpush1.msra.mxu0 0.0
    %99 = vmatprep.mubr.f32.mxu0 0.0
    %100 = vmatmul.mubr.f32.gmra.mrb[0].mxu0 %v30
    %v101 = vpop.f32.mrb[0].mxu0
    %v102 = vadd.f32 %v26, %v101
    %v103 = vpop.f32.mrb[0].mxu0
    %104 = vmatprep.mubr.f32.mxu0 0.0
    %105 = vmatmul.mubr.f32.gmra.mrb[0].mxu0 %v33
    %v106 = vpop.f32.mrb[0].mxu0
    %v107 = vadd.f32 %v26, %v106
    %v108 = vpop.f32.mrb[0].mxu0
    %109 = vdwg.mxu0
    %110 = vst [vmem:[#allocation2] sm:$0xff] %v102
    %111 = vst [vmem:[#allocation2 + $0x8] sm:$0xff] %v107
    // Predicated region
    $region14: #{_lambda_.23} parent=1 // pred_check
      _
    $region15: #{_lambda_.23} parent=1 // pred_check_branch
      %113 = sbr.rel (0) target = $region17
    $region16: #{_lambda_.23} parent=1 // pred_region
      %s115 = ssub.s32 256, 256
      %116 = vsyncadd [#allocation3], %s115
      %s117 = sshll.u32 [#allocation2], 4
      %s118 = int_to_ptr.vmem [resolvable:$true] %s117
      %123 = dma.vmem_to_hbm [thread:$0]  %s118, 256, %s3, [#allocation3], 128, 128, 8
    $region17: #{_lambda_.23} parent=1 // pred_fallthru
      _
    // Predicated region
    $region18: #{_lambda_.23} parent=1 // pred_check
      _
    $region19: #{_lambda_.23} parent=1 // pred_check_branch
      %125 = sbr.rel (0) target = $region21
    $region20: #{_lambda_.23} parent=1 // pred_region
      %126 = dma.done [#allocation3], 256
    $region21: #{_lambda_.23} parent=1 // pred_fallthru
      _
    %127 = vsyncpa [#allocation3], 1

</llo_original>
